<compile_context>
chip_gen: v5e
topology: v5e:2x2
jax: 0.10.0
libtpu: 0.0.40
codegen_flags: <defaults>
</compile_context>

<pallas_src>
import numpy as np
import jax
import jax.numpy as jnp
from jax import lax
from jax.experimental import pallas as pl
from jax.experimental.pallas import tpu as pltpu


# Fixed SimpleCNN geometry (3x32x32 input -> conv5x5 -> pool -> conv5x5 -> pool).
_H0, _W0, _CIN = 32, 32, 3
_K = 5                    # conv kernel size
_C1, _C2 = 6, 16          # conv output channels
_WP1 = 14                 # pooled width after pool1
_HP2, _WP2 = 5, 5         # pooled spatial after pool2
_FLAT = _C2 * _HP2 * _WP2  # 400
_LANE = 128


def _vmem_spec():
    return pl.BlockSpec(memory_space=pltpu.MemorySpace.VMEM)


def _fused_cnn_kernel(xph_ref, m1_ref, b1_ref, m2_ref, b2_ref,
                      fc1w_ref, fc1b_ref, fc2w_ref, fc2b_ref,
                      fc3w_ref, fc3b_ref, o_ref):
    """Whole SimpleCNN forward for a small batch, fully VMEM-resident.

    xph_ref : (N, 4, 8, 96)  input split into 4 H-phases (h = 4*i + p); cols = W*Cin
    m1_ref  : (5, 96, 256)   conv1 block-Toeplitz weights (one per kernel row di);
                             columns = [b*128 + q*6 + co], b = output-W parity
    m2_ref  : (5, 84, 256)   conv2 block-Toeplitz weights, columns [b*128 + q*16 + co]
    fc1w_ref: (5, 80, 128)   fc1 weights: one (80,128) block per pooled row, rows
                             ordered (q2*16+co) — PyTorch (C,H,W) flatten is folded
                             into this permutation; 120 -> 128 lane padded
    fc2w_ref: (128, 128), fc3w_ref: (128, 10)   zero-padded FC weights
    """
    n_img = xph_ref.shape[0]

    # Hoist all weight / bias loads out of the image loop.
    m1 = [m1_ref[d] for d in range(_K)]
    m2 = [m2_ref[d] for d in range(_K)]
    f1 = [fc1w_ref[r] for r in range(_HP2)]
    b1, b2 = b1_ref[...], b2_ref[...]
    fc1b, fc2w, fc2b = fc1b_ref[...], fc2w_ref[...], fc2b_ref[...]
    fc3w, fc3b = fc3w_ref[...], fc3b_ref[...]

    for n in range(n_img):                       # batch is tiny & static -> unrolled
        xp = [xph_ref[n, p] for p in range(4)]   # 4 x (8, 96)

        # conv1 + bias + ReLU in 4 H-phases (output row mod 4); each matmul already
        # produces both output-W parities in 128-aligned column blocks.
        y1 = []
        for m in range(4):
            acc = None
            for di in range(_K):
                t = m + di
                lhs = xp[t % 4][(t // 4):(t // 4) + 7, :]            # (7, 96)
                prt = jnp.dot(lhs, m1[di], preferred_element_type=jnp.float32)
                acc = prt if acc is None else acc + prt
            y1.append(jnp.maximum(acc + b1, 0.0))                    # (7, 256)

        # 2x2 max-pool #1: element-wise max of the 4 (H-phase, W-parity) blocks;
        # result rows come out split by pooled-row parity, ready for conv2.
        p1 = []
        for g in range(2):                       # g=0 -> even pooled rows, g=1 -> odd
            ya, yb = y1[2 * g], y1[2 * g + 1]
            p1.append(jnp.maximum(
                jnp.maximum(ya[:, 0:84], ya[:, 128:212]),
                jnp.maximum(yb[:, 0:84], yb[:, 128:212])))           # (7, 84)

        # conv2 + bias + ReLU in 2 H-phases (output row parity).
        y2 = []
        for a in range(2):
            acc = None
            for di in range(_K):
                t = a + di
                lhs = p1[t % 2][(t // 2):(t // 2) + 5, :]            # (5, 84)
                prt = jnp.dot(lhs, m2[di], preferred_element_type=jnp.float32)
                acc = prt if acc is None else acc + prt
            y2.append(jnp.maximum(acc + b2, 0.0))                    # (5, 256)

        # 2x2 max-pool #2 -> (5, 80) laid out as (pooled row, q2*16 + co).
        p2 = jnp.maximum(
            jnp.maximum(y2[0][:, 0:80], y2[0][:, 128:208]),
            jnp.maximum(y2[1][:, 0:80], y2[1][:, 128:208]))

        # fc1 (flatten folded into per-row weight blocks) -> ReLU -> fc2 -> ReLU -> fc3
        acc = None
        for r in range(_HP2):
            prt = jnp.dot(p2[r:r + 1, :], f1[r], preferred_element_type=jnp.float32)
            acc = prt if acc is None else acc + prt
        h1 = jnp.maximum(acc + fc1b, 0.0)                            # (1, 128)
        h2 = jnp.maximum(
            jnp.dot(h1, fc2w, preferred_element_type=jnp.float32) + fc2b, 0.0)
        o_ref[n:n + 1, :] = (
            jnp.dot(h2, fc3w, preferred_element_type=jnp.float32) + fc3b)


def _fused_forward(xph, p):
    n = xph.shape[0]
    out_dim = p["fc3b"].shape[1]
    return pl.pallas_call(
        _fused_cnn_kernel,
        out_shape=jax.ShapeDtypeStruct((n, out_dim), jnp.float32),
        in_specs=[_vmem_spec()] * 11,
        out_specs=_vmem_spec(),
    )(xph, p["m1"], p["b1"], p["m2"], p["b2"],
      p["fc1w"], p["fc1b"], p["fc2w"], p["fc2b"], p["fc3w"], p["fc3b"])


@jax.jit
def simple_cnn_forward(params, x_nchw):
    """SimpleCNN.forward: x is NCHW (N, 3, 32, 32) -> (N, 10) logits."""
    n = x_nchw.shape[0]
    x = jnp.transpose(x_nchw, (0, 2, 3, 1))               # NHWC
    x = x.reshape(n, _H0 // 4, 4, _W0 * _CIN)             # h = 4*i + p
    xph = jnp.transpose(x, (0, 2, 1, 3))                  # (N, 4, 8, 96)
    return _fused_forward(xph, params)


# ----------------------------------------------------------------------------
# Parameter construction: PyTorch-style uniform init, then rearranged into the
# kernel's block-Toeplitz / lane-padded layouts (one-time, on host).
# ----------------------------------------------------------------------------
def _uniform(key, shape, fan_in):
    bound = 1.0 / np.sqrt(fan_in)
    return np.asarray(jax.random.uniform(key, shape, jnp.float32, -bound, bound))


def init_params(key, hidden_dims=(120, 84), output_dim=10):
    """Returns (kernel_params, raw_params). raw_params keep the PyTorch layout
    (used only by the pure-JAX reference)."""
    assert hidden_dims[0] <= _LANE and hidden_dims[1] <= _LANE
    ks = jax.random.split(key, 10)
    w1 = _uniform(ks[0], (_C1, _CIN, _K, _K), _CIN * _K * _K)
    c1b = _uniform(ks[1], (_C1,), _CIN * _K * _K)
    w2 = _uniform(ks[2], (_C2, _C1, _K, _K), _C1 * _K * _K)
    c2b = _uniform(ks[3], (_C2,), _C1 * _K * _K)
    fc1 = _uniform(ks[4], (hidden_dims[0], _FLAT), _FLAT)
    fb1 = _uniform(ks[5], (hidden_dims[0],), _FLAT)
    fc2 = _uniform(ks[6], (hidden_dims[1], hidden_dims[0]), hidden_dims[0])
    fb2 = _uniform(ks[7], (hidden_dims[1],), hidden_dims[0])
    fc3 = _uniform(ks[8], (output_dim, hidden_dims[1]), hidden_dims[1])
    fb3 = _uniform(ks[9], (output_dim,), hidden_dims[1])

    # conv1 Toeplitz: m1[di][(2q+b+dj)*3 + ci, b*128 + q*6 + co] = w1[co,ci,di,dj]
    m1 = np.zeros((_K, _W0 * _CIN, 2 * _LANE), np.float32)
    b1 = np.zeros((1, 2 * _LANE), np.float32)
    for di in range(_K):
        for dj in range(_K):
            wt = w1[:, :, di, dj].T                     # (ci, co)
            for b in range(2):
                for q in range(_WP1):
                    w_in = 2 * q + b + dj
                    m1[di, w_in * _CIN:(w_in + 1) * _CIN,
                       b * _LANE + q * _C1: b * _LANE + q * _C1 + _C1] = wt
    for b in range(2):
        for q in range(_WP1):
            b1[0, b * _LANE + q * _C1: b * _LANE + q * _C1 + _C1] = c1b

    # conv2 Toeplitz: m2[di][(2q+b+dj)*6 + ci, b*128 + q*16 + co] = w2[co,ci,di,dj]
    m2 = np.zeros((_K, _WP1 * _C1, 2 * _LANE), np.float32)
    b2 = np.zeros((1, 2 * _LANE), np.float32)
    for di in range(_K):
        for dj in range(_K):
            wt = w2[:, :, di, dj].T                     # (ci, co)
            for b in range(2):
                for q in range(_WP2):
                    w_in = 2 * q + b + dj
                    m2[di, w_in * _C1:(w_in + 1) * _C1,
                       b * _LANE + q * _C2: b * _LANE + q * _C2 + _C2] = wt
    for b in range(2):
        for q in range(_WP2):
            b2[0, b * _LANE + q * _C2: b * _LANE + q * _C2 + _C2] = c2b

    # fc1: one (80,128) block per pooled row; the PyTorch (C,H,W) flatten order is
    # folded into the row permutation (kills the pre-MLP transpose). 120->128 pad.
    h1d, h2d = hidden_dims
    fc1w = np.zeros((_HP2, _WP2 * _C2, _LANE), np.float32)
    for p2r in range(_HP2):
        for q2 in range(_WP2):
            for co in range(_C2):
                torch_col = co * (_HP2 * _WP2) + p2r * _WP2 + q2
                fc1w[p2r, q2 * _C2 + co, :h1d] = fc1[:, torch_col]
    fc1b = np.zeros((1, _LANE), np.float32); fc1b[0, :h1d] = fb1
    fc2w = np.zeros((_LANE, _LANE), np.float32); fc2w[:h1d, :h2d] = fc2.T
    fc2b = np.zeros((1, _LANE), np.float32); fc2b[0, :h2d] = fb2
    fc3w = np.zeros((_LANE, output_dim), np.float32); fc3w[:h2d, :] = fc3.T
    fc3b = fb3.reshape(1, output_dim)

    kernel_params = {k: jnp.asarray(v) for k, v in dict(
        m1=m1, b1=b1, m2=m2, b2=b2, fc1w=fc1w, fc1b=fc1b,
        fc2w=fc2w, fc2b=fc2b, fc3w=fc3w, fc3b=fc3b).items()}
    raw_params = dict(w1=jnp.asarray(w1), c1b=jnp.asarray(c1b),
                      w2=jnp.asarray(w2), c2b=jnp.asarray(c2b),
                      fc1=jnp.asarray(fc1), fb1=jnp.asarray(fb1),
                      fc2=jnp.asarray(fc2), fb2=jnp.asarray(fb2),
                      fc3=jnp.asarray(fc3), fb3=jnp.asarray(fb3))
    return kernel_params, raw_params


# ----------------------------------------------------------------------------
# Pure-JAX reference (PyTorch semantics) used only for validation.
# ----------------------------------------------------------------------------
def reference_forward(raw, x_nchw):
    with jax.default_matmul_precision("float32"):
        def conv_relu(x, w, b):            # x NHWC, w torch (co, ci, kh, kw)
            y = lax.conv_general_dilated(
                x, jnp.transpose(w, (2, 3, 1, 0)), (1, 1), "VALID",
                dimension_numbers=("NHWC", "HWIO", "NHWC"),
                precision=lax.Precision.HIGHEST)
            return jnp.maximum(y + b, 0.0)

        def pool(x):
            n, h, w, c = x.shape
            return x.reshape(n, h // 2, 2, w // 2, 2, c).max(axis=(2, 4))

        x = jnp.transpose(x_nchw, (0, 2, 3, 1))
        x = pool(conv_relu(x, raw["w1"], raw["c1b"]))
        x = pool(conv_relu(x, raw["w2"], raw["c2b"]))
        x = jnp.transpose(x, (0, 3, 1, 2)).reshape(x.shape[0], _FLAT)  # torch view
        x = jnp.maximum(x @ raw["fc1"].T + raw["fb1"], 0.0)
        x = jnp.maximum(x @ raw["fc2"].T + raw["fb2"], 0.0)
        return x @ raw["fc3"].T + raw["fb3"]


if __name__ == "__main__":
    key = jax.random.PRNGKey(0)
    k_param, k_x = jax.random.split(key)

    # SimpleCNN(input_dim=16*5*5, hidden_dims=[120, 84], output_dim=10)
    params, raw = init_params(k_param, hidden_dims=(120, 84), output_dim=10)

    # Geometry requires 3x32x32 inputs (32 -5+1-> 28 -/2-> 14 -5+1-> 10 -/2-> 5).
    x = jax.random.normal(k_x, (2, 3, 32, 32), dtype=jnp.float32)    # NCHW, batch=2

    out = jax.block_until_ready(simple_cnn_forward(params, x))
    assert out.shape == (2, 10) and out.dtype == jnp.float32

    ref = jax.block_until_ready(reference_forward(raw, x))
    np.testing.assert_allclose(np.asarray(out), np.asarray(ref), rtol=2e-3, atol=2e-3)

    print("KERNEL_OK")
</pallas_src>

<mosaic_0001>
module attributes {stable_mosaic.version = 11 : i64} {
  func.func @_fused_cnn_kernel(%arg0: memref<2x4x8x96xf32, #tpu.memory_space<vmem>>, %arg1: memref<5x96x256xf32, #tpu.memory_space<vmem>>, %arg2: memref<1x256xf32, #tpu.memory_space<vmem>>, %arg3: memref<5x84x256xf32, #tpu.memory_space<vmem>>, %arg4: memref<1x256xf32, #tpu.memory_space<vmem>>, %arg5: memref<5x80x128xf32, #tpu.memory_space<vmem>>, %arg6: memref<1x128xf32, #tpu.memory_space<vmem>>, %arg7: memref<128x128xf32, #tpu.memory_space<vmem>>, %arg8: memref<1x128xf32, #tpu.memory_space<vmem>>, %arg9: memref<128x10xf32, #tpu.memory_space<vmem>>, %arg10: memref<1x10xf32, #tpu.memory_space<vmem>>, %arg11: memref<2x10xf32, #tpu.memory_space<vmem>>) attributes {dimension_semantics = [], scalar_prefetch = 0 : i64, scratch_operands = 0 : i64, tpu.core_type = #tpu.core_type<tc>} {
    %c0 = arith.constant 0 : index
    %c0_0 = arith.constant 0 : index
    %c0_1 = arith.constant 0 : index
    %0 = vector.load %arg1[%c0, %c0_0, %c0_1] : memref<5x96x256xf32, #tpu.memory_space<vmem>>, vector<1x96x256xf32>
    %1 = vector.shape_cast %0 : vector<1x96x256xf32> to vector<96x256xf32>
    %c1 = arith.constant 1 : index
    %c0_2 = arith.constant 0 : index
    %c0_3 = arith.constant 0 : index
    %2 = vector.load %arg1[%c1, %c0_2, %c0_3] : memref<5x96x256xf32, #tpu.memory_space<vmem>>, vector<1x96x256xf32>
    %3 = vector.shape_cast %2 : vector<1x96x256xf32> to vector<96x256xf32>
    %c2 = arith.constant 2 : index
    %c0_4 = arith.constant 0 : index
    %c0_5 = arith.constant 0 : index
    %4 = vector.load %arg1[%c2, %c0_4, %c0_5] : memref<5x96x256xf32, #tpu.memory_space<vmem>>, vector<1x96x256xf32>
    %5 = vector.shape_cast %4 : vector<1x96x256xf32> to vector<96x256xf32>
    %c3 = arith.constant 3 : index
    %c0_6 = arith.constant 0 : index
    %c0_7 = arith.constant 0 : index
    %6 = vector.load %arg1[%c3, %c0_6, %c0_7] : memref<5x96x256xf32, #tpu.memory_space<vmem>>, vector<1x96x256xf32>
    %7 = vector.shape_cast %6 : vector<1x96x256xf32> to vector<96x256xf32>
    %c4 = arith.constant 4 : index
    %c0_8 = arith.constant 0 : index
    %c0_9 = arith.constant 0 : index
    %8 = vector.load %arg1[%c4, %c0_8, %c0_9] : memref<5x96x256xf32, #tpu.memory_space<vmem>>, vector<1x96x256xf32>
    %9 = vector.shape_cast %8 : vector<1x96x256xf32> to vector<96x256xf32>
    %c0_10 = arith.constant 0 : index
    %c0_11 = arith.constant 0 : index
    %c0_12 = arith.constant 0 : index
    %10 = vector.load %arg3[%c0_10, %c0_11, %c0_12] : memref<5x84x256xf32, #tpu.memory_space<vmem>>, vector<1x84x256xf32>
    %11 = vector.shape_cast %10 : vector<1x84x256xf32> to vector<84x256xf32>
    %c1_13 = arith.constant 1 : index
    %c0_14 = arith.constant 0 : index
    %c0_15 = arith.constant 0 : index
    %12 = vector.load %arg3[%c1_13, %c0_14, %c0_15] : memref<5x84x256xf32, #tpu.memory_space<vmem>>, vector<1x84x256xf32>
    %13 = vector.shape_cast %12 : vector<1x84x256xf32> to vector<84x256xf32>
    %c2_16 = arith.constant 2 : index
    %c0_17 = arith.constant 0 : index
    %c0_18 = arith.constant 0 : index
    %14 = vector.load %arg3[%c2_16, %c0_17, %c0_18] : memref<5x84x256xf32, #tpu.memory_space<vmem>>, vector<1x84x256xf32>
    %15 = vector.shape_cast %14 : vector<1x84x256xf32> to vector<84x256xf32>
    %c3_19 = arith.constant 3 : index
    %c0_20 = arith.constant 0 : index
    %c0_21 = arith.constant 0 : index
    %16 = vector.load %arg3[%c3_19, %c0_20, %c0_21] : memref<5x84x256xf32, #tpu.memory_space<vmem>>, vector<1x84x256xf32>
    %17 = vector.shape_cast %16 : vector<1x84x256xf32> to vector<84x256xf32>
    %c4_22 = arith.constant 4 : index
    %c0_23 = arith.constant 0 : index
    %c0_24 = arith.constant 0 : index
    %18 = vector.load %arg3[%c4_22, %c0_23, %c0_24] : memref<5x84x256xf32, #tpu.memory_space<vmem>>, vector<1x84x256xf32>
    %19 = vector.shape_cast %18 : vector<1x84x256xf32> to vector<84x256xf32>
    %c0_25 = arith.constant 0 : index
    %c0_26 = arith.constant 0 : index
    %c0_27 = arith.constant 0 : index
    %20 = vector.load %arg5[%c0_25, %c0_26, %c0_27] : memref<5x80x128xf32, #tpu.memory_space<vmem>>, vector<1x80x128xf32>
    %21 = vector.shape_cast %20 : vector<1x80x128xf32> to vector<80x128xf32>
    %c1_28 = arith.constant 1 : index
    %c0_29 = arith.constant 0 : index
    %c0_30 = arith.constant 0 : index
    %22 = vector.load %arg5[%c1_28, %c0_29, %c0_30] : memref<5x80x128xf32, #tpu.memory_space<vmem>>, vector<1x80x128xf32>
    %23 = vector.shape_cast %22 : vector<1x80x128xf32> to vector<80x128xf32>
    %c2_31 = arith.constant 2 : index
    %c0_32 = arith.constant 0 : index
    %c0_33 = arith.constant 0 : index
    %24 = vector.load %arg5[%c2_31, %c0_32, %c0_33] : memref<5x80x128xf32, #tpu.memory_space<vmem>>, vector<1x80x128xf32>
    %25 = vector.shape_cast %24 : vector<1x80x128xf32> to vector<80x128xf32>
    %c3_34 = arith.constant 3 : index
    %c0_35 = arith.constant 0 : index
    %c0_36 = arith.constant 0 : index
    %26 = vector.load %arg5[%c3_34, %c0_35, %c0_36] : memref<5x80x128xf32, #tpu.memory_space<vmem>>, vector<1x80x128xf32>
    %27 = vector.shape_cast %26 : vector<1x80x128xf32> to vector<80x128xf32>
    %c4_37 = arith.constant 4 : index
    %c0_38 = arith.constant 0 : index
    %c0_39 = arith.constant 0 : index
    %28 = vector.load %arg5[%c4_37, %c0_38, %c0_39] : memref<5x80x128xf32, #tpu.memory_space<vmem>>, vector<1x80x128xf32>
    %29 = vector.shape_cast %28 : vector<1x80x128xf32> to vector<80x128xf32>
    %c0_40 = arith.constant 0 : index
    %c0_41 = arith.constant 0 : index
    %30 = vector.load %arg2[%c0_40, %c0_41] : memref<1x256xf32, #tpu.memory_space<vmem>>, vector<1x256xf32>
    %c0_42 = arith.constant 0 : index
    %c0_43 = arith.constant 0 : index
    %31 = vector.load %arg4[%c0_42, %c0_43] : memref<1x256xf32, #tpu.memory_space<vmem>>, vector<1x256xf32>
    %c0_44 = arith.constant 0 : index
    %c0_45 = arith.constant 0 : index
    %32 = vector.load %arg6[%c0_44, %c0_45] : memref<1x128xf32, #tpu.memory_space<vmem>>, vector<1x128xf32>
    %c0_46 = arith.constant 0 : index
    %c0_47 = arith.constant 0 : index
    %33 = vector.load %arg7[%c0_46, %c0_47] : memref<128x128xf32, #tpu.memory_space<vmem>>, vector<128x128xf32>
    %c0_48 = arith.constant 0 : index
    %c0_49 = arith.constant 0 : index
    %34 = vector.load %arg8[%c0_48, %c0_49] : memref<1x128xf32, #tpu.memory_space<vmem>>, vector<1x128xf32>
    %c0_50 = arith.constant 0 : index
    %c0_51 = arith.constant 0 : index
    %35 = vector.load %arg9[%c0_50, %c0_51] : memref<128x10xf32, #tpu.memory_space<vmem>>, vector<128x10xf32>
    %c0_52 = arith.constant 0 : index
    %c0_53 = arith.constant 0 : index
    %36 = vector.load %arg10[%c0_52, %c0_53] : memref<1x10xf32, #tpu.memory_space<vmem>>, vector<1x10xf32>
    %c0_54 = arith.constant 0 : index
    %c0_55 = arith.constant 0 : index
    %c0_56 = arith.constant 0 : index
    %c0_57 = arith.constant 0 : index
    %37 = vector.load %arg0[%c0_54, %c0_55, %c0_56, %c0_57] : memref<2x4x8x96xf32, #tpu.memory_space<vmem>>, vector<1x1x8x96xf32>
    %38 = vector.shape_cast %37 : vector<1x1x8x96xf32> to vector<8x96xf32>
    %c0_58 = arith.constant 0 : index
    %c1_59 = arith.constant 1 : index
    %c0_60 = arith.constant 0 : index
    %c0_61 = arith.constant 0 : index
    %39 = vector.load %arg0[%c0_58, %c1_59, %c0_60, %c0_61] : memref<2x4x8x96xf32, #tpu.memory_space<vmem>>, vector<1x1x8x96xf32>
    %40 = vector.shape_cast %39 : vector<1x1x8x96xf32> to vector<8x96xf32>
    %c0_62 = arith.constant 0 : index
    %c2_63 = arith.constant 2 : index
    %c0_64 = arith.constant 0 : index
    %c0_65 = arith.constant 0 : index
    %41 = vector.load %arg0[%c0_62, %c2_63, %c0_64, %c0_65] : memref<2x4x8x96xf32, #tpu.memory_space<vmem>>, vector<1x1x8x96xf32>
    %42 = vector.shape_cast %41 : vector<1x1x8x96xf32> to vector<8x96xf32>
    %c0_66 = arith.constant 0 : index
    %c3_67 = arith.constant 3 : index
    %c0_68 = arith.constant 0 : index
    %c0_69 = arith.constant 0 : index
    %43 = vector.load %arg0[%c0_66, %c3_67, %c0_68, %c0_69] : memref<2x4x8x96xf32, #tpu.memory_space<vmem>>, vector<1x1x8x96xf32>
    %44 = vector.shape_cast %43 : vector<1x1x8x96xf32> to vector<8x96xf32>
    %45 = vector.extract_strided_slice %38 {offsets = [0, 0], sizes = [7, 96], strides = [1, 1]} : vector<8x96xf32> to vector<7x96xf32>
    %cst = arith.constant dense<0.000000e+00> : vector<7x256xf32>
    %46 = tpu.matmul %45, %1, %cst {dimension_numbers = #tpu.dot_dimension_numbers<[1], [0], [0], [1], [0, 0, 1, 1], [], []>} : vector<7x96xf32>, vector<96x256xf32>, vector<7x256xf32> -> vector<7x256xf32>
    %47 = vector.extract_strided_slice %40 {offsets = [0, 0], sizes = [7, 96], strides = [1, 1]} : vector<8x96xf32> to vector<7x96xf32>
    %cst_70 = arith.constant dense<0.000000e+00> : vector<7x256xf32>
    %48 = tpu.matmul %47, %3, %cst_70 {dimension_numbers = #tpu.dot_dimension_numbers<[1], [0], [0], [1], [0, 0, 1, 1], [], []>} : vector<7x96xf32>, vector<96x256xf32>, vector<7x256xf32> -> vector<7x256xf32>
    %49 = arith.addf %46, %48 : vector<7x256xf32>
    %50 = vector.extract_strided_slice %42 {offsets = [0, 0], sizes = [7, 96], strides = [1, 1]} : vector<8x96xf32> to vector<7x96xf32>
    %cst_71 = arith.constant dense<0.000000e+00> : vector<7x256xf32>
    %51 = tpu.matmul %50, %5, %cst_71 {dimension_numbers = #tpu.dot_dimension_numbers<[1], [0], [0], [1], [0, 0, 1, 1], [], []>} : vector<7x96xf32>, vector<96x256xf32>, vector<7x256xf32> -> vector<7x256xf32>
    %52 = arith.addf %49, %51 : vector<7x256xf32>
    %53 = vector.extract_strided_slice %44 {offsets = [0, 0], sizes = [7, 96], strides = [1, 1]} : vector<8x96xf32> to vector<7x96xf32>
    %cst_72 = arith.constant dense<0.000000e+00> : vector<7x256xf32>
    %54 = tpu.matmul %53, %7, %cst_72 {dimension_numbers = #tpu.dot_dimension_numbers<[1], [0], [0], [1], [0, 0, 1, 1], [], []>} : vector<7x96xf32>, vector<96x256xf32>, vector<7x256xf32> -> vector<7x256xf32>
    %55 = arith.addf %52, %54 : vector<7x256xf32>
    %56 = vector.extract_strided_slice %38 {offsets = [1, 0], sizes = [7, 96], strides = [1, 1]} : vector<8x96xf32> to vector<7x96xf32>
    %cst_73 = arith.constant dense<0.000000e+00> : vector<7x256xf32>
    %57 = tpu.matmul %56, %9, %cst_73 {dimension_numbers = #tpu.dot_dimension_numbers<[1], [0], [0], [1], [0, 0, 1, 1], [], []>} : vector<7x96xf32>, vector<96x256xf32>, vector<7x256xf32> -> vector<7x256xf32>
    %58 = arith.addf %55, %57 : vector<7x256xf32>
    %59 = vector.broadcast %30 : vector<1x256xf32> to vector<7x256xf32>
    %60 = arith.addf %58, %59 : vector<7x256xf32>
    %cst_74 = arith.constant 0.000000e+00 : f32
    %61 = vector.broadcast %cst_74 : f32 to vector<7x256xf32>
    %62 = arith.maximumf %60, %61 : vector<7x256xf32>
    %63 = vector.extract_strided_slice %40 {offsets = [0, 0], sizes = [7, 96], strides = [1, 1]} : vector<8x96xf32> to vector<7x96xf32>
    %cst_75 = arith.constant dense<0.000000e+00> : vector<7x256xf32>
    %64 = tpu.matmul %63, %1, %cst_75 {dimension_numbers = #tpu.dot_dimension_numbers<[1], [0], [0], [1], [0, 0, 1, 1], [], []>} : vector<7x96xf32>, vector<96x256xf32>, vector<7x256xf32> -> vector<7x256xf32>
    %65 = vector.extract_strided_slice %42 {offsets = [0, 0], sizes = [7, 96], strides = [1, 1]} : vector<8x96xf32> to vector<7x96xf32>
    %cst_76 = arith.constant dense<0.000000e+00> : vector<7x256xf32>
    %66 = tpu.matmul %65, %3, %cst_76 {dimension_numbers = #tpu.dot_dimension_numbers<[1], [0], [0], [1], [0, 0, 1, 1], [], []>} : vector<7x96xf32>, vector<96x256xf32>, vector<7x256xf32> -> vector<7x256xf32>
    %67 = arith.addf %64, %66 : vector<7x256xf32>
    %68 = vector.extract_strided_slice %44 {offsets = [0, 0], sizes = [7, 96], strides = [1, 1]} : vector<8x96xf32> to vector<7x96xf32>
    %cst_77 = arith.constant dense<0.000000e+00> : vector<7x256xf32>
    %69 = tpu.matmul %68, %5, %cst_77 {dimension_numbers = #tpu.dot_dimension_numbers<[1], [0], [0], [1], [0, 0, 1, 1], [], []>} : vector<7x96xf32>, vector<96x256xf32>, vector<7x256xf32> -> vector<7x256xf32>
    %70 = arith.addf %67, %69 : vector<7x256xf32>
    %71 = vector.extract_strided_slice %38 {offsets = [1, 0], sizes = [7, 96], strides = [1, 1]} : vector<8x96xf32> to vector<7x96xf32>
    %cst_78 = arith.constant dense<0.000000e+00> : vector<7x256xf32>
    %72 = tpu.matmul %71, %7, %cst_78 {dimension_numbers = #tpu.dot_dimension_numbers<[1], [0], [0], [1], [0, 0, 1, 1], [], []>} : vector<7x96xf32>, vector<96x256xf32>, vector<7x256xf32> -> vector<7x256xf32>
    %73 = arith.addf %70, %72 : vector<7x256xf32>
    %74 = vector.extract_strided_slice %40 {offsets = [1, 0], sizes = [7, 96], strides = [1, 1]} : vector<8x96xf32> to vector<7x96xf32>
    %cst_79 = arith.constant dense<0.000000e+00> : vector<7x256xf32>
    %75 = tpu.matmul %74, %9, %cst_79 {dimension_numbers = #tpu.dot_dimension_numbers<[1], [0], [0], [1], [0, 0, 1, 1], [], []>} : vector<7x96xf32>, vector<96x256xf32>, vector<7x256xf32> -> vector<7x256xf32>
    %76 = arith.addf %73, %75 : vector<7x256xf32>
    %77 = vector.broadcast %30 : vector<1x256xf32> to vector<7x256xf32>
    %78 = arith.addf %76, %77 : vector<7x256xf32>
    %cst_80 = arith.constant 0.000000e+00 : f32
    %79 = vector.broadcast %cst_80 : f32 to vector<7x256xf32>
    %80 = arith.maximumf %78, %79 : vector<7x256xf32>
    %81 = vector.extract_strided_slice %42 {offsets = [0, 0], sizes = [7, 96], strides = [1, 1]} : vector<8x96xf32> to vector<7x96xf32>
    %cst_81 = arith.constant dense<0.000000e+00> : vector<7x256xf32>
    %82 = tpu.matmul %81, %1, %cst_81 {dimension_numbers = #tpu.dot_dimension_numbers<[1], [0], [0], [1], [0, 0, 1, 1], [], []>} : vector<7x96xf32>, vector<96x256xf32>, vector<7x256xf32> -> vector<7x256xf32>
    %83 = vector.extract_strided_slice %44 {offsets = [0, 0], sizes = [7, 96], strides = [1, 1]} : vector<8x96xf32> to vector<7x96xf32>
    %cst_82 = arith.constant dense<0.000000e+00> : vector<7x256xf32>
    %84 = tpu.matmul %83, %3, %cst_82 {dimension_numbers = #tpu.dot_dimension_numbers<[1], [0], [0], [1], [0, 0, 1, 1], [], []>} : vector<7x96xf32>, vector<96x256xf32>, vector<7x256xf32> -> vector<7x256xf32>
    %85 = arith.addf %82, %84 : vector<7x256xf32>
    %86 = vector.extract_strided_slice %38 {offsets = [1, 0], sizes = [7, 96], strides = [1, 1]} : vector<8x96xf32> to vector<7x96xf32>
    %cst_83 = arith.constant dense<0.000000e+00> : vector<7x256xf32>
    %87 = tpu.matmul %86, %5, %cst_83 {dimension_numbers = #tpu.dot_dimension_numbers<[1], [0], [0], [1], [0, 0, 1, 1], [], []>} : vector<7x96xf32>, vector<96x256xf32>, vector<7x256xf32> -> vector<7x256xf32>
    %88 = arith.addf %85, %87 : vector<7x256xf32>
    %89 = vector.extract_strided_slice %40 {offsets = [1, 0], sizes = [7, 96], strides = [1, 1]} : vector<8x96xf32> to vector<7x96xf32>
    %cst_84 = arith.constant dense<0.000000e+00> : vector<7x256xf32>
    %90 = tpu.matmul %89, %7, %cst_84 {dimension_numbers = #tpu.dot_dimension_numbers<[1], [0], [0], [1], [0, 0, 1, 1], [], []>} : vector<7x96xf32>, vector<96x256xf32>, vector<7x256xf32> -> vector<7x256xf32>
    %91 = arith.addf %88, %90 : vector<7x256xf32>
    %92 = vector.extract_strided_slice %42 {offsets = [1, 0], sizes = [7, 96], strides = [1, 1]} : vector<8x96xf32> to vector<7x96xf32>
    %cst_85 = arith.constant dense<0.000000e+00> : vector<7x256xf32>
    %93 = tpu.matmul %92, %9, %cst_85 {dimension_numbers = #tpu.dot_dimension_numbers<[1], [0], [0], [1], [0, 0, 1, 1], [], []>} : vector<7x96xf32>, vector<96x256xf32>, vector<7x256xf32> -> vector<7x256xf32>
    %94 = arith.addf %91, %93 : vector<7x256xf32>
    %95 = vector.broadcast %30 : vector<1x256xf32> to vector<7x256xf32>
    %96 = arith.addf %94, %95 : vector<7x256xf32>
    %cst_86 = arith.constant 0.000000e+00 : f32
    %97 = vector.broadcast %cst_86 : f32 to vector<7x256xf32>
    %98 = arith.maximumf %96, %97 : vector<7x256xf32>
    %99 = vector.extract_strided_slice %44 {offsets = [0, 0], sizes = [7, 96], strides = [1, 1]} : vector<8x96xf32> to vector<7x96xf32>
    %cst_87 = arith.constant dense<0.000000e+00> : vector<7x256xf32>
    %100 = tpu.matmul %99, %1, %cst_87 {dimension_numbers = #tpu.dot_dimension_numbers<[1], [0], [0], [1], [0, 0, 1, 1], [], []>} : vector<7x96xf32>, vector<96x256xf32>, vector<7x256xf32> -> vector<7x256xf32>
    %101 = vector.extract_strided_slice %38 {offsets = [1, 0], sizes = [7, 96], strides = [1, 1]} : vector<8x96xf32> to vector<7x96xf32>
    %cst_88 = arith.constant dense<0.000000e+00> : vector<7x256xf32>
    %102 = tpu.matmul %101, %3, %cst_88 {dimension_numbers = #tpu.dot_dimension_numbers<[1], [0], [0], [1], [0, 0, 1, 1], [], []>} : vector<7x96xf32>, vector<96x256xf32>, vector<7x256xf32> -> vector<7x256xf32>
    %103 = arith.addf %100, %102 : vector<7x256xf32>
    %104 = vector.extract_strided_slice %40 {offsets = [1, 0], sizes = [7, 96], strides = [1, 1]} : vector<8x96xf32> to vector<7x96xf32>
    %cst_89 = arith.constant dense<0.000000e+00> : vector<7x256xf32>
    %105 = tpu.matmul %104, %5, %cst_89 {dimension_numbers = #tpu.dot_dimension_numbers<[1], [0], [0], [1], [0, 0, 1, 1], [], []>} : vector<7x96xf32>, vector<96x256xf32>, vector<7x256xf32> -> vector<7x256xf32>
    %106 = arith.addf %103, %105 : vector<7x256xf32>
    %107 = vector.extract_strided_slice %42 {offsets = [1, 0], sizes = [7, 96], strides = [1, 1]} : vector<8x96xf32> to vector<7x96xf32>
    %cst_90 = arith.constant dense<0.000000e+00> : vector<7x256xf32>
    %108 = tpu.matmul %107, %7, %cst_90 {dimension_numbers = #tpu.dot_dimension_numbers<[1], [0], [0], [1], [0, 0, 1, 1], [], []>} : vector<7x96xf32>, vector<96x256xf32>, vector<7x256xf32> -> vector<7x256xf32>
    %109 = arith.addf %106, %108 : vector<7x256xf32>
    %110 = vector.extract_strided_slice %44 {offsets = [1, 0], sizes = [7, 96], strides = [1, 1]} : vector<8x96xf32> to vector<7x96xf32>
    %cst_91 = arith.constant dense<0.000000e+00> : vector<7x256xf32>
    %111 = tpu.matmul %110, %9, %cst_91 {dimension_numbers = #tpu.dot_dimension_numbers<[1], [0], [0], [1], [0, 0, 1, 1], [], []>} : vector<7x96xf32>, vector<96x256xf32>, vector<7x256xf32> -> vector<7x256xf32>
    %112 = arith.addf %109, %111 : vector<7x256xf32>
    %113 = vector.broadcast %30 : vector<1x256xf32> to vector<7x256xf32>
    %114 = arith.addf %112, %113 : vector<7x256xf32>
    %cst_92 = arith.constant 0.000000e+00 : f32
    %115 = vector.broadcast %cst_92 : f32 to vector<7x256xf32>
    %116 = arith.maximumf %114, %115 : vector<7x256xf32>
    %117 = vector.extract_strided_slice %62 {offsets = [0, 0], sizes = [7, 84], strides = [1, 1]} : vector<7x256xf32> to vector<7x84xf32>
    %118 = vector.extract_strided_slice %62 {offsets = [0, 128], sizes = [7, 84], strides = [1, 1]} : vector<7x256xf32> to vector<7x84xf32>
    %119 = arith.maximumf %117, %118 : vector<7x84xf32>
    %120 = vector.extract_strided_slice %80 {offsets = [0, 0], sizes = [7, 84], strides = [1, 1]} : vector<7x256xf32> to vector<7x84xf32>
    %121 = vector.extract_strided_slice %80 {offsets = [0, 128], sizes = [7, 84], strides = [1, 1]} : vector<7x256xf32> to vector<7x84xf32>
    %122 = arith.maximumf %120, %121 : vector<7x84xf32>
    %123 = arith.maximumf %119, %122 : vector<7x84xf32>
    %124 = vector.extract_strided_slice %98 {offsets = [0, 0], sizes = [7, 84], strides = [1, 1]} : vector<7x256xf32> to vector<7x84xf32>
    %125 = vector.extract_strided_slice %98 {offsets = [0, 128], sizes = [7, 84], strides = [1, 1]} : vector<7x256xf32> to vector<7x84xf32>
    %126 = arith.maximumf %124, %125 : vector<7x84xf32>
    %127 = vector.extract_strided_slice %116 {offsets = [0, 0], sizes = [7, 84], strides = [1, 1]} : vector<7x256xf32> to vector<7x84xf32>
    %128 = vector.extract_strided_slice %116 {offsets = [0, 128], sizes = [7, 84], strides = [1, 1]} : vector<7x256xf32> to vector<7x84xf32>
    %129 = arith.maximumf %127, %128 : vector<7x84xf32>
    %130 = arith.maximumf %126, %129 : vector<7x84xf32>
    %131 = vector.extract_strided_slice %123 {offsets = [0, 0], sizes = [5, 84], strides = [1, 1]} : vector<7x84xf32> to vector<5x84xf32>
    %cst_93 = arith.constant dense<0.000000e+00> : vector<5x256xf32>
    %132 = tpu.matmul %131, %11, %cst_93 {dimension_numbers = #tpu.dot_dimension_numbers<[1], [0], [0], [1], [0, 0, 1, 1], [], []>} : vector<5x84xf32>, vector<84x256xf32>, vector<5x256xf32> -> vector<5x256xf32>
    %133 = vector.extract_strided_slice %130 {offsets = [0, 0], sizes = [5, 84], strides = [1, 1]} : vector<7x84xf32> to vector<5x84xf32>
    %cst_94 = arith.constant dense<0.000000e+00> : vector<5x256xf32>
    %134 = tpu.matmul %133, %13, %cst_94 {dimension_numbers = #tpu.dot_dimension_numbers<[1], [0], [0], [1], [0, 0, 1, 1], [], []>} : vector<5x84xf32>, vector<84x256xf32>, vector<5x256xf32> -> vector<5x256xf32>
    %135 = arith.addf %132, %134 : vector<5x256xf32>
    %136 = vector.extract_strided_slice %123 {offsets = [1, 0], sizes = [5, 84], strides = [1, 1]} : vector<7x84xf32> to vector<5x84xf32>
    %cst_95 = arith.constant dense<0.000000e+00> : vector<5x256xf32>
    %137 = tpu.matmul %136, %15, %cst_95 {dimension_numbers = #tpu.dot_dimension_numbers<[1], [0], [0], [1], [0, 0, 1, 1], [], []>} : vector<5x84xf32>, vector<84x256xf32>, vector<5x256xf32> -> vector<5x256xf32>
    %138 = arith.addf %135, %137 : vector<5x256xf32>
    %139 = vector.extract_strided_slice %130 {offsets = [1, 0], sizes = [5, 84], strides = [1, 1]} : vector<7x84xf32> to vector<5x84xf32>
    %cst_96 = arith.constant dense<0.000000e+00> : vector<5x256xf32>
    %140 = tpu.matmul %139, %17, %cst_96 {dimension_numbers = #tpu.dot_dimension_numbers<[1], [0], [0], [1], [0, 0, 1, 1], [], []>} : vector<5x84xf32>, vector<84x256xf32>, vector<5x256xf32> -> vector<5x256xf32>
    %141 = arith.addf %138, %140 : vector<5x256xf32>
    %142 = vector.extract_strided_slice %123 {offsets = [2, 0], sizes = [5, 84], strides = [1, 1]} : vector<7x84xf32> to vector<5x84xf32>
    %cst_97 = arith.constant dense<0.000000e+00> : vector<5x256xf32>
    %143 = tpu.matmul %142, %19, %cst_97 {dimension_numbers = #tpu.dot_dimension_numbers<[1], [0], [0], [1], [0, 0, 1, 1], [], []>} : vector<5x84xf32>, vector<84x256xf32>, vector<5x256xf32> -> vector<5x256xf32>
    %144 = arith.addf %141, %143 : vector<5x256xf32>
    %145 = vector.broadcast %31 : vector<1x256xf32> to vector<5x256xf32>
    %146 = arith.addf %144, %145 : vector<5x256xf32>
    %cst_98 = arith.constant 0.000000e+00 : f32
    %147 = vector.broadcast %cst_98 : f32 to vector<5x256xf32>
    %148 = arith.maximumf %146, %147 : vector<5x256xf32>
    %149 = vector.extract_strided_slice %130 {offsets = [0, 0], sizes = [5, 84], strides = [1, 1]} : vector<7x84xf32> to vector<5x84xf32>
    %cst_99 = arith.constant dense<0.000000e+00> : vector<5x256xf32>
    %150 = tpu.matmul %149, %11, %cst_99 {dimension_numbers = #tpu.dot_dimension_numbers<[1], [0], [0], [1], [0, 0, 1, 1], [], []>} : vector<5x84xf32>, vector<84x256xf32>, vector<5x256xf32> -> vector<5x256xf32>
    %151 = vector.extract_strided_slice %123 {offsets = [1, 0], sizes = [5, 84], strides = [1, 1]} : vector<7x84xf32> to vector<5x84xf32>
    %cst_100 = arith.constant dense<0.000000e+00> : vector<5x256xf32>
    %152 = tpu.matmul %151, %13, %cst_100 {dimension_numbers = #tpu.dot_dimension_numbers<[1], [0], [0], [1], [0, 0, 1, 1], [], []>} : vector<5x84xf32>, vector<84x256xf32>, vector<5x256xf32> -> vector<5x256xf32>
    %153 = arith.addf %150, %152 : vector<5x256xf32>
    %154 = vector.extract_strided_slice %130 {offsets = [1, 0], sizes = [5, 84], strides = [1, 1]} : vector<7x84xf32> to vector<5x84xf32>
    %cst_101 = arith.constant dense<0.000000e+00> : vector<5x256xf32>
    %155 = tpu.matmul %154, %15, %cst_101 {dimension_numbers = #tpu.dot_dimension_numbers<[1], [0], [0], [1], [0, 0, 1, 1], [], []>} : vector<5x84xf32>, vector<84x256xf32>, vector<5x256xf32> -> vector<5x256xf32>
    %156 = arith.addf %153, %155 : vector<5x256xf32>
    %157 = vector.extract_strided_slice %123 {offsets = [2, 0], sizes = [5, 84], strides = [1, 1]} : vector<7x84xf32> to vector<5x84xf32>
    %cst_102 = arith.constant dense<0.000000e+00> : vector<5x256xf32>
    %158 = tpu.matmul %157, %17, %cst_102 {dimension_numbers = #tpu.dot_dimension_numbers<[1], [0], [0], [1], [0, 0, 1, 1], [], []>} : vector<5x84xf32>, vector<84x256xf32>, vector<5x256xf32> -> vector<5x256xf32>
    %159 = arith.addf %156, %158 : vector<5x256xf32>
    %160 = vector.extract_strided_slice %130 {offsets = [2, 0], sizes = [5, 84], strides = [1, 1]} : vector<7x84xf32> to vector<5x84xf32>
    %cst_103 = arith.constant dense<0.000000e+00> : vector<5x256xf32>
    %161 = tpu.matmul %160, %19, %cst_103 {dimension_numbers = #tpu.dot_dimension_numbers<[1], [0], [0], [1], [0, 0, 1, 1], [], []>} : vector<5x84xf32>, vector<84x256xf32>, vector<5x256xf32> -> vector<5x256xf32>
    %162 = arith.addf %159, %161 : vector<5x256xf32>
    %163 = vector.broadcast %31 : vector<1x256xf32> to vector<5x256xf32>
    %164 = arith.addf %162, %163 : vector<5x256xf32>
    %cst_104 = arith.constant 0.000000e+00 : f32
    %165 = vector.broadcast %cst_104 : f32 to vector<5x256xf32>
    %166 = arith.maximumf %164, %165 : vector<5x256xf32>
    %167 = vector.extract_strided_slice %148 {offsets = [0, 0], sizes = [5, 80], strides = [1, 1]} : vector<5x256xf32> to vector<5x80xf32>
    %168 = vector.extract_strided_slice %148 {offsets = [0, 128], sizes = [5, 80], strides = [1, 1]} : vector<5x256xf32> to vector<5x80xf32>
    %169 = arith.maximumf %167, %168 : vector<5x80xf32>
    %170 = vector.extract_strided_slice %166 {offsets = [0, 0], sizes = [5, 80], strides = [1, 1]} : vector<5x256xf32> to vector<5x80xf32>
    %171 = vector.extract_strided_slice %166 {offsets = [0, 128], sizes = [5, 80], strides = [1, 1]} : vector<5x256xf32> to vector<5x80xf32>
    %172 = arith.maximumf %170, %171 : vector<5x80xf32>
    %173 = arith.maximumf %169, %172 : vector<5x80xf32>
    %174 = vector.extract_strided_slice %173 {offsets = [0, 0], sizes = [1, 80], strides = [1, 1]} : vector<5x80xf32> to vector<1x80xf32>
    %cst_105 = arith.constant dense<0.000000e+00> : vector<1x128xf32>
    %175 = tpu.matmul %174, %21, %cst_105 {dimension_numbers = #tpu.dot_dimension_numbers<[1], [0], [0], [1], [0, 0, 1, 1], [], []>} : vector<1x80xf32>, vector<80x128xf32>, vector<1x128xf32> -> vector<1x128xf32>
    %176 = vector.extract_strided_slice %173 {offsets = [1, 0], sizes = [1, 80], strides = [1, 1]} : vector<5x80xf32> to vector<1x80xf32>
    %cst_106 = arith.constant dense<0.000000e+00> : vector<1x128xf32>
    %177 = tpu.matmul %176, %23, %cst_106 {dimension_numbers = #tpu.dot_dimension_numbers<[1], [0], [0], [1], [0, 0, 1, 1], [], []>} : vector<1x80xf32>, vector<80x128xf32>, vector<1x128xf32> -> vector<1x128xf32>
    %178 = arith.addf %175, %177 : vector<1x128xf32>
    %179 = vector.extract_strided_slice %173 {offsets = [2, 0], sizes = [1, 80], strides = [1, 1]} : vector<5x80xf32> to vector<1x80xf32>
    %cst_107 = arith.constant dense<0.000000e+00> : vector<1x128xf32>
    %180 = tpu.matmul %179, %25, %cst_107 {dimension_numbers = #tpu.dot_dimension_numbers<[1], [0], [0], [1], [0, 0, 1, 1], [], []>} : vector<1x80xf32>, vector<80x128xf32>, vector<1x128xf32> -> vector<1x128xf32>
    %181 = arith.addf %178, %180 : vector<1x128xf32>
    %182 = vector.extract_strided_slice %173 {offsets = [3, 0], sizes = [1, 80], strides = [1, 1]} : vector<5x80xf32> to vector<1x80xf32>
    %cst_108 = arith.constant dense<0.000000e+00> : vector<1x128xf32>
    %183 = tpu.matmul %182, %27, %cst_108 {dimension_numbers = #tpu.dot_dimension_numbers<[1], [0], [0], [1], [0, 0, 1, 1], [], []>} : vector<1x80xf32>, vector<80x128xf32>, vector<1x128xf32> -> vector<1x128xf32>
    %184 = arith.addf %181, %183 : vector<1x128xf32>
    %185 = vector.extract_strided_slice %173 {offsets = [4, 0], sizes = [1, 80], strides = [1, 1]} : vector<5x80xf32> to vector<1x80xf32>
    %cst_109 = arith.constant dense<0.000000e+00> : vector<1x128xf32>
    %186 = tpu.matmul %185, %29, %cst_109 {dimension_numbers = #tpu.dot_dimension_numbers<[1], [0], [0], [1], [0, 0, 1, 1], [], []>} : vector<1x80xf32>, vector<80x128xf32>, vector<1x128xf32> -> vector<1x128xf32>
    %187 = arith.addf %184, %186 : vector<1x128xf32>
    %188 = arith.addf %187, %32 : vector<1x128xf32>
    %cst_110 = arith.constant 0.000000e+00 : f32
    %189 = vector.broadcast %cst_110 : f32 to vector<1x128xf32>
    %190 = arith.maximumf %188, %189 : vector<1x128xf32>
    %cst_111 = arith.constant dense<0.000000e+00> : vector<1x128xf32>
    %191 = tpu.matmul %190, %33, %cst_111 {dimension_numbers = #tpu.dot_dimension_numbers<[1], [0], [0], [1], [0, 0, 1, 1], [], []>} : vector<1x128xf32>, vector<128x128xf32>, vector<1x128xf32> -> vector<1x128xf32>
    %192 = arith.addf %191, %34 : vector<1x128xf32>
    %cst_112 = arith.constant 0.000000e+00 : f32
    %193 = vector.broadcast %cst_112 : f32 to vector<1x128xf32>
    %194 = arith.maximumf %192, %193 : vector<1x128xf32>
    %cst_113 = arith.constant dense<0.000000e+00> : vector<1x10xf32>
    %195 = tpu.matmul %194, %35, %cst_113 {dimension_numbers = #tpu.dot_dimension_numbers<[1], [0], [0], [1], [0, 0, 1, 1], [], []>} : vector<1x128xf32>, vector<128x10xf32>, vector<1x10xf32> -> vector<1x10xf32>
    %196 = arith.addf %195, %36 : vector<1x10xf32>
    %c0_114 = arith.constant 0 : index
    %c0_115 = arith.constant 0 : index
    %197 = vector.load %arg11[%c0_114, %c0_115] : memref<2x10xf32, #tpu.memory_space<vmem>>, vector<1x10xf32>
    tpu.vector_store %arg11[%c0_114, %c0_115], %196 {strides = array<i32>} : memref<2x10xf32, #tpu.memory_space<vmem>>, vector<1x10xf32>,
    %c1_116 = arith.constant 1 : index
    %c0_117 = arith.constant 0 : index
    %c0_118 = arith.constant 0 : index
    %c0_119 = arith.constant 0 : index
    %198 = vector.load %arg0[%c1_116, %c0_117, %c0_118, %c0_119] : memref<2x4x8x96xf32, #tpu.memory_space<vmem>>, vector<1x1x8x96xf32>
    %199 = vector.shape_cast %198 : vector<1x1x8x96xf32> to vector<8x96xf32>
    %c1_120 = arith.constant 1 : index
    %c1_121 = arith.constant 1 : index
    %c0_122 = arith.constant 0 : index
    %c0_123 = arith.constant 0 : index
    %200 = vector.load %arg0[%c1_120, %c1_121, %c0_122, %c0_123] : memref<2x4x8x96xf32, #tpu.memory_space<vmem>>, vector<1x1x8x96xf32>
    %201 = vector.shape_cast %200 : vector<1x1x8x96xf32> to vector<8x96xf32>
    %c1_124 = arith.constant 1 : index
    %c2_125 = arith.constant 2 : index
    %c0_126 = arith.constant 0 : index
    %c0_127 = arith.constant 0 : index
    %202 = vector.load %arg0[%c1_124, %c2_125, %c0_126, %c0_127] : memref<2x4x8x96xf32, #tpu.memory_space<vmem>>, vector<1x1x8x96xf32>
    %203 = vector.shape_cast %202 : vector<1x1x8x96xf32> to vector<8x96xf32>
    %c1_128 = arith.constant 1 : index
    %c3_129 = arith.constant 3 : index
    %c0_130 = arith.constant 0 : index
    %c0_131 = arith.constant 0 : index
    %204 = vector.load %arg0[%c1_128, %c3_129, %c0_130, %c0_131] : memref<2x4x8x96xf32, #tpu.memory_space<vmem>>, vector<1x1x8x96xf32>
    %205 = vector.shape_cast %204 : vector<1x1x8x96xf32> to vector<8x96xf32>
    %206 = vector.extract_strided_slice %199 {offsets = [0, 0], sizes = [7, 96], strides = [1, 1]} : vector<8x96xf32> to vector<7x96xf32>
    %cst_132 = arith.constant dense<0.000000e+00> : vector<7x256xf32>
    %207 = tpu.matmul %206, %1, %cst_132 {dimension_numbers = #tpu.dot_dimension_numbers<[1], [0], [0], [1], [0, 0, 1, 1], [], []>} : vector<7x96xf32>, vector<96x256xf32>, vector<7x256xf32> -> vector<7x256xf32>
    %208 = vector.extract_strided_slice %201 {offsets = [0, 0], sizes = [7, 96], strides = [1, 1]} : vector<8x96xf32> to vector<7x96xf32>
    %cst_133 = arith.constant dense<0.000000e+00> : vector<7x256xf32>
    %209 = tpu.matmul %208, %3, %cst_133 {dimension_numbers = #tpu.dot_dimension_numbers<[1], [0], [0], [1], [0, 0, 1, 1], [], []>} : vector<7x96xf32>, vector<96x256xf32>, vector<7x256xf32> -> vector<7x256xf32>
    %210 = arith.addf %207, %209 : vector<7x256xf32>
    %211 = vector.extract_strided_slice %203 {offsets = [0, 0], sizes = [7, 96], strides = [1, 1]} : vector<8x96xf32> to vector<7x96xf32>
    %cst_134 = arith.constant dense<0.000000e+00> : vector<7x256xf32>
    %212 = tpu.matmul %211, %5, %cst_134 {dimension_numbers = #tpu.dot_dimension_numbers<[1], [0], [0], [1], [0, 0, 1, 1], [], []>} : vector<7x96xf32>, vector<96x256xf32>, vector<7x256xf32> -> vector<7x256xf32>
    %213 = arith.addf %210, %212 : vector<7x256xf32>
    %214 = vector.extract_strided_slice %205 {offsets = [0, 0], sizes = [7, 96], strides = [1, 1]} : vector<8x96xf32> to vector<7x96xf32>
    %cst_135 = arith.constant dense<0.000000e+00> : vector<7x256xf32>
    %215 = tpu.matmul %214, %7, %cst_135 {dimension_numbers = #tpu.dot_dimension_numbers<[1], [0], [0], [1], [0, 0, 1, 1], [], []>} : vector<7x96xf32>, vector<96x256xf32>, vector<7x256xf32> -> vector<7x256xf32>
    %216 = arith.addf %213, %215 : vector<7x256xf32>
    %217 = vector.extract_strided_slice %199 {offsets = [1, 0], sizes = [7, 96], strides = [1, 1]} : vector<8x96xf32> to vector<7x96xf32>
    %cst_136 = arith.constant dense<0.000000e+00> : vector<7x256xf32>
    %218 = tpu.matmul %217, %9, %cst_136 {dimension_numbers = #tpu.dot_dimension_numbers<[1], [0], [0], [1], [0, 0, 1, 1], [], []>} : vector<7x96xf32>, vector<96x256xf32>, vector<7x256xf32> -> vector<7x256xf32>
    %219 = arith.addf %216, %218 : vector<7x256xf32>
    %220 = vector.broadcast %30 : vector<1x256xf32> to vector<7x256xf32>
    %221 = arith.addf %219, %220 : vector<7x256xf32>
    %cst_137 = arith.constant 0.000000e+00 : f32
    %222 = vector.broadcast %cst_137 : f32 to vector<7x256xf32>
    %223 = arith.maximumf %221, %222 : vector<7x256xf32>
    %224 = vector.extract_strided_slice %201 {offsets = [0, 0], sizes = [7, 96], strides = [1, 1]} : vector<8x96xf32> to vector<7x96xf32>
    %cst_138 = arith.constant dense<0.000000e+00> : vector<7x256xf32>
    %225 = tpu.matmul %224, %1, %cst_138 {dimension_numbers = #tpu.dot_dimension_numbers<[1], [0], [0], [1], [0, 0, 1, 1], [], []>} : vector<7x96xf32>, vector<96x256xf32>, vector<7x256xf32> -> vector<7x256xf32>
    %226 = vector.extract_strided_slice %203 {offsets = [0, 0], sizes = [7, 96], strides = [1, 1]} : vector<8x96xf32> to vector<7x96xf32>
    %cst_139 = arith.constant dense<0.000000e+00> : vector<7x256xf32>
    %227 = tpu.matmul %226, %3, %cst_139 {dimension_numbers = #tpu.dot_dimension_numbers<[1], [0], [0], [1], [0, 0, 1, 1], [], []>} : vector<7x96xf32>, vector<96x256xf32>, vector<7x256xf32> -> vector<7x256xf32>
    %228 = arith.addf %225, %227 : vector<7x256xf32>
    %229 = vector.extract_strided_slice %205 {offsets = [0, 0], sizes = [7, 96], strides = [1, 1]} : vector<8x96xf32> to vector<7x96xf32>
    %cst_140 = arith.constant dense<0.000000e+00> : vector<7x256xf32>
    %230 = tpu.matmul %229, %5, %cst_140 {dimension_numbers = #tpu.dot_dimension_numbers<[1], [0], [0], [1], [0, 0, 1, 1], [], []>} : vector<7x96xf32>, vector<96x256xf32>, vector<7x256xf32> -> vector<7x256xf32>
    %231 = arith.addf %228, %230 : vector<7x256xf32>
    %232 = vector.extract_strided_slice %199 {offsets = [1, 0], sizes = [7, 96], strides = [1, 1]} : vector<8x96xf32> to vector<7x96xf32>
    %cst_141 = arith.constant dense<0.000000e+00> : vector<7x256xf32>
    %233 = tpu.matmul %232, %7, %cst_141 {dimension_numbers = #tpu.dot_dimension_numbers<[1], [0], [0], [1], [0, 0, 1, 1], [], []>} : vector<7x96xf32>, vector<96x256xf32>, vector<7x256xf32> -> vector<7x256xf32>
    %234 = arith.addf %231, %233 : vector<7x256xf32>
    %235 = vector.extract_strided_slice %201 {offsets = [1, 0], sizes = [7, 96], strides = [1, 1]} : vector<8x96xf32> to vector<7x96xf32>
    %cst_142 = arith.constant dense<0.000000e+00> : vector<7x256xf32>
    %236 = tpu.matmul %235, %9, %cst_142 {dimension_numbers = #tpu.dot_dimension_numbers<[1], [0], [0], [1], [0, 0, 1, 1], [], []>} : vector<7x96xf32>, vector<96x256xf32>, vector<7x256xf32> -> vector<7x256xf32>
    %237 = arith.addf %234, %236 : vector<7x256xf32>
    %238 = vector.broadcast %30 : vector<1x256xf32> to vector<7x256xf32>
    %239 = arith.addf %237, %238 : vector<7x256xf32>
    %cst_143 = arith.constant 0.000000e+00 : f32
    %240 = vector.broadcast %cst_143 : f32 to vector<7x256xf32>
    %241 = arith.maximumf %239, %240 : vector<7x256xf32>
    %242 = vector.extract_strided_slice %203 {offsets = [0, 0], sizes = [7, 96], strides = [1, 1]} : vector<8x96xf32> to vector<7x96xf32>
    %cst_144 = arith.constant dense<0.000000e+00> : vector<7x256xf32>
    %243 = tpu.matmul %242, %1, %cst_144 {dimension_numbers = #tpu.dot_dimension_numbers<[1], [0], [0], [1], [0, 0, 1, 1], [], []>} : vector<7x96xf32>, vector<96x256xf32>, vector<7x256xf32> -> vector<7x256xf32>
    %244 = vector.extract_strided_slice %205 {offsets = [0, 0], sizes = [7, 96], strides = [1, 1]} : vector<8x96xf32> to vector<7x96xf32>
    %cst_145 = arith.constant dense<0.000000e+00> : vector<7x256xf32>
    %245 = tpu.matmul %244, %3, %cst_145 {dimension_numbers = #tpu.dot_dimension_numbers<[1], [0], [0], [1], [0, 0, 1, 1], [], []>} : vector<7x96xf32>, vector<96x256xf32>, vector<7x256xf32> -> vector<7x256xf32>
    %246 = arith.addf %243, %245 : vector<7x256xf32>
    %247 = vector.extract_strided_slice %199 {offsets = [1, 0], sizes = [7, 96], strides = [1, 1]} : vector<8x96xf32> to vector<7x96xf32>
    %cst_146 = arith.constant dense<0.000000e+00> : vector<7x256xf32>
    %248 = tpu.matmul %247, %5, %cst_146 {dimension_numbers = #tpu.dot_dimension_numbers<[1], [0], [0], [1], [0, 0, 1, 1], [], []>} : vector<7x96xf32>, vector<96x256xf32>, vector<7x256xf32> -> vector<7x256xf32>
    %249 = arith.addf %246, %248 : vector<7x256xf32>
    %250 = vector.extract_strided_slice %201 {offsets = [1, 0], sizes = [7, 96], strides = [1, 1]} : vector<8x96xf32> to vector<7x96xf32>
    %cst_147 = arith.constant dense<0.000000e+00> : vector<7x256xf32>
    %251 = tpu.matmul %250, %7, %cst_147 {dimension_numbers = #tpu.dot_dimension_numbers<[1], [0], [0], [1], [0, 0, 1, 1], [], []>} : vector<7x96xf32>, vector<96x256xf32>, vector<7x256xf32> -> vector<7x256xf32>
    %252 = arith.addf %249, %251 : vector<7x256xf32>
    %253 = vector.extract_strided_slice %203 {offsets = [1, 0], sizes = [7, 96], strides = [1, 1]} : vector<8x96xf32> to vector<7x96xf32>
    %cst_148 = arith.constant dense<0.000000e+00> : vector<7x256xf32>
    %254 = tpu.matmul %253, %9, %cst_148 {dimension_numbers = #tpu.dot_dimension_numbers<[1], [0], [0], [1], [0, 0, 1, 1], [], []>} : vector<7x96xf32>, vector<96x256xf32>, vector<7x256xf32> -> vector<7x256xf32>
    %255 = arith.addf %252, %254 : vector<7x256xf32>
    %256 = vector.broadcast %30 : vector<1x256xf32> to vector<7x256xf32>
    %257 = arith.addf %255, %256 : vector<7x256xf32>
    %cst_149 = arith.constant 0.000000e+00 : f32
    %258 = vector.broadcast %cst_149 : f32 to vector<7x256xf32>
    %259 = arith.maximumf %257, %258 : vector<7x256xf32>
    %260 = vector.extract_strided_slice %205 {offsets = [0, 0], sizes = [7, 96], strides = [1, 1]} : vector<8x96xf32> to vector<7x96xf32>
    %cst_150 = arith.constant dense<0.000000e+00> : vector<7x256xf32>
    %261 = tpu.matmul %260, %1, %cst_150 {dimension_numbers = #tpu.dot_dimension_numbers<[1], [0], [0], [1], [0, 0, 1, 1], [], []>} : vector<7x96xf32>, vector<96x256xf32>, vector<7x256xf32> -> vector<7x256xf32>
    %262 = vector.extract_strided_slice %199 {offsets = [1, 0], sizes = [7, 96], strides = [1, 1]} : vector<8x96xf32> to vector<7x96xf32>
    %cst_151 = arith.constant dense<0.000000e+00> : vector<7x256xf32>
    %263 = tpu.matmul %262, %3, %cst_151 {dimension_numbers = #tpu.dot_dimension_numbers<[1], [0], [0], [1], [0, 0, 1, 1], [], []>} : vector<7x96xf32>, vector<96x256xf32>, vector<7x256xf32> -> vector<7x256xf32>
    %264 = arith.addf %261, %263 : vector<7x256xf32>
    %265 = vector.extract_strided_slice %201 {offsets = [1, 0], sizes = [7, 96], strides = [1, 1]} : vector<8x96xf32> to vector<7x96xf32>
    %cst_152 = arith.constant dense<0.000000e+00> : vector<7x256xf32>
    %266 = tpu.matmul %265, %5, %cst_152 {dimension_numbers = #tpu.dot_dimension_numbers<[1], [0], [0], [1], [0, 0, 1, 1], [], []>} : vector<7x96xf32>, vector<96x256xf32>, vector<7x256xf32> -> vector<7x256xf32>
    %267 = arith.addf %264, %266 : vector<7x256xf32>
    %268 = vector.extract_strided_slice %203 {offsets = [1, 0], sizes = [7, 96], strides = [1, 1]} : vector<8x96xf32> to vector<7x96xf32>
    %cst_153 = arith.constant dense<0.000000e+00> : vector<7x256xf32>
    %269 = tpu.matmul %268, %7, %cst_153 {dimension_numbers = #tpu.dot_dimension_numbers<[1], [0], [0], [1], [0, 0, 1, 1], [], []>} : vector<7x96xf32>, vector<96x256xf32>, vector<7x256xf32> -> vector<7x256xf32>
    %270 = arith.addf %267, %269 : vector<7x256xf32>
    %271 = vector.extract_strided_slice %205 {offsets = [1, 0], sizes = [7, 96], strides = [1, 1]} : vector<8x96xf32> to vector<7x96xf32>
    %cst_154 = arith.constant dense<0.000000e+00> : vector<7x256xf32>
    %272 = tpu.matmul %271, %9, %cst_154 {dimension_numbers = #tpu.dot_dimension_numbers<[1], [0], [0], [1], [0, 0, 1, 1], [], []>} : vector<7x96xf32>, vector<96x256xf32>, vector<7x256xf32> -> vector<7x256xf32>
    %273 = arith.addf %270, %272 : vector<7x256xf32>
    %274 = vector.broadcast %30 : vector<1x256xf32> to vector<7x256xf32>
    %275 = arith.addf %273, %274 : vector<7x256xf32>
    %cst_155 = arith.constant 0.000000e+00 : f32
    %276 = vector.broadcast %cst_155 : f32 to vector<7x256xf32>
    %277 = arith.maximumf %275, %276 : vector<7x256xf32>
    %278 = vector.extract_strided_slice %223 {offsets = [0, 0], sizes = [7, 84], strides = [1, 1]} : vector<7x256xf32> to vector<7x84xf32>
    %279 = vector.extract_strided_slice %223 {offsets = [0, 128], sizes = [7, 84], strides = [1, 1]} : vector<7x256xf32> to vector<7x84xf32>
    %280 = arith.maximumf %278, %279 : vector<7x84xf32>
    %281 = vector.extract_strided_slice %241 {offsets = [0, 0], sizes = [7, 84], strides = [1, 1]} : vector<7x256xf32> to vector<7x84xf32>
    %282 = vector.extract_strided_slice %241 {offsets = [0, 128], sizes = [7, 84], strides = [1, 1]} : vector<7x256xf32> to vector<7x84xf32>
    %283 = arith.maximumf %281, %282 : vector<7x84xf32>
    %284 = arith.maximumf %280, %283 : vector<7x84xf32>
    %285 = vector.extract_strided_slice %259 {offsets = [0, 0], sizes = [7, 84], strides = [1, 1]} : vector<7x256xf32> to vector<7x84xf32>
    %286 = vector.extract_strided_slice %259 {offsets = [0, 128], sizes = [7, 84], strides = [1, 1]} : vector<7x256xf32> to vector<7x84xf32>
    %287 = arith.maximumf %285, %286 : vector<7x84xf32>
    %288 = vector.extract_strided_slice %277 {offsets = [0, 0], sizes = [7, 84], strides = [1, 1]} : vector<7x256xf32> to vector<7x84xf32>
    %289 = vector.extract_strided_slice %277 {offsets = [0, 128], sizes = [7, 84], strides = [1, 1]} : vector<7x256xf32> to vector<7x84xf32>
    %290 = arith.maximumf %288, %289 : vector<7x84xf32>
    %291 = arith.maximumf %287, %290 : vector<7x84xf32>
    %292 = vector.extract_strided_slice %284 {offsets = [0, 0], sizes = [5, 84], strides = [1, 1]} : vector<7x84xf32> to vector<5x84xf32>
    %cst_156 = arith.constant dense<0.000000e+00> : vector<5x256xf32>
    %293 = tpu.matmul %292, %11, %cst_156 {dimension_numbers = #tpu.dot_dimension_numbers<[1], [0], [0], [1], [0, 0, 1, 1], [], []>} : vector<5x84xf32>, vector<84x256xf32>, vector<5x256xf32> -> vector<5x256xf32>
    %294 = vector.extract_strided_slice %291 {offsets = [0, 0], sizes = [5, 84], strides = [1, 1]} : vector<7x84xf32> to vector<5x84xf32>
    %cst_157 = arith.constant dense<0.000000e+00> : vector<5x256xf32>
    %295 = tpu.matmul %294, %13, %cst_157 {dimension_numbers = #tpu.dot_dimension_numbers<[1], [0], [0], [1], [0, 0, 1, 1], [], []>} : vector<5x84xf32>, vector<84x256xf32>, vector<5x256xf32> -> vector<5x256xf32>
    %296 = arith.addf %293, %295 : vector<5x256xf32>
    %297 = vector.extract_strided_slice %284 {offsets = [1, 0], sizes = [5, 84], strides = [1, 1]} : vector<7x84xf32> to vector<5x84xf32>
    %cst_158 = arith.constant dense<0.000000e+00> : vector<5x256xf32>
    %298 = tpu.matmul %297, %15, %cst_158 {dimension_numbers = #tpu.dot_dimension_numbers<[1], [0], [0], [1], [0, 0, 1, 1], [], []>} : vector<5x84xf32>, vector<84x256xf32>, vector<5x256xf32> -> vector<5x256xf32>
    %299 = arith.addf %296, %298 : vector<5x256xf32>
    %300 = vector.extract_strided_slice %291 {offsets = [1, 0], sizes = [5, 84], strides = [1, 1]} : vector<7x84xf32> to vector<5x84xf32>
    %cst_159 = arith.constant dense<0.000000e+00> : vector<5x256xf32>
    %301 = tpu.matmul %300, %17, %cst_159 {dimension_numbers = #tpu.dot_dimension_numbers<[1], [0], [0], [1], [0, 0, 1, 1], [], []>} : vector<5x84xf32>, vector<84x256xf32>, vector<5x256xf32> -> vector<5x256xf32>
    %302 = arith.addf %299, %301 : vector<5x256xf32>
    %303 = vector.extract_strided_slice %284 {offsets = [2, 0], sizes = [5, 84], strides = [1, 1]} : vector<7x84xf32> to vector<5x84xf32>
    %cst_160 = arith.constant dense<0.000000e+00> : vector<5x256xf32>
    %304 = tpu.matmul %303, %19, %cst_160 {dimension_numbers = #tpu.dot_dimension_numbers<[1], [0], [0], [1], [0, 0, 1, 1], [], []>} : vector<5x84xf32>, vector<84x256xf32>, vector<5x256xf32> -> vector<5x256xf32>
    %305 = arith.addf %302, %304 : vector<5x256xf32>
    %306 = vector.broadcast %31 : vector<1x256xf32> to vector<5x256xf32>
    %307 = arith.addf %305, %306 : vector<5x256xf32>
    %cst_161 = arith.constant 0.000000e+00 : f32
    %308 = vector.broadcast %cst_161 : f32 to vector<5x256xf32>
    %309 = arith.maximumf %307, %308 : vector<5x256xf32>
    %310 = vector.extract_strided_slice %291 {offsets = [0, 0], sizes = [5, 84], strides = [1, 1]} : vector<7x84xf32> to vector<5x84xf32>
    %cst_162 = arith.constant dense<0.000000e+00> : vector<5x256xf32>
    %311 = tpu.matmul %310, %11, %cst_162 {dimension_numbers = #tpu.dot_dimension_numbers<[1], [0], [0], [1], [0, 0, 1, 1], [], []>} : vector<5x84xf32>, vector<84x256xf32>, vector<5x256xf32> -> vector<5x256xf32>
    %312 = vector.extract_strided_slice %284 {offsets = [1, 0], sizes = [5, 84], strides = [1, 1]} : vector<7x84xf32> to vector<5x84xf32>
    %cst_163 = arith.constant dense<0.000000e+00> : vector<5x256xf32>
    %313 = tpu.matmul %312, %13, %cst_163 {dimension_numbers = #tpu.dot_dimension_numbers<[1], [0], [0], [1], [0, 0, 1, 1], [], []>} : vector<5x84xf32>, vector<84x256xf32>, vector<5x256xf32> -> vector<5x256xf32>
    %314 = arith.addf %311, %313 : vector<5x256xf32>
    %315 = vector.extract_strided_slice %291 {offsets = [1, 0], sizes = [5, 84], strides = [1, 1]} : vector<7x84xf32> to vector<5x84xf32>
    %cst_164 = arith.constant dense<0.000000e+00> : vector<5x256xf32>
    %316 = tpu.matmul %315, %15, %cst_164 {dimension_numbers = #tpu.dot_dimension_numbers<[1], [0], [0], [1], [0, 0, 1, 1], [], []>} : vector<5x84xf32>, vector<84x256xf32>, vector<5x256xf32> -> vector<5x256xf32>
    %317 = arith.addf %314, %316 : vector<5x256xf32>
    %318 = vector.extract_strided_slice %284 {offsets = [2, 0], sizes = [5, 84], strides = [1, 1]} : vector<7x84xf32> to vector<5x84xf32>
    %cst_165 = arith.constant dense<0.000000e+00> : vector<5x256xf32>
    %319 = tpu.matmul %318, %17, %cst_165 {dimension_numbers = #tpu.dot_dimension_numbers<[1], [0], [0], [1], [0, 0, 1, 1], [], []>} : vector<5x84xf32>, vector<84x256xf32>, vector<5x256xf32> -> vector<5x256xf32>
    %320 = arith.addf %317, %319 : vector<5x256xf32>
    %321 = vector.extract_strided_slice %291 {offsets = [2, 0], sizes = [5, 84], strides = [1, 1]} : vector<7x84xf32> to vector<5x84xf32>
    %cst_166 = arith.constant dense<0.000000e+00> : vector<5x256xf32>
    %322 = tpu.matmul %321, %19, %cst_166 {dimension_numbers = #tpu.dot_dimension_numbers<[1], [0], [0], [1], [0, 0, 1, 1], [], []>} : vector<5x84xf32>, vector<84x256xf32>, vector<5x256xf32> -> vector<5x256xf32>
    %323 = arith.addf %320, %322 : vector<5x256xf32>
    %324 = vector.broadcast %31 : vector<1x256xf32> to vector<5x256xf32>
    %325 = arith.addf %323, %324 : vector<5x256xf32>
    %cst_167 = arith.constant 0.000000e+00 : f32
    %326 = vector.broadcast %cst_167 : f32 to vector<5x256xf32>
    %327 = arith.maximumf %325, %326 : vector<5x256xf32>
    %328 = vector.extract_strided_slice %309 {offsets = [0, 0], sizes = [5, 80], strides = [1, 1]} : vector<5x256xf32> to vector<5x80xf32>
    %329 = vector.extract_strided_slice %309 {offsets = [0, 128], sizes = [5, 80], strides = [1, 1]} : vector<5x256xf32> to vector<5x80xf32>
    %330 = arith.maximumf %328, %329 : vector<5x80xf32>
    %331 = vector.extract_strided_slice %327 {offsets = [0, 0], sizes = [5, 80], strides = [1, 1]} : vector<5x256xf32> to vector<5x80xf32>
    %332 = vector.extract_strided_slice %327 {offsets = [0, 128], sizes = [5, 80], strides = [1, 1]} : vector<5x256xf32> to vector<5x80xf32>
    %333 = arith.maximumf %331, %332 : vector<5x80xf32>
    %334 = arith.maximumf %330, %333 : vector<5x80xf32>
    %335 = vector.extract_strided_slice %334 {offsets = [0, 0], sizes = [1, 80], strides = [1, 1]} : vector<5x80xf32> to vector<1x80xf32>
    %cst_168 = arith.constant dense<0.000000e+00> : vector<1x128xf32>
    %336 = tpu.matmul %335, %21, %cst_168 {dimension_numbers = #tpu.dot_dimension_numbers<[1], [0], [0], [1], [0, 0, 1, 1], [], []>} : vector<1x80xf32>, vector<80x128xf32>, vector<1x128xf32> -> vector<1x128xf32>
    %337 = vector.extract_strided_slice %334 {offsets = [1, 0], sizes = [1, 80], strides = [1, 1]} : vector<5x80xf32> to vector<1x80xf32>
    %cst_169 = arith.constant dense<0.000000e+00> : vector<1x128xf32>
    %338 = tpu.matmul %337, %23, %cst_169 {dimension_numbers = #tpu.dot_dimension_numbers<[1], [0], [0], [1], [0, 0, 1, 1], [], []>} : vector<1x80xf32>, vector<80x128xf32>, vector<1x128xf32> -> vector<1x128xf32>
    %339 = arith.addf %336, %338 : vector<1x128xf32>
    %340 = vector.extract_strided_slice %334 {offsets = [2, 0], sizes = [1, 80], strides = [1, 1]} : vector<5x80xf32> to vector<1x80xf32>
    %cst_170 = arith.constant dense<0.000000e+00> : vector<1x128xf32>
    %341 = tpu.matmul %340, %25, %cst_170 {dimension_numbers = #tpu.dot_dimension_numbers<[1], [0], [0], [1], [0, 0, 1, 1], [], []>} : vector<1x80xf32>, vector<80x128xf32>, vector<1x128xf32> -> vector<1x128xf32>
    %342 = arith.addf %339, %341 : vector<1x128xf32>
    %343 = vector.extract_strided_slice %334 {offsets = [3, 0], sizes = [1, 80], strides = [1, 1]} : vector<5x80xf32> to vector<1x80xf32>
    %cst_171 = arith.constant dense<0.000000e+00> : vector<1x128xf32>
    %344 = tpu.matmul %343, %27, %cst_171 {dimension_numbers = #tpu.dot_dimension_numbers<[1], [0], [0], [1], [0, 0, 1, 1], [], []>} : vector<1x80xf32>, vector<80x128xf32>, vector<1x128xf32> -> vector<1x128xf32>
    %345 = arith.addf %342, %344 : vector<1x128xf32>
    %346 = vector.extract_strided_slice %334 {offsets = [4, 0], sizes = [1, 80], strides = [1, 1]} : vector<5x80xf32> to vector<1x80xf32>
    %cst_172 = arith.constant dense<0.000000e+00> : vector<1x128xf32>
    %347 = tpu.matmul %346, %29, %cst_172 {dimension_numbers = #tpu.dot_dimension_numbers<[1], [0], [0], [1], [0, 0, 1, 1], [], []>} : vector<1x80xf32>, vector<80x128xf32>, vector<1x128xf32> -> vector<1x128xf32>
    %348 = arith.addf %345, %347 : vector<1x128xf32>
    %349 = arith.addf %348, %32 : vector<1x128xf32>
    %cst_173 = arith.constant 0.000000e+00 : f32
    %350 = vector.broadcast %cst_173 : f32 to vector<1x128xf32>
    %351 = arith.maximumf %349, %350 : vector<1x128xf32>
    %cst_174 = arith.constant dense<0.000000e+00> : vector<1x128xf32>
    %352 = tpu.matmul %351, %33, %cst_174 {dimension_numbers = #tpu.dot_dimension_numbers<[1], [0], [0], [1], [0, 0, 1, 1], [], []>} : vector<1x128xf32>, vector<128x128xf32>, vector<1x128xf32> -> vector<1x128xf32>
    %353 = arith.addf %352, %34 : vector<1x128xf32>
    %cst_175 = arith.constant 0.000000e+00 : f32
    %354 = vector.broadcast %cst_175 : f32 to vector<1x128xf32>
    %355 = arith.maximumf %353, %354 : vector<1x128xf32>
    %cst_176 = arith.constant dense<0.000000e+00> : vector<1x10xf32>
    %356 = tpu.matmul %355, %35, %cst_176 {dimension_numbers = #tpu.dot_dimension_numbers<[1], [0], [0], [1], [0, 0, 1, 1], [], []>} : vector<1x128xf32>, vector<128x10xf32>, vector<1x10xf32> -> vector<1x10xf32>
    %357 = arith.addf %356, %36 : vector<1x10xf32>
    %c1_177 = arith.constant 1 : index
    %c0_178 = arith.constant 0 : index
    %358 = vector.load %arg11[%c1_177, %c0_178] : memref<2x10xf32, #tpu.memory_space<vmem>>, vector<1x10xf32>
    tpu.vector_store %arg11[%c1_177, %c0_178], %357 {strides = array<i32>} : memref<2x10xf32, #tpu.memory_space<vmem>>, vector<1x10xf32>,
    return
  }
}

</mosaic_0001>

<llo_original>
// kernel: simple_cnn_forward.1
$region0: #{simple_cnn_forward.1}
  #allocation0 [shape = 'u32[]', space=smem, size = 0x4, offset = 0x4, fixed_abs, tag = 'smem constant byte address 0x4 - core index']
  #allocation1 [shape = 'u32[72,128]{1,0:T(1,128)}', space=vmem, size = 0x9000, scoped, tag = 'internal scratch']
  %s0 = inlined_call_operand.vmem [shape: f32[2,4,8,96], index: 0, kind: input, shape index: {}]
  %s1 = inlined_call_operand.vmem [shape: f32[5,96,256], index: 1, kind: input, shape index: {}]
  %s2 = inlined_call_operand.vmem [shape: f32[1,256], index: 2, kind: input, shape index: {}]
  %s3 = inlined_call_operand.vmem [shape: f32[5,84,256], index: 3, kind: input, shape index: {}]
  %s4 = inlined_call_operand.vmem [shape: f32[1,256], index: 4, kind: input, shape index: {}]
  %s5 = inlined_call_operand.vmem [shape: f32[5,80,128], index: 5, kind: input, shape index: {}]
  %s6 = inlined_call_operand.vmem [shape: f32[1,128], index: 6, kind: input, shape index: {}]
  %s7 = inlined_call_operand.vmem [shape: f32[128,128], index: 7, kind: input, shape index: {}]
  %s8 = inlined_call_operand.vmem [shape: f32[1,128], index: 8, kind: input, shape index: {}]
  %s9 = inlined_call_operand.vmem [shape: f32[128,10], index: 9, kind: input, shape index: {}]
  %s10 = inlined_call_operand.vmem [shape: f32[1,10], index: 10, kind: input, shape index: {}]
  %s11 = inlined_call_operand.hbm [shape: f32[2,10], index: 11, kind: output, shape index: {}]
  %s12 = sld [smem:[#allocation0]]
  $region54: #{simple_cnn_forward.1} parent=0
    _
  %s14 = ssub.s32 1, %s12
  %s15 = scalar_select 0, %s14, %s12
  $region1: #{simple_cnn_forward.1} parent=0
    #allocation2 [shape = 'u8[1024]{0}', space=vmem, size = 0x400, scoped, tag = 'output window, operand 0, single buffered']
    #allocation3 [shape = 's32[1]{0}', space=sflag, size = 0x4, scoped, tag = 'scoped memory for simple_cnn_forward.1']
    %16 = vsyncpa [#allocation3], 0
    // Predicated region
    $region2: #{simple_cnn_forward.1} parent=1 // pred_check
      _
    $region3: #{simple_cnn_forward.1} parent=1 // pred_check_branch
      %18 = sbr.rel (0) target = $region5
    $region4: #{simple_cnn_forward.1} parent=1 // pred_region
      _
    $region5: #{simple_cnn_forward.1} parent=1 // pred_fallthru
      _
    // Predicated region
    $region6: #{simple_cnn_forward.1} parent=1 // pred_check
      _
    $region7: #{simple_cnn_forward.1} parent=1 // pred_check_branch
      %20 = sbr.rel (0) target = $region9
    $region8: #{simple_cnn_forward.1} parent=1 // pred_region
      _
    $region9: #{simple_cnn_forward.1} parent=1 // pred_fallthru
      _
    // Predicated region
    $region10: #{simple_cnn_forward.1} parent=1 // pred_check
      _
    $region11: #{simple_cnn_forward.1} parent=1 // pred_check_branch
      %22 = sbr.rel (0) target = $region13
    $region12: #{simple_cnn_forward.1} parent=1 // pred_region
      _
    $region13: #{simple_cnn_forward.1} parent=1 // pred_fallthru
      _
    // Predicated region
    $region14: #{simple_cnn_forward.1} parent=1 // pred_check
      _
    $region15: #{simple_cnn_forward.1} parent=1 // pred_check_branch
      %24 = sbr.rel (0) target = $region17
    $region16: #{simple_cnn_forward.1} parent=1 // pred_region
      _
    $region17: #{simple_cnn_forward.1} parent=1 // pred_fallthru
      _
    // Predicated region
    $region18: #{simple_cnn_forward.1} parent=1 // pred_check
      _
    $region19: #{simple_cnn_forward.1} parent=1 // pred_check_branch
      %26 = sbr.rel (0) target = $region21
    $region20: #{simple_cnn_forward.1} parent=1 // pred_region
      _
    $region21: #{simple_cnn_forward.1} parent=1 // pred_fallthru
      _
    // Predicated region
    $region22: #{simple_cnn_forward.1} parent=1 // pred_check
      _
    $region23: #{simple_cnn_forward.1} parent=1 // pred_check_branch
      %28 = sbr.rel (0) target = $region25
    $region24: #{simple_cnn_forward.1} parent=1 // pred_region
      _
    $region25: #{simple_cnn_forward.1} parent=1 // pred_fallthru
      _
    // Predicated region
    $region26: #{simple_cnn_forward.1} parent=1 // pred_check
      _
    $region27: #{simple_cnn_forward.1} parent=1 // pred_check_branch
      %30 = sbr.rel (0) target = $region29
    $region28: #{simple_cnn_forward.1} parent=1 // pred_region
      _
    $region29: #{simple_cnn_forward.1} parent=1 // pred_fallthru
      _
    // Predicated region
    $region30: #{simple_cnn_forward.1} parent=1 // pred_check
      _
    $region31: #{simple_cnn_forward.1} parent=1 // pred_check_branch
      %32 = sbr.rel (0) target = $region33
    $region32: #{simple_cnn_forward.1} parent=1 // pred_region
      _
    $region33: #{simple_cnn_forward.1} parent=1 // pred_fallthru
      _
    // Predicated region
    $region34: #{simple_cnn_forward.1} parent=1 // pred_check
      _
    $region35: #{simple_cnn_forward.1} parent=1 // pred_check_branch
      %34 = sbr.rel (0) target = $region37
    $region36: #{simple_cnn_forward.1} parent=1 // pred_region
      _
    $region37: #{simple_cnn_forward.1} parent=1 // pred_fallthru
      _
    // Predicated region
    $region38: #{simple_cnn_forward.1} parent=1 // pred_check
      _
    $region39: #{simple_cnn_forward.1} parent=1 // pred_check_branch
      %36 = sbr.rel (0) target = $region41
    $region40: #{simple_cnn_forward.1} parent=1 // pred_region
      _
    $region41: #{simple_cnn_forward.1} parent=1 // pred_fallthru
      _
    // Predicated region
    $region42: #{simple_cnn_forward.1} parent=1 // pred_check
      _
    $region43: #{simple_cnn_forward.1} parent=1 // pred_check_branch
      %38 = sbr.rel (0) target = $region45
    $region44: #{simple_cnn_forward.1} parent=1 // pred_region
      _
    $region45: #{simple_cnn_forward.1} parent=1 // pred_fallthru
      _
    %v39 = vld [vmem:[%s1] sm:$0xff]
    %v40 = vld [vmem:[%s1 + $0x8] sm:$0xff]
    %v41 = vld [vmem:[%s1 + $0x10] sm:$0xff]
    %v42 = vld [vmem:[%s1 + $0x18] sm:$0xff]
    %v43 = vld [vmem:[%s1 + $0x20] sm:$0xff]
    %v44 = vld [vmem:[%s1 + $0x28] sm:$0xff]
    %v45 = vld [vmem:[%s1 + $0x30] sm:$0xff]
    %v46 = vld [vmem:[%s1 + $0x38] sm:$0xff]
    %v47 = vld [vmem:[%s1 + $0x40] sm:$0xff]
    %v48 = vld [vmem:[%s1 + $0x48] sm:$0xff]
    %v49 = vld [vmem:[%s1 + $0x50] sm:$0xff]
    %v50 = vld [vmem:[%s1 + $0x58] sm:$0xff]
    %v51 = vld [vmem:[%s1 + $0x60] sm:$0xff]
    %v52 = vld [vmem:[%s1 + $0x68] sm:$0xff]
    %v53 = vld [vmem:[%s1 + $0x70] sm:$0xff]
    %v54 = vld [vmem:[%s1 + $0x78] sm:$0xff]
    %v55 = vld [vmem:[%s1 + $0x80] sm:$0xff]
    %v56 = vld [vmem:[%s1 + $0x88] sm:$0xff]
    %v57 = vld [vmem:[%s1 + $0x90] sm:$0xff]
    %v58 = vld [vmem:[%s1 + $0x98] sm:$0xff]
    %v59 = vld [vmem:[%s1 + $0xa0] sm:$0xff]
    %v60 = vld [vmem:[%s1 + $0xa8] sm:$0xff]
    %v61 = vld [vmem:[%s1 + $0xb0] sm:$0xff]
    %v62 = vld [vmem:[%s1 + $0xb8] sm:$0xff]
    %s63 = scalar_lea.vmem %s1, 192
    %v64 = vld [vmem:[%s63] sm:$0xff]
    %v65 = vld [vmem:[%s63 + $0x8] sm:$0xff]
    %v66 = vld [vmem:[%s63 + $0x10] sm:$0xff]
    %v67 = vld [vmem:[%s63 + $0x18] sm:$0xff]
    %v68 = vld [vmem:[%s63 + $0x20] sm:$0xff]
    %v69 = vld [vmem:[%s63 + $0x28] sm:$0xff]
    %v70 = vld [vmem:[%s63 + $0x30] sm:$0xff]
    %v71 = vld [vmem:[%s63 + $0x38] sm:$0xff]
    %v72 = vld [vmem:[%s63 + $0x40] sm:$0xff]
    %v73 = vld [vmem:[%s63 + $0x48] sm:$0xff]
    %v74 = vld [vmem:[%s63 + $0x50] sm:$0xff]
    %v75 = vld [vmem:[%s63 + $0x58] sm:$0xff]
    %v76 = vld [vmem:[%s63 + $0x60] sm:$0xff]
    %v77 = vld [vmem:[%s63 + $0x68] sm:$0xff]
    %v78 = vld [vmem:[%s63 + $0x70] sm:$0xff]
    %v79 = vld [vmem:[%s63 + $0x78] sm:$0xff]
    %v80 = vld [vmem:[%s63 + $0x80] sm:$0xff]
    %v81 = vld [vmem:[%s63 + $0x88] sm:$0xff]
    %v82 = vld [vmem:[%s63 + $0x90] sm:$0xff]
    %v83 = vld [vmem:[%s63 + $0x98] sm:$0xff]
    %v84 = vld [vmem:[%s63 + $0xa0] sm:$0xff]
    %v85 = vld [vmem:[%s63 + $0xa8] sm:$0xff]
    %v86 = vld [vmem:[%s63 + $0xb0] sm:$0xff]
    %v87 = vld [vmem:[%s63 + $0xb8] sm:$0xff]
    %s88 = scalar_lea.vmem %s1, 384
    %v89 = vld [vmem:[%s88] sm:$0xff]
    %v90 = vld [vmem:[%s88 + $0x8] sm:$0xff]
    %v91 = vld [vmem:[%s88 + $0x10] sm:$0xff]
    %v92 = vld [vmem:[%s88 + $0x18] sm:$0xff]
    %v93 = vld [vmem:[%s88 + $0x20] sm:$0xff]
    %v94 = vld [vmem:[%s88 + $0x28] sm:$0xff]
    %v95 = vld [vmem:[%s88 + $0x30] sm:$0xff]
    %v96 = vld [vmem:[%s88 + $0x38] sm:$0xff]
    %v97 = vld [vmem:[%s88 + $0x40] sm:$0xff]
    %v98 = vld [vmem:[%s88 + $0x48] sm:$0xff]
    %v99 = vld [vmem:[%s88 + $0x50] sm:$0xff]
    %v100 = vld [vmem:[%s88 + $0x58] sm:$0xff]
    %v101 = vld [vmem:[%s88 + $0x60] sm:$0xff]
    %v102 = vld [vmem:[%s88 + $0x68] sm:$0xff]
    %v103 = vld [vmem:[%s88 + $0x70] sm:$0xff]
    %v104 = vld [vmem:[%s88 + $0x78] sm:$0xff]
    %v105 = vld [vmem:[%s88 + $0x80] sm:$0xff]
    %v106 = vld [vmem:[%s88 + $0x88] sm:$0xff]
    %v107 = vld [vmem:[%s88 + $0x90] sm:$0xff]
    %v108 = vld [vmem:[%s88 + $0x98] sm:$0xff]
    %v109 = vld [vmem:[%s88 + $0xa0] sm:$0xff]
    %v110 = vld [vmem:[%s88 + $0xa8] sm:$0xff]
    %v111 = vld [vmem:[%s88 + $0xb0] sm:$0xff]
    %v112 = vld [vmem:[%s88 + $0xb8] sm:$0xff]
    %s113 = scalar_lea.vmem %s1, 576
    %v114 = vld [vmem:[%s113] sm:$0xff]
    %v115 = vld [vmem:[%s113 + $0x8] sm:$0xff]
    %v116 = vld [vmem:[%s113 + $0x10] sm:$0xff]
    %v117 = vld [vmem:[%s113 + $0x18] sm:$0xff]
    %v118 = vld [vmem:[%s113 + $0x20] sm:$0xff]
    %v119 = vld [vmem:[%s113 + $0x28] sm:$0xff]
    %v120 = vld [vmem:[%s113 + $0x30] sm:$0xff]
    %v121 = vld [vmem:[%s113 + $0x38] sm:$0xff]
    %v122 = vld [vmem:[%s113 + $0x40] sm:$0xff]
    %v123 = vld [vmem:[%s113 + $0x48] sm:$0xff]
    %v124 = vld [vmem:[%s113 + $0x50] sm:$0xff]
    %v125 = vld [vmem:[%s113 + $0x58] sm:$0xff]
    %v126 = vld [vmem:[%s113 + $0x60] sm:$0xff]
    %v127 = vld [vmem:[%s113 + $0x68] sm:$0xff]
    %v128 = vld [vmem:[%s113 + $0x70] sm:$0xff]
    %v129 = vld [vmem:[%s113 + $0x78] sm:$0xff]
    %v130 = vld [vmem:[%s113 + $0x80] sm:$0xff]
    %v131 = vld [vmem:[%s113 + $0x88] sm:$0xff]
    %v132 = vld [vmem:[%s113 + $0x90] sm:$0xff]
    %v133 = vld [vmem:[%s113 + $0x98] sm:$0xff]
    %v134 = vld [vmem:[%s113 + $0xa0] sm:$0xff]
    %v135 = vld [vmem:[%s113 + $0xa8] sm:$0xff]
    %v136 = vld [vmem:[%s113 + $0xb0] sm:$0xff]
    %v137 = vld [vmem:[%s113 + $0xb8] sm:$0xff]
    %s138 = scalar_lea.vmem %s1, 768
    %v139 = vld [vmem:[%s138] sm:$0xff]
    %v140 = vld [vmem:[%s138 + $0x8] sm:$0xff]
    %v141 = vld [vmem:[%s138 + $0x10] sm:$0xff]
    %v142 = vld [vmem:[%s138 + $0x18] sm:$0xff]
    %v143 = vld [vmem:[%s138 + $0x20] sm:$0xff]
    %v144 = vld [vmem:[%s138 + $0x28] sm:$0xff]
    %v145 = vld [vmem:[%s138 + $0x30] sm:$0xff]
    %v146 = vld [vmem:[%s138 + $0x38] sm:$0xff]
    %v147 = vld [vmem:[%s138 + $0x40] sm:$0xff]
    %v148 = vld [vmem:[%s138 + $0x48] sm:$0xff]
    %v149 = vld [vmem:[%s138 + $0x50] sm:$0xff]
    %v150 = vld [vmem:[%s138 + $0x58] sm:$0xff]
    %v151 = vld [vmem:[%s138 + $0x60] sm:$0xff]
    %v152 = vld [vmem:[%s138 + $0x68] sm:$0xff]
    %v153 = vld [vmem:[%s138 + $0x70] sm:$0xff]
    %v154 = vld [vmem:[%s138 + $0x78] sm:$0xff]
    %v155 = vld [vmem:[%s138 + $0x80] sm:$0xff]
    %v156 = vld [vmem:[%s138 + $0x88] sm:$0xff]
    %v157 = vld [vmem:[%s138 + $0x90] sm:$0xff]
    %v158 = vld [vmem:[%s138 + $0x98] sm:$0xff]
    %v159 = vld [vmem:[%s138 + $0xa0] sm:$0xff]
    %v160 = vld [vmem:[%s138 + $0xa8] sm:$0xff]
    %v161 = vld [vmem:[%s138 + $0xb0] sm:$0xff]
    %v162 = vld [vmem:[%s138 + $0xb8] sm:$0xff]
    %v163 = vld [vmem:[%s3] sm:$0xff]
    %v164 = vld [vmem:[%s3 + $0x8] sm:$0xff]
    %v165 = vld [vmem:[%s3 + $0x10] sm:$0xff]
    %v166 = vld [vmem:[%s3 + $0x18] sm:$0xff]
    %v167 = vld [vmem:[%s3 + $0x20] sm:$0xff]
    %v168 = vld [vmem:[%s3 + $0x28] sm:$0xff]
    %v169 = vld [vmem:[%s3 + $0x30] sm:$0xff]
    %v170 = vld [vmem:[%s3 + $0x38] sm:$0xff]
    %v171 = vld [vmem:[%s3 + $0x40] sm:$0xff]
    %v172 = vld [vmem:[%s3 + $0x48] sm:$0xff]
    %v173 = vld [vmem:[%s3 + $0x50] sm:$0xff]
    %v174 = vld [vmem:[%s3 + $0x58] sm:$0xff]
    %v175 = vld [vmem:[%s3 + $0x60] sm:$0xff]
    %v176 = vld [vmem:[%s3 + $0x68] sm:$0xff]
    %v177 = vld [vmem:[%s3 + $0x70] sm:$0xff]
    %v178 = vld [vmem:[%s3 + $0x78] sm:$0xff]
    %v179 = vld [vmem:[%s3 + $0x80] sm:$0xff]
    %v180 = vld [vmem:[%s3 + $0x88] sm:$0xff]
    %v181 = vld [vmem:[%s3 + $0x90] sm:$0xff]
    %v182 = vld [vmem:[%s3 + $0x98] sm:$0xff]
    %v183 = vld [vmem:[%s3 + $0xa0] sm:$0xf]
    %v184 = vld [vmem:[%s3 + $0xa8] sm:$0xf]
    %s185 = scalar_lea.vmem %s3, 176
    %v186 = vld [vmem:[%s185] sm:$0xff]
    %v187 = vld [vmem:[%s185 + $0x8] sm:$0xff]
    %v188 = vld [vmem:[%s185 + $0x10] sm:$0xff]
    %v189 = vld [vmem:[%s185 + $0x18] sm:$0xff]
    %v190 = vld [vmem:[%s185 + $0x20] sm:$0xff]
    %v191 = vld [vmem:[%s185 + $0x28] sm:$0xff]
    %v192 = vld [vmem:[%s185 + $0x30] sm:$0xff]
    %v193 = vld [vmem:[%s185 + $0x38] sm:$0xff]
    %v194 = vld [vmem:[%s185 + $0x40] sm:$0xff]
    %v195 = vld [vmem:[%s185 + $0x48] sm:$0xff]
    %v196 = vld [vmem:[%s185 + $0x50] sm:$0xff]
    %v197 = vld [vmem:[%s185 + $0x58] sm:$0xff]
    %v198 = vld [vmem:[%s185 + $0x60] sm:$0xff]
    %v199 = vld [vmem:[%s185 + $0x68] sm:$0xff]
    %v200 = vld [vmem:[%s185 + $0x70] sm:$0xff]
    %v201 = vld [vmem:[%s185 + $0x78] sm:$0xff]
    %v202 = vld [vmem:[%s185 + $0x80] sm:$0xff]
    %v203 = vld [vmem:[%s185 + $0x88] sm:$0xff]
    %v204 = vld [vmem:[%s185 + $0x90] sm:$0xff]
    %v205 = vld [vmem:[%s185 + $0x98] sm:$0xff]
    %v206 = vld [vmem:[%s185 + $0xa0] sm:$0xf]
    %v207 = vld [vmem:[%s185 + $0xa8] sm:$0xf]
    %s208 = scalar_lea.vmem %s3, 352
    %v209 = vld [vmem:[%s208] sm:$0xff]
    %v210 = vld [vmem:[%s208 + $0x8] sm:$0xff]
    %v211 = vld [vmem:[%s208 + $0x10] sm:$0xff]
    %v212 = vld [vmem:[%s208 + $0x18] sm:$0xff]
    %v213 = vld [vmem:[%s208 + $0x20] sm:$0xff]
    %v214 = vld [vmem:[%s208 + $0x28] sm:$0xff]
    %v215 = vld [vmem:[%s208 + $0x30] sm:$0xff]
    %v216 = vld [vmem:[%s208 + $0x38] sm:$0xff]
    %v217 = vld [vmem:[%s208 + $0x40] sm:$0xff]
    %v218 = vld [vmem:[%s208 + $0x48] sm:$0xff]
    %v219 = vld [vmem:[%s208 + $0x50] sm:$0xff]
    %v220 = vld [vmem:[%s208 + $0x58] sm:$0xff]
    %v221 = vld [vmem:[%s208 + $0x60] sm:$0xff]
    %v222 = vld [vmem:[%s208 + $0x68] sm:$0xff]
    %v223 = vld [vmem:[%s208 + $0x70] sm:$0xff]
    %v224 = vld [vmem:[%s208 + $0x78] sm:$0xff]
    %v225 = vld [vmem:[%s208 + $0x80] sm:$0xff]
    %v226 = vld [vmem:[%s208 + $0x88] sm:$0xff]
    %v227 = vld [vmem:[%s208 + $0x90] sm:$0xff]
    %v228 = vld [vmem:[%s208 + $0x98] sm:$0xff]
    %v229 = vld [vmem:[%s208 + $0xa0] sm:$0xf]
    %v230 = vld [vmem:[%s208 + $0xa8] sm:$0xf]
    %s231 = scalar_lea.vmem %s3, 528
    %v232 = vld [vmem:[%s231] sm:$0xff]
    %v233 = vld [vmem:[%s231 + $0x8] sm:$0xff]
    %v234 = vld [vmem:[%s231 + $0x10] sm:$0xff]
    %v235 = vld [vmem:[%s231 + $0x18] sm:$0xff]
    %v236 = vld [vmem:[%s231 + $0x20] sm:$0xff]
    %v237 = vld [vmem:[%s231 + $0x28] sm:$0xff]
    %v238 = vld [vmem:[%s231 + $0x30] sm:$0xff]
    %v239 = vld [vmem:[%s231 + $0x38] sm:$0xff]
    %v240 = vld [vmem:[%s231 + $0x40] sm:$0xff]
    %v241 = vld [vmem:[%s231 + $0x48] sm:$0xff]
    %v242 = vld [vmem:[%s231 + $0x50] sm:$0xff]
    %v243 = vld [vmem:[%s231 + $0x58] sm:$0xff]
    %v244 = vld [vmem:[%s231 + $0x60] sm:$0xff]
    %v245 = vld [vmem:[%s231 + $0x68] sm:$0xff]
    %v246 = vld [vmem:[%s231 + $0x70] sm:$0xff]
    %v247 = vld [vmem:[%s231 + $0x78] sm:$0xff]
    %v248 = vld [vmem:[%s231 + $0x80] sm:$0xff]
    %v249 = vld [vmem:[%s231 + $0x88] sm:$0xff]
    %v250 = vld [vmem:[%s231 + $0x90] sm:$0xff]
    %v251 = vld [vmem:[%s231 + $0x98] sm:$0xff]
    %v252 = vld [vmem:[%s231 + $0xa0] sm:$0xf]
    %v253 = vld [vmem:[%s231 + $0xa8] sm:$0xf]
    %s254 = scalar_lea.vmem %s3, 704
    %v255 = vld [vmem:[%s254] sm:$0xff]
    %v256 = vld [vmem:[%s254 + $0x8] sm:$0xff]
    %v257 = vld [vmem:[%s254 + $0x10] sm:$0xff]
    %v258 = vld [vmem:[%s254 + $0x18] sm:$0xff]
    %v259 = vld [vmem:[%s254 + $0x20] sm:$0xff]
    %v260 = vld [vmem:[%s254 + $0x28] sm:$0xff]
    %v261 = vld [vmem:[%s254 + $0x30] sm:$0xff]
    %v262 = vld [vmem:[%s254 + $0x38] sm:$0xff]
    %v263 = vld [vmem:[%s254 + $0x40] sm:$0xff]
    %v264 = vld [vmem:[%s254 + $0x48] sm:$0xff]
    %v265 = vld [vmem:[%s254 + $0x50] sm:$0xff]
    %v266 = vld [vmem:[%s254 + $0x58] sm:$0xff]
    %v267 = vld [vmem:[%s254 + $0x60] sm:$0xff]
    %v268 = vld [vmem:[%s254 + $0x68] sm:$0xff]
    %v269 = vld [vmem:[%s254 + $0x70] sm:$0xff]
    %v270 = vld [vmem:[%s254 + $0x78] sm:$0xff]
    %v271 = vld [vmem:[%s254 + $0x80] sm:$0xff]
    %v272 = vld [vmem:[%s254 + $0x88] sm:$0xff]
    %v273 = vld [vmem:[%s254 + $0x90] sm:$0xff]
    %v274 = vld [vmem:[%s254 + $0x98] sm:$0xff]
    %v275 = vld [vmem:[%s254 + $0xa0] sm:$0xf]
    %v276 = vld [vmem:[%s254 + $0xa8] sm:$0xf]
    %v277 = vld [vmem:[%s5] sm:$0xff]
    %v278 = vld [vmem:[%s5 + $0x8] sm:$0xff]
    %v279 = vld [vmem:[%s5 + $0x10] sm:$0xff]
    %v280 = vld [vmem:[%s5 + $0x18] sm:$0xff]
    %v281 = vld [vmem:[%s5 + $0x20] sm:$0xff]
    %v282 = vld [vmem:[%s5 + $0x28] sm:$0xff]
    %v283 = vld [vmem:[%s5 + $0x30] sm:$0xff]
    %v284 = vld [vmem:[%s5 + $0x38] sm:$0xff]
    %v285 = vld [vmem:[%s5 + $0x40] sm:$0xff]
    %v286 = vld [vmem:[%s5 + $0x48] sm:$0xff]
    %s287 = scalar_lea.vmem %s5, 80
    %v288 = vld [vmem:[%s287] sm:$0xff]
    %v289 = vld [vmem:[%s287 + $0x8] sm:$0xff]
    %v290 = vld [vmem:[%s287 + $0x10] sm:$0xff]
    %v291 = vld [vmem:[%s287 + $0x18] sm:$0xff]
    %v292 = vld [vmem:[%s287 + $0x20] sm:$0xff]
    %v293 = vld [vmem:[%s287 + $0x28] sm:$0xff]
    %v294 = vld [vmem:[%s287 + $0x30] sm:$0xff]
    %v295 = vld [vmem:[%s287 + $0x38] sm:$0xff]
    %v296 = vld [vmem:[%s287 + $0x40] sm:$0xff]
    %v297 = vld [vmem:[%s287 + $0x48] sm:$0xff]
    %s298 = scalar_lea.vmem %s5, 160
    %v299 = vld [vmem:[%s298] sm:$0xff]
    %v300 = vld [vmem:[%s298 + $0x8] sm:$0xff]
    %v301 = vld [vmem:[%s298 + $0x10] sm:$0xff]
    %v302 = vld [vmem:[%s298 + $0x18] sm:$0xff]
    %v303 = vld [vmem:[%s298 + $0x20] sm:$0xff]
    %v304 = vld [vmem:[%s298 + $0x28] sm:$0xff]
    %v305 = vld [vmem:[%s298 + $0x30] sm:$0xff]
    %v306 = vld [vmem:[%s298 + $0x38] sm:$0xff]
    %v307 = vld [vmem:[%s298 + $0x40] sm:$0xff]
    %v308 = vld [vmem:[%s298 + $0x48] sm:$0xff]
    %s309 = scalar_lea.vmem %s5, 240
    %v310 = vld [vmem:[%s309] sm:$0xff]
    %v311 = vld [vmem:[%s309 + $0x8] sm:$0xff]
    %v312 = vld [vmem:[%s309 + $0x10] sm:$0xff]
    %v313 = vld [vmem:[%s309 + $0x18] sm:$0xff]
    %v314 = vld [vmem:[%s309 + $0x20] sm:$0xff]
    %v315 = vld [vmem:[%s309 + $0x28] sm:$0xff]
    %v316 = vld [vmem:[%s309 + $0x30] sm:$0xff]
    %v317 = vld [vmem:[%s309 + $0x38] sm:$0xff]
    %v318 = vld [vmem:[%s309 + $0x40] sm:$0xff]
    %v319 = vld [vmem:[%s309 + $0x48] sm:$0xff]
    %s320 = scalar_lea.vmem %s5, 320
    %v321 = vld [vmem:[%s320] sm:$0xff]
    %v322 = vld [vmem:[%s320 + $0x8] sm:$0xff]
    %v323 = vld [vmem:[%s320 + $0x10] sm:$0xff]
    %v324 = vld [vmem:[%s320 + $0x18] sm:$0xff]
    %v325 = vld [vmem:[%s320 + $0x20] sm:$0xff]
    %v326 = vld [vmem:[%s320 + $0x28] sm:$0xff]
    %v327 = vld [vmem:[%s320 + $0x30] sm:$0xff]
    %v328 = vld [vmem:[%s320 + $0x38] sm:$0xff]
    %v329 = vld [vmem:[%s320 + $0x40] sm:$0xff]
    %v330 = vld [vmem:[%s320 + $0x48] sm:$0xff]
    %v331 = vld [vmem:[%s2] sm:$0x3]
    %v332 = vld [vmem:[%s4] sm:$0x3]
    %v333 = vld [vmem:[%s6] sm:$0x1]
    %v334 = vld [vmem:[%s7] sm:$0xff]
    %v335 = vld [vmem:[%s7 + $0x8] sm:$0xff]
    %v336 = vld [vmem:[%s7 + $0x10] sm:$0xff]
    %v337 = vld [vmem:[%s7 + $0x18] sm:$0xff]
    %v338 = vld [vmem:[%s7 + $0x20] sm:$0xff]
    %v339 = vld [vmem:[%s7 + $0x28] sm:$0xff]
    %v340 = vld [vmem:[%s7 + $0x30] sm:$0xff]
    %v341 = vld [vmem:[%s7 + $0x38] sm:$0xff]
    %v342 = vld [vmem:[%s7 + $0x40] sm:$0xff]
    %v343 = vld [vmem:[%s7 + $0x48] sm:$0xff]
    %v344 = vld [vmem:[%s7 + $0x50] sm:$0xff]
    %v345 = vld [vmem:[%s7 + $0x58] sm:$0xff]
    %v346 = vld [vmem:[%s7 + $0x60] sm:$0xff]
    %v347 = vld [vmem:[%s7 + $0x68] sm:$0xff]
    %v348 = vld [vmem:[%s7 + $0x70] sm:$0xff]
    %v349 = vld [vmem:[%s7 + $0x78] sm:$0xff]
    %v350 = vld [vmem:[%s8] sm:$0x1]
    %v351 = vld [vmem:[%s9] sm:$0xff]
    %v352 = vld [vmem:[%s9 + $0x8] sm:$0xff]
    %v353 = vld [vmem:[%s9 + $0x10] sm:$0xff]
    %v354 = vld [vmem:[%s9 + $0x18] sm:$0xff]
    %v355 = vld [vmem:[%s9 + $0x20] sm:$0xff]
    %v356 = vld [vmem:[%s9 + $0x28] sm:$0xff]
    %v357 = vld [vmem:[%s9 + $0x30] sm:$0xff]
    %v358 = vld [vmem:[%s9 + $0x38] sm:$0xff]
    %v359 = vld [vmem:[%s9 + $0x40] sm:$0xff]
    %v360 = vld [vmem:[%s9 + $0x48] sm:$0xff]
    %v361 = vld [vmem:[%s9 + $0x50] sm:$0xff]
    %v362 = vld [vmem:[%s9 + $0x58] sm:$0xff]
    %v363 = vld [vmem:[%s9 + $0x60] sm:$0xff]
    %v364 = vld [vmem:[%s9 + $0x68] sm:$0xff]
    %v365 = vld [vmem:[%s9 + $0x70] sm:$0xff]
    %v366 = vld [vmem:[%s9 + $0x78] sm:$0xff]
    %v367 = vld [vmem:[%s10] sm:$0x1]
    %v368 = vld [vmem:[%s0] sm:$0xff]
    %s369 = scalar_lea.vmem %s0, 8
    %v370 = vld [vmem:[%s369] sm:$0xff]
    %s371 = scalar_lea.vmem %s0, 16
    %v372 = vld [vmem:[%s371] sm:$0xff]
    %s373 = scalar_lea.vmem %s0, 24
    %v374 = vld [vmem:[%s373] sm:$0xff]
    %vm375 = vcmask 785408
    %v377 = vsel %vm375, %v370, 0
    %379 = vmatpush.msra.mxu0 0.0
    %380 = vmatpush.msra.mxu0 0.0
    %381 = vmatpush.msra.mxu0 0.0
    %382 = vmatpush.msra.mxu0 0.0
    %383 = vmatpush.msra.mxu0 %v86
    %384 = vmatpush.msra.mxu0 %v84
    %385 = vmatpush.msra.mxu0 %v82
    %386 = vmatpush.msra.mxu0 %v80
    %387 = vmatpush.msra.mxu0 %v78
    %388 = vmatpush.msra.mxu0 %v76
    %389 = vmatpush.msra.mxu0 %v74
    %390 = vmatpush.msra.mxu0 %v72
    %391 = vmatpush.msra.mxu0 %v70
    %392 = vmatpush.msra.mxu0 %v68
    %393 = vmatpush.msra.mxu0 %v66
    %394 = vmatpush.msra.mxu0 %v64
    %395 = vmatmul.f32.gmra.mxu0 %v377
    %v396 = vpop.f32.mrf.mxu0
    %v397 = vadd.f32 0.0, %v396
    %398 = vdwg.mxu0
    %399 = vmatpush.msra.mxu0 0.0
    %400 = vmatpush.msra.mxu0 0.0
    %401 = vmatpush.msra.mxu0 0.0
    %402 = vmatpush.msra.mxu0 0.0
    %403 = vmatpush.msra.mxu0 %v87
    %404 = vmatpush.msra.mxu0 %v85
    %405 = vmatpush.msra.mxu0 %v83
    %406 = vmatpush.msra.mxu0 %v81
    %407 = vmatpush.msra.mxu0 %v79
    %408 = vmatpush.msra.mxu0 %v77
    %409 = vmatpush.msra.mxu0 %v75
    %410 = vmatpush.msra.mxu0 %v73
    %411 = vmatpush.msra.mxu0 %v71
    %412 = vmatpush.msra.mxu0 %v69
    %413 = vmatpush.msra.mxu0 %v67
    %414 = vmatpush.msra.mxu0 %v65
    %415 = vmatmul.f32.gmra.mxu0 %v377
    %v416 = vpop.f32.mrf.mxu0
    %v417 = vadd.f32 0.0, %v416
    %418 = vdwg.mxu0
    %v420 = vsel %vm375, %v368, 0
    %422 = vmatpush.msra.mxu0 0.0
    %423 = vmatpush.msra.mxu0 0.0
    %424 = vmatpush.msra.mxu0 0.0
    %425 = vmatpush.msra.mxu0 0.0
    %426 = vmatpush.msra.mxu0 %v61
    %427 = vmatpush.msra.mxu0 %v59
    %428 = vmatpush.msra.mxu0 %v57
    %429 = vmatpush.msra.mxu0 %v55
    %430 = vmatpush.msra.mxu0 %v53
    %431 = vmatpush.msra.mxu0 %v51
    %432 = vmatpush.msra.mxu0 %v49
    %433 = vmatpush.msra.mxu0 %v47
    %434 = vmatpush.msra.mxu0 %v45
    %435 = vmatpush.msra.mxu0 %v43
    %436 = vmatpush.msra.mxu0 %v41
    %437 = vmatpush.msra.mxu0 %v39
    %438 = vmatmul.f32.gmra.mxu0 %v420
    %v439 = vpop.f32.mrf.mxu0
    %v440 = vadd.f32 %v397, %v439
    %441 = vdwg.mxu0
    %442 = vmatpush.msra.mxu0 0.0
    %443 = vmatpush.msra.mxu0 0.0
    %444 = vmatpush.msra.mxu0 0.0
    %445 = vmatpush.msra.mxu0 0.0
    %446 = vmatpush.msra.mxu0 %v62
    %447 = vmatpush.msra.mxu0 %v60
    %448 = vmatpush.msra.mxu0 %v58
    %449 = vmatpush.msra.mxu0 %v56
    %450 = vmatpush.msra.mxu0 %v54
    %451 = vmatpush.msra.mxu0 %v52
    %452 = vmatpush.msra.mxu0 %v50
    %453 = vmatpush.msra.mxu0 %v48
    %454 = vmatpush.msra.mxu0 %v46
    %455 = vmatpush.msra.mxu0 %v44
    %456 = vmatpush.msra.mxu0 %v42
    %457 = vmatpush.msra.mxu0 %v40
    %458 = vmatmul.f32.gmra.mxu0 %v420
    %v459 = vpop.f32.mrf.mxu0
    %v460 = vadd.f32 %v417, %v459
    %461 = vdwg.mxu0
    %v463 = vsel %vm375, %v372, 0
    %465 = vmatpush.msra.mxu0 0.0
    %466 = vmatpush.msra.mxu0 0.0
    %467 = vmatpush.msra.mxu0 0.0
    %468 = vmatpush.msra.mxu0 0.0
    %469 = vmatpush.msra.mxu0 %v111
    %470 = vmatpush.msra.mxu0 %v109
    %471 = vmatpush.msra.mxu0 %v107
    %472 = vmatpush.msra.mxu0 %v105
    %473 = vmatpush.msra.mxu0 %v103
    %474 = vmatpush.msra.mxu0 %v101
    %475 = vmatpush.msra.mxu0 %v99
    %476 = vmatpush.msra.mxu0 %v97
    %477 = vmatpush.msra.mxu0 %v95
    %478 = vmatpush.msra.mxu0 %v93
    %479 = vmatpush.msra.mxu0 %v91
    %480 = vmatpush.msra.mxu0 %v89
    %481 = vmatmul.f32.gmra.mxu0 %v463
    %v482 = vpop.f32.mrf.mxu0
    %v483 = vadd.f32 0.0, %v482
    %484 = vdwg.mxu0
    %485 = vmatpush.msra.mxu0 0.0
    %486 = vmatpush.msra.mxu0 0.0
    %487 = vmatpush.msra.mxu0 0.0
    %488 = vmatpush.msra.mxu0 0.0
    %489 = vmatpush.msra.mxu0 %v112
    %490 = vmatpush.msra.mxu0 %v110
    %491 = vmatpush.msra.mxu0 %v108
    %492 = vmatpush.msra.mxu0 %v106
    %493 = vmatpush.msra.mxu0 %v104
    %494 = vmatpush.msra.mxu0 %v102
    %495 = vmatpush.msra.mxu0 %v100
    %496 = vmatpush.msra.mxu0 %v98
    %497 = vmatpush.msra.mxu0 %v96
    %498 = vmatpush.msra.mxu0 %v94
    %499 = vmatpush.msra.mxu0 %v92
    %500 = vmatpush.msra.mxu0 %v90
    %501 = vmatmul.f32.gmra.mxu0 %v463
    %v502 = vpop.f32.mrf.mxu0
    %v503 = vadd.f32 0.0, %v502
    %504 = vdwg.mxu0
    %v505 = vadd.f32 %v440, %v483
    %v506 = vadd.f32 %v460, %v503
    %v508 = vsel %vm375, %v374, 0
    %510 = vmatpush.msra.mxu0 0.0
    %511 = vmatpush.msra.mxu0 0.0
    %512 = vmatpush.msra.mxu0 0.0
    %513 = vmatpush.msra.mxu0 0.0
    %514 = vmatpush.msra.mxu0 %v136
    %515 = vmatpush.msra.mxu0 %v134
    %516 = vmatpush.msra.mxu0 %v132
    %517 = vmatpush.msra.mxu0 %v130
    %518 = vmatpush.msra.mxu0 %v128
    %519 = vmatpush.msra.mxu0 %v126
    %520 = vmatpush.msra.mxu0 %v124
    %521 = vmatpush.msra.mxu0 %v122
    %522 = vmatpush.msra.mxu0 %v120
    %523 = vmatpush.msra.mxu0 %v118
    %524 = vmatpush.msra.mxu0 %v116
    %525 = vmatpush.msra.mxu0 %v114
    %526 = vmatmul.f32.gmra.mxu0 %v508
    %v527 = vpop.f32.mrf.mxu0
    %v528 = vadd.f32 0.0, %v527
    %529 = vdwg.mxu0
    %530 = vmatpush.msra.mxu0 0.0
    %531 = vmatpush.msra.mxu0 0.0
    %532 = vmatpush.msra.mxu0 0.0
    %533 = vmatpush.msra.mxu0 0.0
    %534 = vmatpush.msra.mxu0 %v137
    %535 = vmatpush.msra.mxu0 %v135
    %536 = vmatpush.msra.mxu0 %v133
    %537 = vmatpush.msra.mxu0 %v131
    %538 = vmatpush.msra.mxu0 %v129
    %539 = vmatpush.msra.mxu0 %v127
    %540 = vmatpush.msra.mxu0 %v125
    %541 = vmatpush.msra.mxu0 %v123
    %542 = vmatpush.msra.mxu0 %v121
    %543 = vmatpush.msra.mxu0 %v119
    %544 = vmatpush.msra.mxu0 %v117
    %545 = vmatpush.msra.mxu0 %v115
    %546 = vmatmul.f32.gmra.mxu0 %v508
    %v547 = vpop.f32.mrf.mxu0
    %v548 = vadd.f32 0.0, %v547
    %549 = vdwg.mxu0
    %v550 = vadd.f32 %v505, %v528
    %v551 = vadd.f32 %v506, %v548
    %v552 = vrot.slane %v368, 1
    %v553 = vsel %vm375, %v552, 0
    %555 = vmatpush.msra.mxu0 0.0
    %556 = vmatpush.msra.mxu0 0.0
    %557 = vmatpush.msra.mxu0 0.0
    %558 = vmatpush.msra.mxu0 0.0
    %559 = vmatpush.msra.mxu0 %v161
    %560 = vmatpush.msra.mxu0 %v159
    %561 = vmatpush.msra.mxu0 %v157
    %562 = vmatpush.msra.mxu0 %v155
    %563 = vmatpush.msra.mxu0 %v153
    %564 = vmatpush.msra.mxu0 %v151
    %565 = vmatpush.msra.mxu0 %v149
    %566 = vmatpush.msra.mxu0 %v147
    %567 = vmatpush.msra.mxu0 %v145
    %568 = vmatpush.msra.mxu0 %v143
    %569 = vmatpush.msra.mxu0 %v141
    %570 = vmatpush.msra.mxu0 %v139
    %571 = vmatmul.f32.gmra.mxu0 %v553
    %v572 = vpop.f32.mrf.mxu0
    %v573 = vadd.f32 0.0, %v572
    %574 = vdwg.mxu0
    %575 = vmatpush.msra.mxu0 0.0
    %576 = vmatpush.msra.mxu0 0.0
    %577 = vmatpush.msra.mxu0 0.0
    %578 = vmatpush.msra.mxu0 0.0
    %579 = vmatpush.msra.mxu0 %v162
    %580 = vmatpush.msra.mxu0 %v160
    %581 = vmatpush.msra.mxu0 %v158
    %582 = vmatpush.msra.mxu0 %v156
    %583 = vmatpush.msra.mxu0 %v154
    %584 = vmatpush.msra.mxu0 %v152
    %585 = vmatpush.msra.mxu0 %v150
    %586 = vmatpush.msra.mxu0 %v148
    %587 = vmatpush.msra.mxu0 %v146
    %588 = vmatpush.msra.mxu0 %v144
    %589 = vmatpush.msra.mxu0 %v142
    %590 = vmatpush.msra.mxu0 %v140
    %591 = vmatmul.f32.gmra.mxu0 %v553
    %v592 = vpop.f32.mrf.mxu0
    %v593 = vadd.f32 0.0, %v592
    %594 = vdwg.mxu0
    %v595 = vadd.f32 %v550, %v573
    %v596 = vadd.f32 %v551, %v593
    %v598 = vperm.slane %v331, 0
    %v599 = vperm.slane %v331, 1
    %v602 = vadd.f32 %v595, %v598
    %v603 = vadd.f32 %v596, %v599
    %v604 = vmax.f32 %v602, 0.0
    %v605 = vmax.f32 %v603, 0.0
    %606 = vmatpush.msra.mxu0 0.0
    %607 = vmatpush.msra.mxu0 0.0
    %608 = vmatpush.msra.mxu0 0.0
    %609 = vmatpush.msra.mxu0 0.0
    %610 = vmatpush.msra.mxu0 %v86
    %611 = vmatpush.msra.mxu0 %v84
    %612 = vmatpush.msra.mxu0 %v82
    %613 = vmatpush.msra.mxu0 %v80
    %614 = vmatpush.msra.mxu0 %v78
    %615 = vmatpush.msra.mxu0 %v76
    %616 = vmatpush.msra.mxu0 %v74
    %617 = vmatpush.msra.mxu0 %v72
    %618 = vmatpush.msra.mxu0 %v70
    %619 = vmatpush.msra.mxu0 %v68
    %620 = vmatpush.msra.mxu0 %v66
    %621 = vmatpush.msra.mxu0 %v64
    %622 = vmatmul.f32.gmra.mxu0 %v463
    %v623 = vpop.f32.mrf.mxu0
    %v624 = vadd.f32 0.0, %v623
    %625 = vdwg.mxu0
    %626 = vmatpush.msra.mxu0 0.0
    %627 = vmatpush.msra.mxu0 0.0
    %628 = vmatpush.msra.mxu0 0.0
    %629 = vmatpush.msra.mxu0 0.0
    %630 = vmatpush.msra.mxu0 %v87
    %631 = vmatpush.msra.mxu0 %v85
    %632 = vmatpush.msra.mxu0 %v83
    %633 = vmatpush.msra.mxu0 %v81
    %634 = vmatpush.msra.mxu0 %v79
    %635 = vmatpush.msra.mxu0 %v77
    %636 = vmatpush.msra.mxu0 %v75
    %637 = vmatpush.msra.mxu0 %v73
    %638 = vmatpush.msra.mxu0 %v71
    %639 = vmatpush.msra.mxu0 %v69
    %640 = vmatpush.msra.mxu0 %v67
    %641 = vmatpush.msra.mxu0 %v65
    %642 = vmatmul.f32.gmra.mxu0 %v463
    %v643 = vpop.f32.mrf.mxu0
    %v644 = vadd.f32 0.0, %v643
    %645 = vdwg.mxu0
    %646 = vmatpush.msra.mxu0 0.0
    %647 = vmatpush.msra.mxu0 0.0
    %648 = vmatpush.msra.mxu0 0.0
    %649 = vmatpush.msra.mxu0 0.0
    %650 = vmatpush.msra.mxu0 %v61
    %651 = vmatpush.msra.mxu0 %v59
    %652 = vmatpush.msra.mxu0 %v57
    %653 = vmatpush.msra.mxu0 %v55
    %654 = vmatpush.msra.mxu0 %v53
    %655 = vmatpush.msra.mxu0 %v51
    %656 = vmatpush.msra.mxu0 %v49
    %657 = vmatpush.msra.mxu0 %v47
    %658 = vmatpush.msra.mxu0 %v45
    %659 = vmatpush.msra.mxu0 %v43
    %660 = vmatpush.msra.mxu0 %v41
    %661 = vmatpush.msra.mxu0 %v39
    %662 = vmatmul.f32.gmra.mxu0 %v377
    %v663 = vpop.f32.mrf.mxu0
    %v664 = vadd.f32 %v624, %v663
    %665 = vdwg.mxu0
    %666 = vmatpush.msra.mxu0 0.0
    %667 = vmatpush.msra.mxu0 0.0
    %668 = vmatpush.msra.mxu0 0.0
    %669 = vmatpush.msra.mxu0 0.0
    %670 = vmatpush.msra.mxu0 %v62
    %671 = vmatpush.msra.mxu0 %v60
    %672 = vmatpush.msra.mxu0 %v58
    %673 = vmatpush.msra.mxu0 %v56
    %674 = vmatpush.msra.mxu0 %v54
    %675 = vmatpush.msra.mxu0 %v52
    %676 = vmatpush.msra.mxu0 %v50
    %677 = vmatpush.msra.mxu0 %v48
    %678 = vmatpush.msra.mxu0 %v46
    %679 = vmatpush.msra.mxu0 %v44
    %680 = vmatpush.msra.mxu0 %v42
    %681 = vmatpush.msra.mxu0 %v40
    %682 = vmatmul.f32.gmra.mxu0 %v377
    %v683 = vpop.f32.mrf.mxu0
    %v684 = vadd.f32 %v644, %v683
    %685 = vdwg.mxu0
    %686 = vmatpush.msra.mxu0 0.0
    %687 = vmatpush.msra.mxu0 0.0
    %688 = vmatpush.msra.mxu0 0.0
    %689 = vmatpush.msra.mxu0 0.0
    %690 = vmatpush.msra.mxu0 %v111
    %691 = vmatpush.msra.mxu0 %v109
    %692 = vmatpush.msra.mxu0 %v107
    %693 = vmatpush.msra.mxu0 %v105
    %694 = vmatpush.msra.mxu0 %v103
    %695 = vmatpush.msra.mxu0 %v101
    %696 = vmatpush.msra.mxu0 %v99
    %697 = vmatpush.msra.mxu0 %v97
    %698 = vmatpush.msra.mxu0 %v95
    %699 = vmatpush.msra.mxu0 %v93
    %700 = vmatpush.msra.mxu0 %v91
    %701 = vmatpush.msra.mxu0 %v89
    %702 = vmatmul.f32.gmra.mxu0 %v508
    %v703 = vpop.f32.mrf.mxu0
    %v704 = vadd.f32 0.0, %v703
    %705 = vdwg.mxu0
    %706 = vmatpush.msra.mxu0 0.0
    %707 = vmatpush.msra.mxu0 0.0
    %708 = vmatpush.msra.mxu0 0.0
    %709 = vmatpush.msra.mxu0 0.0
    %710 = vmatpush.msra.mxu0 %v112
    %711 = vmatpush.msra.mxu0 %v110
    %712 = vmatpush.msra.mxu0 %v108
    %713 = vmatpush.msra.mxu0 %v106
    %714 = vmatpush.msra.mxu0 %v104
    %715 = vmatpush.msra.mxu0 %v102
    %716 = vmatpush.msra.mxu0 %v100
    %717 = vmatpush.msra.mxu0 %v98
    %718 = vmatpush.msra.mxu0 %v96
    %719 = vmatpush.msra.mxu0 %v94
    %720 = vmatpush.msra.mxu0 %v92
    %721 = vmatpush.msra.mxu0 %v90
    %722 = vmatmul.f32.gmra.mxu0 %v508
    %v723 = vpop.f32.mrf.mxu0
    %v724 = vadd.f32 0.0, %v723
    %725 = vdwg.mxu0
    %v726 = vadd.f32 %v664, %v704
    %v727 = vadd.f32 %v684, %v724
    %728 = vmatpush.msra.mxu0 0.0
    %729 = vmatpush.msra.mxu0 0.0
    %730 = vmatpush.msra.mxu0 0.0
    %731 = vmatpush.msra.mxu0 0.0
    %732 = vmatpush.msra.mxu0 %v136
    %733 = vmatpush.msra.mxu0 %v134
    %734 = vmatpush.msra.mxu0 %v132
    %735 = vmatpush.msra.mxu0 %v130
    %736 = vmatpush.msra.mxu0 %v128
    %737 = vmatpush.msra.mxu0 %v126
    %738 = vmatpush.msra.mxu0 %v124
    %739 = vmatpush.msra.mxu0 %v122
    %740 = vmatpush.msra.mxu0 %v120
    %741 = vmatpush.msra.mxu0 %v118
    %742 = vmatpush.msra.mxu0 %v116
    %743 = vmatpush.msra.mxu0 %v114
    %744 = vmatmul.f32.gmra.mxu0 %v553
    %v745 = vpop.f32.mrf.mxu0
    %v746 = vadd.f32 0.0, %v745
    %747 = vdwg.mxu0
    %748 = vmatpush.msra.mxu0 0.0
    %749 = vmatpush.msra.mxu0 0.0
    %750 = vmatpush.msra.mxu0 0.0
    %751 = vmatpush.msra.mxu0 0.0
    %752 = vmatpush.msra.mxu0 %v137
    %753 = vmatpush.msra.mxu0 %v135
    %754 = vmatpush.msra.mxu0 %v133
    %755 = vmatpush.msra.mxu0 %v131
    %756 = vmatpush.msra.mxu0 %v129
    %757 = vmatpush.msra.mxu0 %v127
    %758 = vmatpush.msra.mxu0 %v125
    %759 = vmatpush.msra.mxu0 %v123
    %760 = vmatpush.msra.mxu0 %v121
    %761 = vmatpush.msra.mxu0 %v119
    %762 = vmatpush.msra.mxu0 %v117
    %763 = vmatpush.msra.mxu0 %v115
    %764 = vmatmul.f32.gmra.mxu0 %v553
    %v765 = vpop.f32.mrf.mxu0
    %v766 = vadd.f32 0.0, %v765
    %767 = vdwg.mxu0
    %v768 = vadd.f32 %v726, %v746
    %v769 = vadd.f32 %v727, %v766
    %v770 = vrot.slane %v370, 1
    %v771 = vsel %vm375, %v770, 0
    %773 = vmatpush.msra.mxu0 0.0
    %774 = vmatpush.msra.mxu0 0.0
    %775 = vmatpush.msra.mxu0 0.0
    %776 = vmatpush.msra.mxu0 0.0
    %777 = vmatpush.msra.mxu0 %v161
    %778 = vmatpush.msra.mxu0 %v159
    %779 = vmatpush.msra.mxu0 %v157
    %780 = vmatpush.msra.mxu0 %v155
    %781 = vmatpush.msra.mxu0 %v153
    %782 = vmatpush.msra.mxu0 %v151
    %783 = vmatpush.msra.mxu0 %v149
    %784 = vmatpush.msra.mxu0 %v147
    %785 = vmatpush.msra.mxu0 %v145
    %786 = vmatpush.msra.mxu0 %v143
    %787 = vmatpush.msra.mxu0 %v141
    %788 = vmatpush.msra.mxu0 %v139
    %789 = vmatmul.f32.gmra.mxu0 %v771
    %v790 = vpop.f32.mrf.mxu0
    %v791 = vadd.f32 0.0, %v790
    %792 = vdwg.mxu0
    %793 = vmatpush.msra.mxu0 0.0
    %794 = vmatpush.msra.mxu0 0.0
    %795 = vmatpush.msra.mxu0 0.0
    %796 = vmatpush.msra.mxu0 0.0
    %797 = vmatpush.msra.mxu0 %v162
    %798 = vmatpush.msra.mxu0 %v160
    %799 = vmatpush.msra.mxu0 %v158
    %800 = vmatpush.msra.mxu0 %v156
    %801 = vmatpush.msra.mxu0 %v154
    %802 = vmatpush.msra.mxu0 %v152
    %803 = vmatpush.msra.mxu0 %v150
    %804 = vmatpush.msra.mxu0 %v148
    %805 = vmatpush.msra.mxu0 %v146
    %806 = vmatpush.msra.mxu0 %v144
    %807 = vmatpush.msra.mxu0 %v142
    %808 = vmatpush.msra.mxu0 %v140
    %809 = vmatmul.f32.gmra.mxu0 %v771
    %v810 = vpop.f32.mrf.mxu0
    %v811 = vadd.f32 0.0, %v810
    %812 = vdwg.mxu0
    %v813 = vadd.f32 %v768, %v791
    %v814 = vadd.f32 %v769, %v811
    %v815 = vadd.f32 %v813, %v598
    %v816 = vadd.f32 %v814, %v599
    %v817 = vmax.f32 %v815, 0.0
    %v818 = vmax.f32 %v816, 0.0
    %819 = vmatpush.msra.mxu0 0.0
    %820 = vmatpush.msra.mxu0 0.0
    %821 = vmatpush.msra.mxu0 0.0
    %822 = vmatpush.msra.mxu0 0.0
    %823 = vmatpush.msra.mxu0 %v86
    %824 = vmatpush.msra.mxu0 %v84
    %825 = vmatpush.msra.mxu0 %v82
    %826 = vmatpush.msra.mxu0 %v80
    %827 = vmatpush.msra.mxu0 %v78
    %828 = vmatpush.msra.mxu0 %v76
    %829 = vmatpush.msra.mxu0 %v74
    %830 = vmatpush.msra.mxu0 %v72
    %831 = vmatpush.msra.mxu0 %v70
    %832 = vmatpush.msra.mxu0 %v68
    %833 = vmatpush.msra.mxu0 %v66
    %834 = vmatpush.msra.mxu0 %v64
    %835 = vmatmul.f32.gmra.mxu0 %v508
    %v836 = vpop.f32.mrf.mxu0
    %v837 = vadd.f32 0.0, %v836
    %838 = vdwg.mxu0
    %839 = vmatpush.msra.mxu0 0.0
    %840 = vmatpush.msra.mxu0 0.0
    %841 = vmatpush.msra.mxu0 0.0
    %842 = vmatpush.msra.mxu0 0.0
    %843 = vmatpush.msra.mxu0 %v87
    %844 = vmatpush.msra.mxu0 %v85
    %845 = vmatpush.msra.mxu0 %v83
    %846 = vmatpush.msra.mxu0 %v81
    %847 = vmatpush.msra.mxu0 %v79
    %848 = vmatpush.msra.mxu0 %v77
    %849 = vmatpush.msra.mxu0 %v75
    %850 = vmatpush.msra.mxu0 %v73
    %851 = vmatpush.msra.mxu0 %v71
    %852 = vmatpush.msra.mxu0 %v69
    %853 = vmatpush.msra.mxu0 %v67
    %854 = vmatpush.msra.mxu0 %v65
    %855 = vmatmul.f32.gmra.mxu0 %v508
    %v856 = vpop.f32.mrf.mxu0
    %v857 = vadd.f32 0.0, %v856
    %858 = vdwg.mxu0
    %859 = vmatpush.msra.mxu0 0.0
    %860 = vmatpush.msra.mxu0 0.0
    %861 = vmatpush.msra.mxu0 0.0
    %862 = vmatpush.msra.mxu0 0.0
    %863 = vmatpush.msra.mxu0 %v61
    %864 = vmatpush.msra.mxu0 %v59
    %865 = vmatpush.msra.mxu0 %v57
    %866 = vmatpush.msra.mxu0 %v55
    %867 = vmatpush.msra.mxu0 %v53
    %868 = vmatpush.msra.mxu0 %v51
    %869 = vmatpush.msra.mxu0 %v49
    %870 = vmatpush.msra.mxu0 %v47
    %871 = vmatpush.msra.mxu0 %v45
    %872 = vmatpush.msra.mxu0 %v43
    %873 = vmatpush.msra.mxu0 %v41
    %874 = vmatpush.msra.mxu0 %v39
    %875 = vmatmul.f32.gmra.mxu0 %v463
    %v876 = vpop.f32.mrf.mxu0
    %v877 = vadd.f32 %v837, %v876
    %878 = vdwg.mxu0
    %879 = vmatpush.msra.mxu0 0.0
    %880 = vmatpush.msra.mxu0 0.0
    %881 = vmatpush.msra.mxu0 0.0
    %882 = vmatpush.msra.mxu0 0.0
    %883 = vmatpush.msra.mxu0 %v62
    %884 = vmatpush.msra.mxu0 %v60
    %885 = vmatpush.msra.mxu0 %v58
    %886 = vmatpush.msra.mxu0 %v56
    %887 = vmatpush.msra.mxu0 %v54
    %888 = vmatpush.msra.mxu0 %v52
    %889 = vmatpush.msra.mxu0 %v50
    %890 = vmatpush.msra.mxu0 %v48
    %891 = vmatpush.msra.mxu0 %v46
    %892 = vmatpush.msra.mxu0 %v44
    %893 = vmatpush.msra.mxu0 %v42
    %894 = vmatpush.msra.mxu0 %v40
    %895 = vmatmul.f32.gmra.mxu0 %v463
    %v896 = vpop.f32.mrf.mxu0
    %v897 = vadd.f32 %v857, %v896
    %898 = vdwg.mxu0
    %899 = vmatpush.msra.mxu0 0.0
    %900 = vmatpush.msra.mxu0 0.0
    %901 = vmatpush.msra.mxu0 0.0
    %902 = vmatpush.msra.mxu0 0.0
    %903 = vmatpush.msra.mxu0 %v111
    %904 = vmatpush.msra.mxu0 %v109
    %905 = vmatpush.msra.mxu0 %v107
    %906 = vmatpush.msra.mxu0 %v105
    %907 = vmatpush.msra.mxu0 %v103
    %908 = vmatpush.msra.mxu0 %v101
    %909 = vmatpush.msra.mxu0 %v99
    %910 = vmatpush.msra.mxu0 %v97
    %911 = vmatpush.msra.mxu0 %v95
    %912 = vmatpush.msra.mxu0 %v93
    %913 = vmatpush.msra.mxu0 %v91
    %914 = vmatpush.msra.mxu0 %v89
    %915 = vmatmul.f32.gmra.mxu0 %v553
    %v916 = vpop.f32.mrf.mxu0
    %v917 = vadd.f32 0.0, %v916
    %918 = vdwg.mxu0
    %919 = vmatpush.msra.mxu0 0.0
    %920 = vmatpush.msra.mxu0 0.0
    %921 = vmatpush.msra.mxu0 0.0
    %922 = vmatpush.msra.mxu0 0.0
    %923 = vmatpush.msra.mxu0 %v112
    %924 = vmatpush.msra.mxu0 %v110
    %925 = vmatpush.msra.mxu0 %v108
    %926 = vmatpush.msra.mxu0 %v106
    %927 = vmatpush.msra.mxu0 %v104
    %928 = vmatpush.msra.mxu0 %v102
    %929 = vmatpush.msra.mxu0 %v100
    %930 = vmatpush.msra.mxu0 %v98
    %931 = vmatpush.msra.mxu0 %v96
    %932 = vmatpush.msra.mxu0 %v94
    %933 = vmatpush.msra.mxu0 %v92
    %934 = vmatpush.msra.mxu0 %v90
    %935 = vmatmul.f32.gmra.mxu0 %v553
    %v936 = vpop.f32.mrf.mxu0
    %v937 = vadd.f32 0.0, %v936
    %938 = vdwg.mxu0
    %v939 = vadd.f32 %v877, %v917
    %v940 = vadd.f32 %v897, %v937
    %941 = vmatpush.msra.mxu0 0.0
    %942 = vmatpush.msra.mxu0 0.0
    %943 = vmatpush.msra.mxu0 0.0
    %944 = vmatpush.msra.mxu0 0.0
    %945 = vmatpush.msra.mxu0 %v136
    %946 = vmatpush.msra.mxu0 %v134
    %947 = vmatpush.msra.mxu0 %v132
    %948 = vmatpush.msra.mxu0 %v130
    %949 = vmatpush.msra.mxu0 %v128
    %950 = vmatpush.msra.mxu0 %v126
    %951 = vmatpush.msra.mxu0 %v124
    %952 = vmatpush.msra.mxu0 %v122
    %953 = vmatpush.msra.mxu0 %v120
    %954 = vmatpush.msra.mxu0 %v118
    %955 = vmatpush.msra.mxu0 %v116
    %956 = vmatpush.msra.mxu0 %v114
    %957 = vmatmul.f32.gmra.mxu0 %v771
    %v958 = vpop.f32.mrf.mxu0
    %v959 = vadd.f32 0.0, %v958
    %960 = vdwg.mxu0
    %961 = vmatpush.msra.mxu0 0.0
    %962 = vmatpush.msra.mxu0 0.0
    %963 = vmatpush.msra.mxu0 0.0
    %964 = vmatpush.msra.mxu0 0.0
    %965 = vmatpush.msra.mxu0 %v137
    %966 = vmatpush.msra.mxu0 %v135
    %967 = vmatpush.msra.mxu0 %v133
    %968 = vmatpush.msra.mxu0 %v131
    %969 = vmatpush.msra.mxu0 %v129
    %970 = vmatpush.msra.mxu0 %v127
    %971 = vmatpush.msra.mxu0 %v125
    %972 = vmatpush.msra.mxu0 %v123
    %973 = vmatpush.msra.mxu0 %v121
    %974 = vmatpush.msra.mxu0 %v119
    %975 = vmatpush.msra.mxu0 %v117
    %976 = vmatpush.msra.mxu0 %v115
    %977 = vmatmul.f32.gmra.mxu0 %v771
    %v978 = vpop.f32.mrf.mxu0
    %v979 = vadd.f32 0.0, %v978
    %980 = vdwg.mxu0
    %v981 = vadd.f32 %v939, %v959
    %v982 = vadd.f32 %v940, %v979
    %v983 = vrot.slane %v372, 1
    %v984 = vsel %vm375, %v983, 0
    %986 = vmatpush.msra.mxu0 0.0
    %987 = vmatpush.msra.mxu0 0.0
    %988 = vmatpush.msra.mxu0 0.0
    %989 = vmatpush.msra.mxu0 0.0
    %990 = vmatpush.msra.mxu0 %v161
    %991 = vmatpush.msra.mxu0 %v159
    %992 = vmatpush.msra.mxu0 %v157
    %993 = vmatpush.msra.mxu0 %v155
    %994 = vmatpush.msra.mxu0 %v153
    %995 = vmatpush.msra.mxu0 %v151
    %996 = vmatpush.msra.mxu0 %v149
    %997 = vmatpush.msra.mxu0 %v147
    %998 = vmatpush.msra.mxu0 %v145
    %999 = vmatpush.msra.mxu0 %v143
    %1000 = vmatpush.msra.mxu0 %v141
    %1001 = vmatpush.msra.mxu0 %v139
    %1002 = vmatmul.f32.gmra.mxu0 %v984
    %v1003 = vpop.f32.mrf.mxu0
    %v1004 = vadd.f32 0.0, %v1003
    %1005 = vdwg.mxu0
    %1006 = vmatpush.msra.mxu0 0.0
    %1007 = vmatpush.msra.mxu0 0.0
    %1008 = vmatpush.msra.mxu0 0.0
    %1009 = vmatpush.msra.mxu0 0.0
    %1010 = vmatpush.msra.mxu0 %v162
    %1011 = vmatpush.msra.mxu0 %v160
    %1012 = vmatpush.msra.mxu0 %v158
    %1013 = vmatpush.msra.mxu0 %v156
    %1014 = vmatpush.msra.mxu0 %v154
    %1015 = vmatpush.msra.mxu0 %v152
    %1016 = vmatpush.msra.mxu0 %v150
    %1017 = vmatpush.msra.mxu0 %v148
    %1018 = vmatpush.msra.mxu0 %v146
    %1019 = vmatpush.msra.mxu0 %v144
    %1020 = vmatpush.msra.mxu0 %v142
    %1021 = vmatpush.msra.mxu0 %v140
    %1022 = vmatmul.f32.gmra.mxu0 %v984
    %v1023 = vpop.f32.mrf.mxu0
    %v1024 = vadd.f32 0.0, %v1023
    %1025 = vdwg.mxu0
    %v1026 = vadd.f32 %v981, %v1004
    %v1027 = vadd.f32 %v982, %v1024
    %v1028 = vadd.f32 %v1026, %v598
    %v1029 = vadd.f32 %v1027, %v599
    %v1030 = vmax.f32 %v1028, 0.0
    %v1031 = vmax.f32 %v1029, 0.0
    %1032 = vmatpush.msra.mxu0 0.0
    %1033 = vmatpush.msra.mxu0 0.0
    %1034 = vmatpush.msra.mxu0 0.0
    %1035 = vmatpush.msra.mxu0 0.0
    %1036 = vmatpush.msra.mxu0 %v86
    %1037 = vmatpush.msra.mxu0 %v84
    %1038 = vmatpush.msra.mxu0 %v82
    %1039 = vmatpush.msra.mxu0 %v80
    %1040 = vmatpush.msra.mxu0 %v78
    %1041 = vmatpush.msra.mxu0 %v76
    %1042 = vmatpush.msra.mxu0 %v74
    %1043 = vmatpush.msra.mxu0 %v72
    %1044 = vmatpush.msra.mxu0 %v70
    %1045 = vmatpush.msra.mxu0 %v68
    %1046 = vmatpush.msra.mxu0 %v66
    %1047 = vmatpush.msra.mxu0 %v64
    %1048 = vmatmul.f32.gmra.mxu0 %v553
    %v1049 = vpop.f32.mrf.mxu0
    %v1050 = vadd.f32 0.0, %v1049
    %1051 = vdwg.mxu0
    %1052 = vmatpush.msra.mxu0 0.0
    %1053 = vmatpush.msra.mxu0 0.0
    %1054 = vmatpush.msra.mxu0 0.0
    %1055 = vmatpush.msra.mxu0 0.0
    %1056 = vmatpush.msra.mxu0 %v87
    %1057 = vmatpush.msra.mxu0 %v85
    %1058 = vmatpush.msra.mxu0 %v83
    %1059 = vmatpush.msra.mxu0 %v81
    %1060 = vmatpush.msra.mxu0 %v79
    %1061 = vmatpush.msra.mxu0 %v77
    %1062 = vmatpush.msra.mxu0 %v75
    %1063 = vmatpush.msra.mxu0 %v73
    %1064 = vmatpush.msra.mxu0 %v71
    %1065 = vmatpush.msra.mxu0 %v69
    %1066 = vmatpush.msra.mxu0 %v67
    %1067 = vmatpush.msra.mxu0 %v65
    %1068 = vmatmul.f32.gmra.mxu0 %v553
    %v1069 = vpop.f32.mrf.mxu0
    %v1070 = vadd.f32 0.0, %v1069
    %1071 = vdwg.mxu0
    %1072 = vmatpush.msra.mxu0 0.0
    %1073 = vmatpush.msra.mxu0 0.0
    %1074 = vmatpush.msra.mxu0 0.0
    %1075 = vmatpush.msra.mxu0 0.0
    %1076 = vmatpush.msra.mxu0 %v61
    %1077 = vmatpush.msra.mxu0 %v59
    %1078 = vmatpush.msra.mxu0 %v57
    %1079 = vmatpush.msra.mxu0 %v55
    %1080 = vmatpush.msra.mxu0 %v53
    %1081 = vmatpush.msra.mxu0 %v51
    %1082 = vmatpush.msra.mxu0 %v49
    %1083 = vmatpush.msra.mxu0 %v47
    %1084 = vmatpush.msra.mxu0 %v45
    %1085 = vmatpush.msra.mxu0 %v43
    %1086 = vmatpush.msra.mxu0 %v41
    %1087 = vmatpush.msra.mxu0 %v39
    %1088 = vmatmul.f32.gmra.mxu0 %v508
    %v1089 = vpop.f32.mrf.mxu0
    %v1090 = vadd.f32 %v1050, %v1089
    %1091 = vdwg.mxu0
    %1092 = vmatpush.msra.mxu0 0.0
    %1093 = vmatpush.msra.mxu0 0.0
    %1094 = vmatpush.msra.mxu0 0.0
    %1095 = vmatpush.msra.mxu0 0.0
    %1096 = vmatpush.msra.mxu0 %v62
    %1097 = vmatpush.msra.mxu0 %v60
    %1098 = vmatpush.msra.mxu0 %v58
    %1099 = vmatpush.msra.mxu0 %v56
    %1100 = vmatpush.msra.mxu0 %v54
    %1101 = vmatpush.msra.mxu0 %v52
    %1102 = vmatpush.msra.mxu0 %v50
    %1103 = vmatpush.msra.mxu0 %v48
    %1104 = vmatpush.msra.mxu0 %v46
    %1105 = vmatpush.msra.mxu0 %v44
    %1106 = vmatpush.msra.mxu0 %v42
    %1107 = vmatpush.msra.mxu0 %v40
    %1108 = vmatmul.f32.gmra.mxu0 %v508
    %v1109 = vpop.f32.mrf.mxu0
    %v1110 = vadd.f32 %v1070, %v1109
    %1111 = vdwg.mxu0
    %1112 = vmatpush.msra.mxu0 0.0
    %1113 = vmatpush.msra.mxu0 0.0
    %1114 = vmatpush.msra.mxu0 0.0
    %1115 = vmatpush.msra.mxu0 0.0
    %1116 = vmatpush.msra.mxu0 %v111
    %1117 = vmatpush.msra.mxu0 %v109
    %1118 = vmatpush.msra.mxu0 %v107
    %1119 = vmatpush.msra.mxu0 %v105
    %1120 = vmatpush.msra.mxu0 %v103
    %1121 = vmatpush.msra.mxu0 %v101
    %1122 = vmatpush.msra.mxu0 %v99
    %1123 = vmatpush.msra.mxu0 %v97
    %1124 = vmatpush.msra.mxu0 %v95
    %1125 = vmatpush.msra.mxu0 %v93
    %1126 = vmatpush.msra.mxu0 %v91
    %1127 = vmatpush.msra.mxu0 %v89
    %1128 = vmatmul.f32.gmra.mxu0 %v771
    %v1129 = vpop.f32.mrf.mxu0
    %v1130 = vadd.f32 0.0, %v1129
    %1131 = vdwg.mxu0
    %1132 = vmatpush.msra.mxu0 0.0
    %1133 = vmatpush.msra.mxu0 0.0
    %1134 = vmatpush.msra.mxu0 0.0
    %1135 = vmatpush.msra.mxu0 0.0
    %1136 = vmatpush.msra.mxu0 %v112
    %1137 = vmatpush.msra.mxu0 %v110
    %1138 = vmatpush.msra.mxu0 %v108
    %1139 = vmatpush.msra.mxu0 %v106
    %1140 = vmatpush.msra.mxu0 %v104
    %1141 = vmatpush.msra.mxu0 %v102
    %1142 = vmatpush.msra.mxu0 %v100
    %1143 = vmatpush.msra.mxu0 %v98
    %1144 = vmatpush.msra.mxu0 %v96
    %1145 = vmatpush.msra.mxu0 %v94
    %1146 = vmatpush.msra.mxu0 %v92
    %1147 = vmatpush.msra.mxu0 %v90
    %1148 = vmatmul.f32.gmra.mxu0 %v771
    %v1149 = vpop.f32.mrf.mxu0
    %v1150 = vadd.f32 0.0, %v1149
    %1151 = vdwg.mxu0
    %v1152 = vadd.f32 %v1090, %v1130
    %v1153 = vadd.f32 %v1110, %v1150
    %1154 = vmatpush.msra.mxu0 0.0
    %1155 = vmatpush.msra.mxu0 0.0
    %1156 = vmatpush.msra.mxu0 0.0
    %1157 = vmatpush.msra.mxu0 0.0
    %1158 = vmatpush.msra.mxu0 %v136
    %1159 = vmatpush.msra.mxu0 %v134
    %1160 = vmatpush.msra.mxu0 %v132
    %1161 = vmatpush.msra.mxu0 %v130
    %1162 = vmatpush.msra.mxu0 %v128
    %1163 = vmatpush.msra.mxu0 %v126
    %1164 = vmatpush.msra.mxu0 %v124
    %1165 = vmatpush.msra.mxu0 %v122
    %1166 = vmatpush.msra.mxu0 %v120
    %1167 = vmatpush.msra.mxu0 %v118
    %1168 = vmatpush.msra.mxu0 %v116
    %1169 = vmatpush.msra.mxu0 %v114
    %1170 = vmatmul.f32.gmra.mxu0 %v984
    %v1171 = vpop.f32.mrf.mxu0
    %v1172 = vadd.f32 0.0, %v1171
    %1173 = vdwg.mxu0
    %1174 = vmatpush.msra.mxu0 0.0
    %1175 = vmatpush.msra.mxu0 0.0
    %1176 = vmatpush.msra.mxu0 0.0
    %1177 = vmatpush.msra.mxu0 0.0
    %1178 = vmatpush.msra.mxu0 %v137
    %1179 = vmatpush.msra.mxu0 %v135
    %1180 = vmatpush.msra.mxu0 %v133
    %1181 = vmatpush.msra.mxu0 %v131
    %1182 = vmatpush.msra.mxu0 %v129
    %1183 = vmatpush.msra.mxu0 %v127
    %1184 = vmatpush.msra.mxu0 %v125
    %1185 = vmatpush.msra.mxu0 %v123
    %1186 = vmatpush.msra.mxu0 %v121
    %1187 = vmatpush.msra.mxu0 %v119
    %1188 = vmatpush.msra.mxu0 %v117
    %1189 = vmatpush.msra.mxu0 %v115
    %1190 = vmatmul.f32.gmra.mxu0 %v984
    %v1191 = vpop.f32.mrf.mxu0
    %v1192 = vadd.f32 0.0, %v1191
    %1193 = vdwg.mxu0
    %v1194 = vadd.f32 %v1152, %v1172
    %v1195 = vadd.f32 %v1153, %v1192
    %v1196 = vrot.slane %v374, 1
    %v1197 = vsel %vm375, %v1196, 0
    %1199 = vmatpush.msra.mxu0 0.0
    %1200 = vmatpush.msra.mxu0 0.0
    %1201 = vmatpush.msra.mxu0 0.0
    %1202 = vmatpush.msra.mxu0 0.0
    %1203 = vmatpush.msra.mxu0 %v161
    %1204 = vmatpush.msra.mxu0 %v159
    %1205 = vmatpush.msra.mxu0 %v157
    %1206 = vmatpush.msra.mxu0 %v155
    %1207 = vmatpush.msra.mxu0 %v153
    %1208 = vmatpush.msra.mxu0 %v151
    %1209 = vmatpush.msra.mxu0 %v149
    %1210 = vmatpush.msra.mxu0 %v147
    %1211 = vmatpush.msra.mxu0 %v145
    %1212 = vmatpush.msra.mxu0 %v143
    %1213 = vmatpush.msra.mxu0 %v141
    %1214 = vmatpush.msra.mxu0 %v139
    %1215 = vmatmul.f32.gmra.mxu0 %v1197
    %v1216 = vpop.f32.mrf.mxu0
    %v1217 = vadd.f32 0.0, %v1216
    %1218 = vdwg.mxu0
    %1219 = vmatpush.msra.mxu0 0.0
    %1220 = vmatpush.msra.mxu0 0.0
    %1221 = vmatpush.msra.mxu0 0.0
    %1222 = vmatpush.msra.mxu0 0.0
    %1223 = vmatpush.msra.mxu0 %v162
    %1224 = vmatpush.msra.mxu0 %v160
    %1225 = vmatpush.msra.mxu0 %v158
    %1226 = vmatpush.msra.mxu0 %v156
    %1227 = vmatpush.msra.mxu0 %v154
    %1228 = vmatpush.msra.mxu0 %v152
    %1229 = vmatpush.msra.mxu0 %v150
    %1230 = vmatpush.msra.mxu0 %v148
    %1231 = vmatpush.msra.mxu0 %v146
    %1232 = vmatpush.msra.mxu0 %v144
    %1233 = vmatpush.msra.mxu0 %v142
    %1234 = vmatpush.msra.mxu0 %v140
    %1235 = vmatmul.f32.gmra.mxu0 %v1197
    %v1236 = vpop.f32.mrf.mxu0
    %v1237 = vadd.f32 0.0, %v1236
    %1238 = vdwg.mxu0
    %v1239 = vadd.f32 %v1194, %v1217
    %v1240 = vadd.f32 %v1195, %v1237
    %v1241 = vadd.f32 %v1239, %v598
    %v1242 = vadd.f32 %v1240, %v599
    %v1243 = vmax.f32 %v1241, 0.0
    %v1244 = vmax.f32 %v1242, 0.0
    %v1245 = vmax.f32 %v604, %v605
    %v1246 = vmax.f32 %v817, %v818
    %v1247 = vmax.f32 %v1245, %v1246
    %v1248 = vmax.f32 %v1030, %v1031
    %v1249 = vmax.f32 %v1243, %v1244
    %v1250 = vmax.f32 %v1248, %v1249
    %vm1251 = vcmask 687104
    %v1253 = vsel %vm1251, %v1250, 0
    %vm1255 = vcmask 1043456
    %v1257 = vsel %vm1255, %v206, 0
    %v1260 = vsel %vm1255, %v207, 0
    %1262 = vmatpush.msra.mxu0 0.0
    %1263 = vmatpush.msra.mxu0 0.0
    %1264 = vmatpush.msra.mxu0 0.0
    %1265 = vmatpush.msra.mxu0 0.0
    %1266 = vmatpush.msra.mxu0 0.0
    %1267 = vmatpush.msra.mxu0 %v1257
    %1268 = vmatpush.msra.mxu0 %v204
    %1269 = vmatpush.msra.mxu0 %v202
    %1270 = vmatpush.msra.mxu0 %v200
    %1271 = vmatpush.msra.mxu0 %v198
    %1272 = vmatpush.msra.mxu0 %v196
    %1273 = vmatpush.msra.mxu0 %v194
    %1274 = vmatpush.msra.mxu0 %v192
    %1275 = vmatpush.msra.mxu0 %v190
    %1276 = vmatpush.msra.mxu0 %v188
    %1277 = vmatpush.msra.mxu0 %v186
    %1278 = vmatmul.f32.gmra.mxu0 %v1253
    %v1279 = vpop.f32.mrf.mxu0
    %v1280 = vadd.f32 0.0, %v1279
    %1281 = vdwg.mxu0
    %1282 = vmatpush.msra.mxu0 0.0
    %1283 = vmatpush.msra.mxu0 0.0
    %1284 = vmatpush.msra.mxu0 0.0
    %1285 = vmatpush.msra.mxu0 0.0
    %1286 = vmatpush.msra.mxu0 0.0
    %1287 = vmatpush.msra.mxu0 %v1260
    %1288 = vmatpush.msra.mxu0 %v205
    %1289 = vmatpush.msra.mxu0 %v203
    %1290 = vmatpush.msra.mxu0 %v201
    %1291 = vmatpush.msra.mxu0 %v199
    %1292 = vmatpush.msra.mxu0 %v197
    %1293 = vmatpush.msra.mxu0 %v195
    %1294 = vmatpush.msra.mxu0 %v193
    %1295 = vmatpush.msra.mxu0 %v191
    %1296 = vmatpush.msra.mxu0 %v189
    %1297 = vmatpush.msra.mxu0 %v187
    %1298 = vmatmul.f32.gmra.mxu0 %v1253
    %v1299 = vpop.f32.mrf.mxu0
    %v1300 = vadd.f32 0.0, %v1299
    %1301 = vdwg.mxu0
    %v1303 = vsel %vm1251, %v1247, 0
    %v1306 = vsel %vm1255, %v183, 0
    %v1309 = vsel %vm1255, %v184, 0
    %1311 = vmatpush.msra.mxu0 0.0
    %1312 = vmatpush.msra.mxu0 0.0
    %1313 = vmatpush.msra.mxu0 0.0
    %1314 = vmatpush.msra.mxu0 0.0
    %1315 = vmatpush.msra.mxu0 0.0
    %1316 = vmatpush.msra.mxu0 %v1306
    %1317 = vmatpush.msra.mxu0 %v181
    %1318 = vmatpush.msra.mxu0 %v179
    %1319 = vmatpush.msra.mxu0 %v177
    %1320 = vmatpush.msra.mxu0 %v175
    %1321 = vmatpush.msra.mxu0 %v173
    %1322 = vmatpush.msra.mxu0 %v171
    %1323 = vmatpush.msra.mxu0 %v169
    %1324 = vmatpush.msra.mxu0 %v167
    %1325 = vmatpush.msra.mxu0 %v165
    %1326 = vmatpush.msra.mxu0 %v163
    %1327 = vmatmul.f32.gmra.mxu0 %v1303
    %v1328 = vpop.f32.mrf.mxu0
    %v1329 = vadd.f32 %v1280, %v1328
    %1330 = vdwg.mxu0
    %1331 = vmatpush.msra.mxu0 0.0
    %1332 = vmatpush.msra.mxu0 0.0
    %1333 = vmatpush.msra.mxu0 0.0
    %1334 = vmatpush.msra.mxu0 0.0
    %1335 = vmatpush.msra.mxu0 0.0
    %1336 = vmatpush.msra.mxu0 %v1309
    %1337 = vmatpush.msra.mxu0 %v182
    %1338 = vmatpush.msra.mxu0 %v180
    %1339 = vmatpush.msra.mxu0 %v178
    %1340 = vmatpush.msra.mxu0 %v176
    %1341 = vmatpush.msra.mxu0 %v174
    %1342 = vmatpush.msra.mxu0 %v172
    %1343 = vmatpush.msra.mxu0 %v170
    %1344 = vmatpush.msra.mxu0 %v168
    %1345 = vmatpush.msra.mxu0 %v166
    %1346 = vmatpush.msra.mxu0 %v164
    %1347 = vmatmul.f32.gmra.mxu0 %v1303
    %v1348 = vpop.f32.mrf.mxu0
    %v1349 = vadd.f32 %v1300, %v1348
    %1350 = vdwg.mxu0
    %v1351 = vrot.slane %v1247, 1
    %v1352 = vsel %vm1251, %v1351, 0
    %v1355 = vsel %vm1255, %v229, 0
    %v1358 = vsel %vm1255, %v230, 0
    %1360 = vmatpush.msra.mxu0 0.0
    %1361 = vmatpush.msra.mxu0 0.0
    %1362 = vmatpush.msra.mxu0 0.0
    %1363 = vmatpush.msra.mxu0 0.0
    %1364 = vmatpush.msra.mxu0 0.0
    %1365 = vmatpush.msra.mxu0 %v1355
    %1366 = vmatpush.msra.mxu0 %v227
    %1367 = vmatpush.msra.mxu0 %v225
    %1368 = vmatpush.msra.mxu0 %v223
    %1369 = vmatpush.msra.mxu0 %v221
    %1370 = vmatpush.msra.mxu0 %v219
    %1371 = vmatpush.msra.mxu0 %v217
    %1372 = vmatpush.msra.mxu0 %v215
    %1373 = vmatpush.msra.mxu0 %v213
    %1374 = vmatpush.msra.mxu0 %v211
    %1375 = vmatpush.msra.mxu0 %v209
    %1376 = vmatmul.f32.gmra.mxu0 %v1352
    %v1377 = vpop.f32.mrf.mxu0
    %v1378 = vadd.f32 0.0, %v1377
    %1379 = vdwg.mxu0
    %1380 = vmatpush.msra.mxu0 0.0
    %1381 = vmatpush.msra.mxu0 0.0
    %1382 = vmatpush.msra.mxu0 0.0
    %1383 = vmatpush.msra.mxu0 0.0
    %1384 = vmatpush.msra.mxu0 0.0
    %1385 = vmatpush.msra.mxu0 %v1358
    %1386 = vmatpush.msra.mxu0 %v228
    %1387 = vmatpush.msra.mxu0 %v226
    %1388 = vmatpush.msra.mxu0 %v224
    %1389 = vmatpush.msra.mxu0 %v222
    %1390 = vmatpush.msra.mxu0 %v220
    %1391 = vmatpush.msra.mxu0 %v218
    %1392 = vmatpush.msra.mxu0 %v216
    %1393 = vmatpush.msra.mxu0 %v214
    %1394 = vmatpush.msra.mxu0 %v212
    %1395 = vmatpush.msra.mxu0 %v210
    %1396 = vmatmul.f32.gmra.mxu0 %v1352
    %v1397 = vpop.f32.mrf.mxu0
    %v1398 = vadd.f32 0.0, %v1397
    %1399 = vdwg.mxu0
    %v1400 = vadd.f32 %v1329, %v1378
    %v1401 = vadd.f32 %v1349, %v1398
    %v1402 = vrot.slane %v1250, 1
    %v1403 = vsel %vm1251, %v1402, 0
    %v1406 = vsel %vm1255, %v252, 0
    %v1409 = vsel %vm1255, %v253, 0
    %1411 = vmatpush.msra.mxu0 0.0
    %1412 = vmatpush.msra.mxu0 0.0
    %1413 = vmatpush.msra.mxu0 0.0
    %1414 = vmatpush.msra.mxu0 0.0
    %1415 = vmatpush.msra.mxu0 0.0
    %1416 = vmatpush.msra.mxu0 %v1406
    %1417 = vmatpush.msra.mxu0 %v250
    %1418 = vmatpush.msra.mxu0 %v248
    %1419 = vmatpush.msra.mxu0 %v246
    %1420 = vmatpush.msra.mxu0 %v244
    %1421 = vmatpush.msra.mxu0 %v242
    %1422 = vmatpush.msra.mxu0 %v240
    %1423 = vmatpush.msra.mxu0 %v238
    %1424 = vmatpush.msra.mxu0 %v236
    %1425 = vmatpush.msra.mxu0 %v234
    %1426 = vmatpush.msra.mxu0 %v232
    %1427 = vmatmul.f32.gmra.mxu0 %v1403
    %v1428 = vpop.f32.mrf.mxu0
    %v1429 = vadd.f32 0.0, %v1428
    %1430 = vdwg.mxu0
    %1431 = vmatpush.msra.mxu0 0.0
    %1432 = vmatpush.msra.mxu0 0.0
    %1433 = vmatpush.msra.mxu0 0.0
    %1434 = vmatpush.msra.mxu0 0.0
    %1435 = vmatpush.msra.mxu0 0.0
    %1436 = vmatpush.msra.mxu0 %v1409
    %1437 = vmatpush.msra.mxu0 %v251
    %1438 = vmatpush.msra.mxu0 %v249
    %1439 = vmatpush.msra.mxu0 %v247
    %1440 = vmatpush.msra.mxu0 %v245
    %1441 = vmatpush.msra.mxu0 %v243
    %1442 = vmatpush.msra.mxu0 %v241
    %1443 = vmatpush.msra.mxu0 %v239
    %1444 = vmatpush.msra.mxu0 %v237
    %1445 = vmatpush.msra.mxu0 %v235
    %1446 = vmatpush.msra.mxu0 %v233
    %1447 = vmatmul.f32.gmra.mxu0 %v1403
    %v1448 = vpop.f32.mrf.mxu0
    %v1449 = vadd.f32 0.0, %v1448
    %1450 = vdwg.mxu0
    %v1451 = vadd.f32 %v1400, %v1429
    %v1452 = vadd.f32 %v1401, %v1449
    %v1453 = vrot.slane %v1247, 2
    %v1454 = vsel %vm1251, %v1453, 0
    %v1457 = vsel %vm1255, %v275, 0
    %v1460 = vsel %vm1255, %v276, 0
    %1462 = vmatpush.msra.mxu0 0.0
    %1463 = vmatpush.msra.mxu0 0.0
    %1464 = vmatpush.msra.mxu0 0.0
    %1465 = vmatpush.msra.mxu0 0.0
    %1466 = vmatpush.msra.mxu0 0.0
    %1467 = vmatpush.msra.mxu0 %v1457
    %1468 = vmatpush.msra.mxu0 %v273
    %1469 = vmatpush.msra.mxu0 %v271
    %1470 = vmatpush.msra.mxu0 %v269
    %1471 = vmatpush.msra.mxu0 %v267
    %1472 = vmatpush.msra.mxu0 %v265
    %1473 = vmatpush.msra.mxu0 %v263
    %1474 = vmatpush.msra.mxu0 %v261
    %1475 = vmatpush.msra.mxu0 %v259
    %1476 = vmatpush.msra.mxu0 %v257
    %1477 = vmatpush.msra.mxu0 %v255
    %1478 = vmatmul.f32.gmra.mxu0 %v1454
    %v1479 = vpop.f32.mrf.mxu0
    %v1480 = vadd.f32 0.0, %v1479
    %1481 = vdwg.mxu0
    %1482 = vmatpush.msra.mxu0 0.0
    %1483 = vmatpush.msra.mxu0 0.0
    %1484 = vmatpush.msra.mxu0 0.0
    %1485 = vmatpush.msra.mxu0 0.0
    %1486 = vmatpush.msra.mxu0 0.0
    %1487 = vmatpush.msra.mxu0 %v1460
    %1488 = vmatpush.msra.mxu0 %v274
    %1489 = vmatpush.msra.mxu0 %v272
    %1490 = vmatpush.msra.mxu0 %v270
    %1491 = vmatpush.msra.mxu0 %v268
    %1492 = vmatpush.msra.mxu0 %v266
    %1493 = vmatpush.msra.mxu0 %v264
    %1494 = vmatpush.msra.mxu0 %v262
    %1495 = vmatpush.msra.mxu0 %v260
    %1496 = vmatpush.msra.mxu0 %v258
    %1497 = vmatpush.msra.mxu0 %v256
    %1498 = vmatmul.f32.gmra.mxu0 %v1454
    %v1499 = vpop.f32.mrf.mxu0
    %v1500 = vadd.f32 0.0, %v1499
    %1501 = vdwg.mxu0
    %v1502 = vadd.f32 %v1451, %v1480
    %v1503 = vadd.f32 %v1452, %v1500
    %v1505 = vperm.slane %v332, 0
    %v1506 = vperm.slane %v332, 1
    %v1509 = vadd.f32 %v1502, %v1505
    %v1510 = vadd.f32 %v1503, %v1506
    %v1511 = vmax.f32 %v1509, 0.0
    %v1512 = vmax.f32 %v1510, 0.0
    %1513 = vmatpush.msra.mxu0 0.0
    %1514 = vmatpush.msra.mxu0 0.0
    %1515 = vmatpush.msra.mxu0 0.0
    %1516 = vmatpush.msra.mxu0 0.0
    %1517 = vmatpush.msra.mxu0 0.0
    %1518 = vmatpush.msra.mxu0 %v1257
    %1519 = vmatpush.msra.mxu0 %v204
    %1520 = vmatpush.msra.mxu0 %v202
    %1521 = vmatpush.msra.mxu0 %v200
    %1522 = vmatpush.msra.mxu0 %v198
    %1523 = vmatpush.msra.mxu0 %v196
    %1524 = vmatpush.msra.mxu0 %v194
    %1525 = vmatpush.msra.mxu0 %v192
    %1526 = vmatpush.msra.mxu0 %v190
    %1527 = vmatpush.msra.mxu0 %v188
    %1528 = vmatpush.msra.mxu0 %v186
    %1529 = vmatmul.f32.gmra.mxu0 %v1352
    %v1530 = vpop.f32.mrf.mxu0
    %v1531 = vadd.f32 0.0, %v1530
    %1532 = vdwg.mxu0
    %1533 = vmatpush.msra.mxu0 0.0
    %1534 = vmatpush.msra.mxu0 0.0
    %1535 = vmatpush.msra.mxu0 0.0
    %1536 = vmatpush.msra.mxu0 0.0
    %1537 = vmatpush.msra.mxu0 0.0
    %1538 = vmatpush.msra.mxu0 %v1260
    %1539 = vmatpush.msra.mxu0 %v205
    %1540 = vmatpush.msra.mxu0 %v203
    %1541 = vmatpush.msra.mxu0 %v201
    %1542 = vmatpush.msra.mxu0 %v199
    %1543 = vmatpush.msra.mxu0 %v197
    %1544 = vmatpush.msra.mxu0 %v195
    %1545 = vmatpush.msra.mxu0 %v193
    %1546 = vmatpush.msra.mxu0 %v191
    %1547 = vmatpush.msra.mxu0 %v189
    %1548 = vmatpush.msra.mxu0 %v187
    %1549 = vmatmul.f32.gmra.mxu0 %v1352
    %v1550 = vpop.f32.mrf.mxu0
    %v1551 = vadd.f32 0.0, %v1550
    %1552 = vdwg.mxu0
    %1553 = vmatpush.msra.mxu0 0.0
    %1554 = vmatpush.msra.mxu0 0.0
    %1555 = vmatpush.msra.mxu0 0.0
    %1556 = vmatpush.msra.mxu0 0.0
    %1557 = vmatpush.msra.mxu0 0.0
    %1558 = vmatpush.msra.mxu0 %v1306
    %1559 = vmatpush.msra.mxu0 %v181
    %1560 = vmatpush.msra.mxu0 %v179
    %1561 = vmatpush.msra.mxu0 %v177
    %1562 = vmatpush.msra.mxu0 %v175
    %1563 = vmatpush.msra.mxu0 %v173
    %1564 = vmatpush.msra.mxu0 %v171
    %1565 = vmatpush.msra.mxu0 %v169
    %1566 = vmatpush.msra.mxu0 %v167
    %1567 = vmatpush.msra.mxu0 %v165
    %1568 = vmatpush.msra.mxu0 %v163
    %1569 = vmatmul.f32.gmra.mxu0 %v1253
    %v1570 = vpop.f32.mrf.mxu0
    %v1571 = vadd.f32 %v1531, %v1570
    %1572 = vdwg.mxu0
    %1573 = vmatpush.msra.mxu0 0.0
    %1574 = vmatpush.msra.mxu0 0.0
    %1575 = vmatpush.msra.mxu0 0.0
    %1576 = vmatpush.msra.mxu0 0.0
    %1577 = vmatpush.msra.mxu0 0.0
    %1578 = vmatpush.msra.mxu0 %v1309
    %1579 = vmatpush.msra.mxu0 %v182
    %1580 = vmatpush.msra.mxu0 %v180
    %1581 = vmatpush.msra.mxu0 %v178
    %1582 = vmatpush.msra.mxu0 %v176
    %1583 = vmatpush.msra.mxu0 %v174
    %1584 = vmatpush.msra.mxu0 %v172
    %1585 = vmatpush.msra.mxu0 %v170
    %1586 = vmatpush.msra.mxu0 %v168
    %1587 = vmatpush.msra.mxu0 %v166
    %1588 = vmatpush.msra.mxu0 %v164
    %1589 = vmatmul.f32.gmra.mxu0 %v1253
    %v1590 = vpop.f32.mrf.mxu0
    %v1591 = vadd.f32 %v1551, %v1590
    %1592 = vdwg.mxu0
    %1593 = vmatpush.msra.mxu0 0.0
    %1594 = vmatpush.msra.mxu0 0.0
    %1595 = vmatpush.msra.mxu0 0.0
    %1596 = vmatpush.msra.mxu0 0.0
    %1597 = vmatpush.msra.mxu0 0.0
    %1598 = vmatpush.msra.mxu0 %v1355
    %1599 = vmatpush.msra.mxu0 %v227
    %1600 = vmatpush.msra.mxu0 %v225
    %1601 = vmatpush.msra.mxu0 %v223
    %1602 = vmatpush.msra.mxu0 %v221
    %1603 = vmatpush.msra.mxu0 %v219
    %1604 = vmatpush.msra.mxu0 %v217
    %1605 = vmatpush.msra.mxu0 %v215
    %1606 = vmatpush.msra.mxu0 %v213
    %1607 = vmatpush.msra.mxu0 %v211
    %1608 = vmatpush.msra.mxu0 %v209
    %1609 = vmatmul.f32.gmra.mxu0 %v1403
    %v1610 = vpop.f32.mrf.mxu0
    %v1611 = vadd.f32 0.0, %v1610
    %1612 = vdwg.mxu0
    %1613 = vmatpush.msra.mxu0 0.0
    %1614 = vmatpush.msra.mxu0 0.0
    %1615 = vmatpush.msra.mxu0 0.0
    %1616 = vmatpush.msra.mxu0 0.0
    %1617 = vmatpush.msra.mxu0 0.0
    %1618 = vmatpush.msra.mxu0 %v1358
    %1619 = vmatpush.msra.mxu0 %v228
    %1620 = vmatpush.msra.mxu0 %v226
    %1621 = vmatpush.msra.mxu0 %v224
    %1622 = vmatpush.msra.mxu0 %v222
    %1623 = vmatpush.msra.mxu0 %v220
    %1624 = vmatpush.msra.mxu0 %v218
    %1625 = vmatpush.msra.mxu0 %v216
    %1626 = vmatpush.msra.mxu0 %v214
    %1627 = vmatpush.msra.mxu0 %v212
    %1628 = vmatpush.msra.mxu0 %v210
    %1629 = vmatmul.f32.gmra.mxu0 %v1403
    %v1630 = vpop.f32.mrf.mxu0
    %v1631 = vadd.f32 0.0, %v1630
    %1632 = vdwg.mxu0
    %v1633 = vadd.f32 %v1571, %v1611
    %v1634 = vadd.f32 %v1591, %v1631
    %1635 = vmatpush.msra.mxu0 0.0
    %1636 = vmatpush.msra.mxu0 0.0
    %1637 = vmatpush.msra.mxu0 0.0
    %1638 = vmatpush.msra.mxu0 0.0
    %1639 = vmatpush.msra.mxu0 0.0
    %1640 = vmatpush.msra.mxu0 %v1406
    %1641 = vmatpush.msra.mxu0 %v250
    %1642 = vmatpush.msra.mxu0 %v248
    %1643 = vmatpush.msra.mxu0 %v246
    %1644 = vmatpush.msra.mxu0 %v244
    %1645 = vmatpush.msra.mxu0 %v242
    %1646 = vmatpush.msra.mxu0 %v240
    %1647 = vmatpush.msra.mxu0 %v238
    %1648 = vmatpush.msra.mxu0 %v236
    %1649 = vmatpush.msra.mxu0 %v234
    %1650 = vmatpush.msra.mxu0 %v232
    %1651 = vmatmul.f32.gmra.mxu0 %v1454
    %v1652 = vpop.f32.mrf.mxu0
    %v1653 = vadd.f32 0.0, %v1652
    %1654 = vdwg.mxu0
    %1655 = vmatpush.msra.mxu0 0.0
    %1656 = vmatpush.msra.mxu0 0.0
    %1657 = vmatpush.msra.mxu0 0.0
    %1658 = vmatpush.msra.mxu0 0.0
    %1659 = vmatpush.msra.mxu0 0.0
    %1660 = vmatpush.msra.mxu0 %v1409
    %1661 = vmatpush.msra.mxu0 %v251
    %1662 = vmatpush.msra.mxu0 %v249
    %1663 = vmatpush.msra.mxu0 %v247
    %1664 = vmatpush.msra.mxu0 %v245
    %1665 = vmatpush.msra.mxu0 %v243
    %1666 = vmatpush.msra.mxu0 %v241
    %1667 = vmatpush.msra.mxu0 %v239
    %1668 = vmatpush.msra.mxu0 %v237
    %1669 = vmatpush.msra.mxu0 %v235
    %1670 = vmatpush.msra.mxu0 %v233
    %1671 = vmatmul.f32.gmra.mxu0 %v1454
    %v1672 = vpop.f32.mrf.mxu0
    %v1673 = vadd.f32 0.0, %v1672
    %1674 = vdwg.mxu0
    %v1675 = vadd.f32 %v1633, %v1653
    %v1676 = vadd.f32 %v1634, %v1673
    %v1677 = vrot.slane %v1250, 2
    %v1678 = vsel %vm1251, %v1677, 0
    %1680 = vmatpush.msra.mxu0 0.0
    %1681 = vmatpush.msra.mxu0 0.0
    %1682 = vmatpush.msra.mxu0 0.0
    %1683 = vmatpush.msra.mxu0 0.0
    %1684 = vmatpush.msra.mxu0 0.0
    %1685 = vmatpush.msra.mxu0 %v1457
    %1686 = vmatpush.msra.mxu0 %v273
    %1687 = vmatpush.msra.mxu0 %v271
    %1688 = vmatpush.msra.mxu0 %v269
    %1689 = vmatpush.msra.mxu0 %v267
    %1690 = vmatpush.msra.mxu0 %v265
    %1691 = vmatpush.msra.mxu0 %v263
    %1692 = vmatpush.msra.mxu0 %v261
    %1693 = vmatpush.msra.mxu0 %v259
    %1694 = vmatpush.msra.mxu0 %v257
    %1695 = vmatpush.msra.mxu0 %v255
    %1696 = vmatmul.f32.gmra.mxu0 %v1678
    %v1697 = vpop.f32.mrf.mxu0
    %v1698 = vadd.f32 0.0, %v1697
    %1699 = vdwg.mxu0
    %1700 = vmatpush.msra.mxu0 0.0
    %1701 = vmatpush.msra.mxu0 0.0
    %1702 = vmatpush.msra.mxu0 0.0
    %1703 = vmatpush.msra.mxu0 0.0
    %1704 = vmatpush.msra.mxu0 0.0
    %1705 = vmatpush.msra.mxu0 %v1460
    %1706 = vmatpush.msra.mxu0 %v274
    %1707 = vmatpush.msra.mxu0 %v272
    %1708 = vmatpush.msra.mxu0 %v270
    %1709 = vmatpush.msra.mxu0 %v268
    %1710 = vmatpush.msra.mxu0 %v266
    %1711 = vmatpush.msra.mxu0 %v264
    %1712 = vmatpush.msra.mxu0 %v262
    %1713 = vmatpush.msra.mxu0 %v260
    %1714 = vmatpush.msra.mxu0 %v258
    %1715 = vmatpush.msra.mxu0 %v256
    %1716 = vmatmul.f32.gmra.mxu0 %v1678
    %v1717 = vpop.f32.mrf.mxu0
    %v1718 = vadd.f32 0.0, %v1717
    %1719 = vdwg.mxu0
    %v1720 = vadd.f32 %v1675, %v1698
    %v1721 = vadd.f32 %v1676, %v1718
    %v1722 = vadd.f32 %v1720, %v1505
    %v1723 = vadd.f32 %v1721, %v1506
    %v1724 = vmax.f32 %v1722, 0.0
    %v1725 = vmax.f32 %v1723, 0.0
    %v1726 = vmax.f32 %v1511, %v1512
    %v1727 = vmax.f32 %v1724, %v1725
    %v1728 = vmax.f32 %v1726, %v1727
    %v1730 = vrot.slane %v1728, 1
    %vm1731 = vcmask 654336
    %v1732 = vsel %vm1731, %v1730, 0
    %1734 = vmatpush.msra.mxu0 0.0
    %1735 = vmatpush.msra.mxu0 0.0
    %1736 = vmatpush.msra.mxu0 0.0
    %1737 = vmatpush.msra.mxu0 0.0
    %1738 = vmatpush.msra.mxu0 0.0
    %1739 = vmatpush.msra.mxu0 0.0
    %1740 = vmatpush.msra.mxu0 %v297
    %1741 = vmatpush.msra.mxu0 %v296
    %1742 = vmatpush.msra.mxu0 %v295
    %1743 = vmatpush.msra.mxu0 %v294
    %1744 = vmatpush.msra.mxu0 %v293
    %1745 = vmatpush.msra.mxu0 %v292
    %1746 = vmatpush.msra.mxu0 %v291
    %1747 = vmatpush.msra.mxu0 %v290
    %1748 = vmatpush.msra.mxu0 %v289
    %1749 = vmatpush.msra.mxu0 %v288
    %1750 = vmatmul.f32.gmra.mxu0 %v1732
    %v1751 = vpop.f32.mrf.mxu0
    %v1752 = vadd.f32 0.0, %v1751
    %1753 = vdwg.mxu0
    %v1754 = vsel %vm1731, %v1728, 0
    %1756 = vmatpush.msra.mxu0 0.0
    %1757 = vmatpush.msra.mxu0 0.0
    %1758 = vmatpush.msra.mxu0 0.0
    %1759 = vmatpush.msra.mxu0 0.0
    %1760 = vmatpush.msra.mxu0 0.0
    %1761 = vmatpush.msra.mxu0 0.0
    %1762 = vmatpush.msra.mxu0 %v286
    %1763 = vmatpush.msra.mxu0 %v285
    %1764 = vmatpush.msra.mxu0 %v284
    %1765 = vmatpush.msra.mxu0 %v283
    %1766 = vmatpush.msra.mxu0 %v282
    %1767 = vmatpush.msra.mxu0 %v281
    %1768 = vmatpush.msra.mxu0 %v280
    %1769 = vmatpush.msra.mxu0 %v279
    %1770 = vmatpush.msra.mxu0 %v278
    %1771 = vmatpush.msra.mxu0 %v277
    %1772 = vmatmul.f32.gmra.mxu0 %v1754
    %v1773 = vpop.f32.mrf.mxu0
    %v1774 = vadd.f32 %v1752, %v1773
    %1775 = vdwg.mxu0
    %v1776 = vrot.slane %v1728, 2
    %v1777 = vsel %vm1731, %v1776, 0
    %1779 = vmatpush.msra.mxu0 0.0
    %1780 = vmatpush.msra.mxu0 0.0
    %1781 = vmatpush.msra.mxu0 0.0
    %1782 = vmatpush.msra.mxu0 0.0
    %1783 = vmatpush.msra.mxu0 0.0
    %1784 = vmatpush.msra.mxu0 0.0
    %1785 = vmatpush.msra.mxu0 %v308
    %1786 = vmatpush.msra.mxu0 %v307
    %1787 = vmatpush.msra.mxu0 %v306
    %1788 = vmatpush.msra.mxu0 %v305
    %1789 = vmatpush.msra.mxu0 %v304
    %1790 = vmatpush.msra.mxu0 %v303
    %1791 = vmatpush.msra.mxu0 %v302
    %1792 = vmatpush.msra.mxu0 %v301
    %1793 = vmatpush.msra.mxu0 %v300
    %1794 = vmatpush.msra.mxu0 %v299
    %1795 = vmatmul.f32.gmra.mxu0 %v1777
    %v1796 = vpop.f32.mrf.mxu0
    %v1797 = vadd.f32 0.0, %v1796
    %1798 = vdwg.mxu0
    %v1799 = vadd.f32 %v1774, %v1797
    %v1800 = vrot.slane %v1728, 3
    %v1801 = vsel %vm1731, %v1800, 0
    %1803 = vmatpush.msra.mxu0 0.0
    %1804 = vmatpush.msra.mxu0 0.0
    %1805 = vmatpush.msra.mxu0 0.0
    %1806 = vmatpush.msra.mxu0 0.0
    %1807 = vmatpush.msra.mxu0 0.0
    %1808 = vmatpush.msra.mxu0 0.0
    %1809 = vmatpush.msra.mxu0 %v319
    %1810 = vmatpush.msra.mxu0 %v318
    %1811 = vmatpush.msra.mxu0 %v317
    %1812 = vmatpush.msra.mxu0 %v316
    %1813 = vmatpush.msra.mxu0 %v315
    %1814 = vmatpush.msra.mxu0 %v314
    %1815 = vmatpush.msra.mxu0 %v313
    %1816 = vmatpush.msra.mxu0 %v312
    %1817 = vmatpush.msra.mxu0 %v311
    %1818 = vmatpush.msra.mxu0 %v310
    %1819 = vmatmul.f32.gmra.mxu0 %v1801
    %v1820 = vpop.f32.mrf.mxu0
    %v1821 = vadd.f32 0.0, %v1820
    %1822 = vdwg.mxu0
    %v1823 = vadd.f32 %v1799, %v1821
    %v1824 = vrot.slane %v1728, 4
    %v1825 = vsel %vm1731, %v1824, 0
    %1827 = vmatpush.msra.mxu0 0.0
    %1828 = vmatpush.msra.mxu0 0.0
    %1829 = vmatpush.msra.mxu0 0.0
    %1830 = vmatpush.msra.mxu0 0.0
    %1831 = vmatpush.msra.mxu0 0.0
    %1832 = vmatpush.msra.mxu0 0.0
    %1833 = vmatpush.msra.mxu0 %v330
    %1834 = vmatpush.msra.mxu0 %v329
    %1835 = vmatpush.msra.mxu0 %v328
    %1836 = vmatpush.msra.mxu0 %v327
    %1837 = vmatpush.msra.mxu0 %v326
    %1838 = vmatpush.msra.mxu0 %v325
    %1839 = vmatpush.msra.mxu0 %v324
    %1840 = vmatpush.msra.mxu0 %v323
    %1841 = vmatpush.msra.mxu0 %v322
    %1842 = vmatpush.msra.mxu0 %v321
    %1843 = vmatmul.f32.gmra.mxu0 %v1825
    %v1844 = vpop.f32.mrf.mxu0
    %v1845 = vadd.f32 0.0, %v1844
    %1846 = vdwg.mxu0
    %v1847 = vadd.f32 %v1823, %v1845
    %v1848 = vadd.f32 %v1847, %v333
    %v1849 = vmax.f32 %v1848, 0.0
    %1850 = vmatpush.msra.mxu0 %v349
    %1851 = vmatpush.msra.mxu0 %v348
    %1852 = vmatpush.msra.mxu0 %v347
    %1853 = vmatpush.msra.mxu0 %v346
    %1854 = vmatpush.msra.mxu0 %v345
    %1855 = vmatpush.msra.mxu0 %v344
    %1856 = vmatpush.msra.mxu0 %v343
    %1857 = vmatpush.msra.mxu0 %v342
    %1858 = vmatpush.msra.mxu0 %v341
    %1859 = vmatpush.msra.mxu0 %v340
    %1860 = vmatpush.msra.mxu0 %v339
    %1861 = vmatpush.msra.mxu0 %v338
    %1862 = vmatpush.msra.mxu0 %v337
    %1863 = vmatpush.msra.mxu0 %v336
    %1864 = vmatpush.msra.mxu0 %v335
    %1865 = vmatpush.msra.mxu0 %v334
    %1866 = vmatmul.f32.gmra.mxu0 %v1849
    %v1867 = vpop.f32.mrf.mxu0
    %v1868 = vadd.f32 %v350, %v1867
    %1869 = vdwg.mxu0
    %v1870 = vmax.f32 %v1868, 0.0
    %1871 = vmatpush.msra.mxu0 %v366
    %1872 = vmatpush.msra.mxu0 %v365
    %1873 = vmatpush.msra.mxu0 %v364
    %1874 = vmatpush.msra.mxu0 %v363
    %1875 = vmatpush.msra.mxu0 %v362
    %1876 = vmatpush.msra.mxu0 %v361
    %1877 = vmatpush.msra.mxu0 %v360
    %1878 = vmatpush.msra.mxu0 %v359
    %1879 = vmatpush.msra.mxu0 %v358
    %1880 = vmatpush.msra.mxu0 %v357
    %1881 = vmatpush.msra.mxu0 %v356
    %1882 = vmatpush.msra.mxu0 %v355
    %1883 = vmatpush.msra.mxu0 %v354
    %1884 = vmatpush.msra.mxu0 %v353
    %1885 = vmatpush.msra.mxu0 %v352
    %1886 = vmatpush.msra.mxu0 %v351
    %1887 = vmatmul.f32.gmra.mxu0 %v1870
    %v1888 = vpop.f32.mrf.mxu0
    %v1889 = vadd.f32 %v367, %v1888
    %1890 = vdwg.mxu0
    %vm1891 = vcmask 73728
    %1892 = vst.msk [vmem:[#allocation2] sm:$0x1] %vm1891, %v1889
    %s1893 = scalar_lea.vmem %s0, 32
    %v1894 = vld [vmem:[%s1893] sm:$0xff]
    %s1895 = scalar_lea.vmem %s0, 40
    %v1896 = vld [vmem:[%s1895] sm:$0xff]
    %s1897 = scalar_lea.vmem %s0, 48
    %v1898 = vld [vmem:[%s1897] sm:$0xff]
    %s1899 = scalar_lea.vmem %s0, 56
    %v1900 = vld [vmem:[%s1899] sm:$0xff]
    %v1902 = vsel %vm375, %v1896, 0
    %1904 = vmatpush.msra.mxu0 0.0
    %1905 = vmatpush.msra.mxu0 0.0
    %1906 = vmatpush.msra.mxu0 0.0
    %1907 = vmatpush.msra.mxu0 0.0
    %1908 = vmatpush.msra.mxu0 %v86
    %1909 = vmatpush.msra.mxu0 %v84
    %1910 = vmatpush.msra.mxu0 %v82
    %1911 = vmatpush.msra.mxu0 %v80
    %1912 = vmatpush.msra.mxu0 %v78
    %1913 = vmatpush.msra.mxu0 %v76
    %1914 = vmatpush.msra.mxu0 %v74
    %1915 = vmatpush.msra.mxu0 %v72
    %1916 = vmatpush.msra.mxu0 %v70
    %1917 = vmatpush.msra.mxu0 %v68
    %1918 = vmatpush.msra.mxu0 %v66
    %1919 = vmatpush.msra.mxu0 %v64
    %1920 = vmatmul.f32.gmra.mxu0 %v1902
    %v1921 = vpop.f32.mrf.mxu0
    %v1922 = vadd.f32 0.0, %v1921
    %1923 = vdwg.mxu0
    %1924 = vmatpush.msra.mxu0 0.0
    %1925 = vmatpush.msra.mxu0 0.0
    %1926 = vmatpush.msra.mxu0 0.0
    %1927 = vmatpush.msra.mxu0 0.0
    %1928 = vmatpush.msra.mxu0 %v87
    %1929 = vmatpush.msra.mxu0 %v85
    %1930 = vmatpush.msra.mxu0 %v83
    %1931 = vmatpush.msra.mxu0 %v81
    %1932 = vmatpush.msra.mxu0 %v79
    %1933 = vmatpush.msra.mxu0 %v77
    %1934 = vmatpush.msra.mxu0 %v75
    %1935 = vmatpush.msra.mxu0 %v73
    %1936 = vmatpush.msra.mxu0 %v71
    %1937 = vmatpush.msra.mxu0 %v69
    %1938 = vmatpush.msra.mxu0 %v67
    %1939 = vmatpush.msra.mxu0 %v65
    %1940 = vmatmul.f32.gmra.mxu0 %v1902
    %v1941 = vpop.f32.mrf.mxu0
    %v1942 = vadd.f32 0.0, %v1941
    %1943 = vdwg.mxu0
    %v1945 = vsel %vm375, %v1894, 0
    %1947 = vmatpush.msra.mxu0 0.0
    %1948 = vmatpush.msra.mxu0 0.0
    %1949 = vmatpush.msra.mxu0 0.0
    %1950 = vmatpush.msra.mxu0 0.0
    %1951 = vmatpush.msra.mxu0 %v61
    %1952 = vmatpush.msra.mxu0 %v59
    %1953 = vmatpush.msra.mxu0 %v57
    %1954 = vmatpush.msra.mxu0 %v55
    %1955 = vmatpush.msra.mxu0 %v53
    %1956 = vmatpush.msra.mxu0 %v51
    %1957 = vmatpush.msra.mxu0 %v49
    %1958 = vmatpush.msra.mxu0 %v47
    %1959 = vmatpush.msra.mxu0 %v45
    %1960 = vmatpush.msra.mxu0 %v43
    %1961 = vmatpush.msra.mxu0 %v41
    %1962 = vmatpush.msra.mxu0 %v39
    %1963 = vmatmul.f32.gmra.mxu0 %v1945
    %v1964 = vpop.f32.mrf.mxu0
    %v1965 = vadd.f32 %v1922, %v1964
    %1966 = vdwg.mxu0
    %1967 = vmatpush.msra.mxu0 0.0
    %1968 = vmatpush.msra.mxu0 0.0
    %1969 = vmatpush.msra.mxu0 0.0
    %1970 = vmatpush.msra.mxu0 0.0
    %1971 = vmatpush.msra.mxu0 %v62
    %1972 = vmatpush.msra.mxu0 %v60
    %1973 = vmatpush.msra.mxu0 %v58
    %1974 = vmatpush.msra.mxu0 %v56
    %1975 = vmatpush.msra.mxu0 %v54
    %1976 = vmatpush.msra.mxu0 %v52
    %1977 = vmatpush.msra.mxu0 %v50
    %1978 = vmatpush.msra.mxu0 %v48
    %1979 = vmatpush.msra.mxu0 %v46
    %1980 = vmatpush.msra.mxu0 %v44
    %1981 = vmatpush.msra.mxu0 %v42
    %1982 = vmatpush.msra.mxu0 %v40
    %1983 = vmatmul.f32.gmra.mxu0 %v1945
    %v1984 = vpop.f32.mrf.mxu0
    %v1985 = vadd.f32 %v1942, %v1984
    %1986 = vdwg.mxu0
    %v1988 = vsel %vm375, %v1898, 0
    %1990 = vmatpush.msra.mxu0 0.0
    %1991 = vmatpush.msra.mxu0 0.0
    %1992 = vmatpush.msra.mxu0 0.0
    %1993 = vmatpush.msra.mxu0 0.0
    %1994 = vmatpush.msra.mxu0 %v111
    %1995 = vmatpush.msra.mxu0 %v109
    %1996 = vmatpush.msra.mxu0 %v107
    %1997 = vmatpush.msra.mxu0 %v105
    %1998 = vmatpush.msra.mxu0 %v103
    %1999 = vmatpush.msra.mxu0 %v101
    %2000 = vmatpush.msra.mxu0 %v99
    %2001 = vmatpush.msra.mxu0 %v97
    %2002 = vmatpush.msra.mxu0 %v95
    %2003 = vmatpush.msra.mxu0 %v93
    %2004 = vmatpush.msra.mxu0 %v91
    %2005 = vmatpush.msra.mxu0 %v89
    %2006 = vmatmul.f32.gmra.mxu0 %v1988
    %v2007 = vpop.f32.mrf.mxu0
    %v2008 = vadd.f32 0.0, %v2007
    %2009 = vdwg.mxu0
    %2010 = vmatpush.msra.mxu0 0.0
    %2011 = vmatpush.msra.mxu0 0.0
    %2012 = vmatpush.msra.mxu0 0.0
    %2013 = vmatpush.msra.mxu0 0.0
    %2014 = vmatpush.msra.mxu0 %v112
    %2015 = vmatpush.msra.mxu0 %v110
    %2016 = vmatpush.msra.mxu0 %v108
    %2017 = vmatpush.msra.mxu0 %v106
    %2018 = vmatpush.msra.mxu0 %v104
    %2019 = vmatpush.msra.mxu0 %v102
    %2020 = vmatpush.msra.mxu0 %v100
    %2021 = vmatpush.msra.mxu0 %v98
    %2022 = vmatpush.msra.mxu0 %v96
    %2023 = vmatpush.msra.mxu0 %v94
    %2024 = vmatpush.msra.mxu0 %v92
    %2025 = vmatpush.msra.mxu0 %v90
    %2026 = vmatmul.f32.gmra.mxu0 %v1988
    %v2027 = vpop.f32.mrf.mxu0
    %v2028 = vadd.f32 0.0, %v2027
    %2029 = vdwg.mxu0
    %v2030 = vadd.f32 %v1965, %v2008
    %v2031 = vadd.f32 %v1985, %v2028
    %v2033 = vsel %vm375, %v1900, 0
    %2035 = vmatpush.msra.mxu0 0.0
    %2036 = vmatpush.msra.mxu0 0.0
    %2037 = vmatpush.msra.mxu0 0.0
    %2038 = vmatpush.msra.mxu0 0.0
    %2039 = vmatpush.msra.mxu0 %v136
    %2040 = vmatpush.msra.mxu0 %v134
    %2041 = vmatpush.msra.mxu0 %v132
    %2042 = vmatpush.msra.mxu0 %v130
    %2043 = vmatpush.msra.mxu0 %v128
    %2044 = vmatpush.msra.mxu0 %v126
    %2045 = vmatpush.msra.mxu0 %v124
    %2046 = vmatpush.msra.mxu0 %v122
    %2047 = vmatpush.msra.mxu0 %v120
    %2048 = vmatpush.msra.mxu0 %v118
    %2049 = vmatpush.msra.mxu0 %v116
    %2050 = vmatpush.msra.mxu0 %v114
    %2051 = vmatmul.f32.gmra.mxu0 %v2033
    %v2052 = vpop.f32.mrf.mxu0
    %v2053 = vadd.f32 0.0, %v2052
    %2054 = vdwg.mxu0
    %2055 = vmatpush.msra.mxu0 0.0
    %2056 = vmatpush.msra.mxu0 0.0
    %2057 = vmatpush.msra.mxu0 0.0
    %2058 = vmatpush.msra.mxu0 0.0
    %2059 = vmatpush.msra.mxu0 %v137
    %2060 = vmatpush.msra.mxu0 %v135
    %2061 = vmatpush.msra.mxu0 %v133
    %2062 = vmatpush.msra.mxu0 %v131
    %2063 = vmatpush.msra.mxu0 %v129
    %2064 = vmatpush.msra.mxu0 %v127
    %2065 = vmatpush.msra.mxu0 %v125
    %2066 = vmatpush.msra.mxu0 %v123
    %2067 = vmatpush.msra.mxu0 %v121
    %2068 = vmatpush.msra.mxu0 %v119
    %2069 = vmatpush.msra.mxu0 %v117
    %2070 = vmatpush.msra.mxu0 %v115
    %2071 = vmatmul.f32.gmra.mxu0 %v2033
    %v2072 = vpop.f32.mrf.mxu0
    %v2073 = vadd.f32 0.0, %v2072
    %2074 = vdwg.mxu0
    %v2075 = vadd.f32 %v2030, %v2053
    %v2076 = vadd.f32 %v2031, %v2073
    %v2077 = vrot.slane %v1894, 1
    %v2078 = vsel %vm375, %v2077, 0
    %2080 = vmatpush.msra.mxu0 0.0
    %2081 = vmatpush.msra.mxu0 0.0
    %2082 = vmatpush.msra.mxu0 0.0
    %2083 = vmatpush.msra.mxu0 0.0
    %2084 = vmatpush.msra.mxu0 %v161
    %2085 = vmatpush.msra.mxu0 %v159
    %2086 = vmatpush.msra.mxu0 %v157
    %2087 = vmatpush.msra.mxu0 %v155
    %2088 = vmatpush.msra.mxu0 %v153
    %2089 = vmatpush.msra.mxu0 %v151
    %2090 = vmatpush.msra.mxu0 %v149
    %2091 = vmatpush.msra.mxu0 %v147
    %2092 = vmatpush.msra.mxu0 %v145
    %2093 = vmatpush.msra.mxu0 %v143
    %2094 = vmatpush.msra.mxu0 %v141
    %2095 = vmatpush.msra.mxu0 %v139
    %2096 = vmatmul.f32.gmra.mxu0 %v2078
    %v2097 = vpop.f32.mrf.mxu0
    %v2098 = vadd.f32 0.0, %v2097
    %2099 = vdwg.mxu0
    %2100 = vmatpush.msra.mxu0 0.0
    %2101 = vmatpush.msra.mxu0 0.0
    %2102 = vmatpush.msra.mxu0 0.0
    %2103 = vmatpush.msra.mxu0 0.0
    %2104 = vmatpush.msra.mxu0 %v162
    %2105 = vmatpush.msra.mxu0 %v160
    %2106 = vmatpush.msra.mxu0 %v158
    %2107 = vmatpush.msra.mxu0 %v156
    %2108 = vmatpush.msra.mxu0 %v154
    %2109 = vmatpush.msra.mxu0 %v152
    %2110 = vmatpush.msra.mxu0 %v150
    %2111 = vmatpush.msra.mxu0 %v148
    %2112 = vmatpush.msra.mxu0 %v146
    %2113 = vmatpush.msra.mxu0 %v144
    %2114 = vmatpush.msra.mxu0 %v142
    %2115 = vmatpush.msra.mxu0 %v140
    %2116 = vmatmul.f32.gmra.mxu0 %v2078
    %v2117 = vpop.f32.mrf.mxu0
    %v2118 = vadd.f32 0.0, %v2117
    %2119 = vdwg.mxu0
    %v2120 = vadd.f32 %v2075, %v2098
    %v2121 = vadd.f32 %v2076, %v2118
    %v2122 = vadd.f32 %v2120, %v598
    %v2123 = vadd.f32 %v2121, %v599
    %v2124 = vmax.f32 %v2122, 0.0
    %v2125 = vmax.f32 %v2123, 0.0
    %2126 = vmatpush.msra.mxu0 0.0
    %2127 = vmatpush.msra.mxu0 0.0
    %2128 = vmatpush.msra.mxu0 0.0
    %2129 = vmatpush.msra.mxu0 0.0
    %2130 = vmatpush.msra.mxu0 %v86
    %2131 = vmatpush.msra.mxu0 %v84
    %2132 = vmatpush.msra.mxu0 %v82
    %2133 = vmatpush.msra.mxu0 %v80
    %2134 = vmatpush.msra.mxu0 %v78
    %2135 = vmatpush.msra.mxu0 %v76
    %2136 = vmatpush.msra.mxu0 %v74
    %2137 = vmatpush.msra.mxu0 %v72
    %2138 = vmatpush.msra.mxu0 %v70
    %2139 = vmatpush.msra.mxu0 %v68
    %2140 = vmatpush.msra.mxu0 %v66
    %2141 = vmatpush.msra.mxu0 %v64
    %2142 = vmatmul.f32.gmra.mxu0 %v1988
    %v2143 = vpop.f32.mrf.mxu0
    %v2144 = vadd.f32 0.0, %v2143
    %2145 = vdwg.mxu0
    %2146 = vmatpush.msra.mxu0 0.0
    %2147 = vmatpush.msra.mxu0 0.0
    %2148 = vmatpush.msra.mxu0 0.0
    %2149 = vmatpush.msra.mxu0 0.0
    %2150 = vmatpush.msra.mxu0 %v87
    %2151 = vmatpush.msra.mxu0 %v85
    %2152 = vmatpush.msra.mxu0 %v83
    %2153 = vmatpush.msra.mxu0 %v81
    %2154 = vmatpush.msra.mxu0 %v79
    %2155 = vmatpush.msra.mxu0 %v77
    %2156 = vmatpush.msra.mxu0 %v75
    %2157 = vmatpush.msra.mxu0 %v73
    %2158 = vmatpush.msra.mxu0 %v71
    %2159 = vmatpush.msra.mxu0 %v69
    %2160 = vmatpush.msra.mxu0 %v67
    %2161 = vmatpush.msra.mxu0 %v65
    %2162 = vmatmul.f32.gmra.mxu0 %v1988
    %v2163 = vpop.f32.mrf.mxu0
    %v2164 = vadd.f32 0.0, %v2163
    %2165 = vdwg.mxu0
    %2166 = vmatpush.msra.mxu0 0.0
    %2167 = vmatpush.msra.mxu0 0.0
    %2168 = vmatpush.msra.mxu0 0.0
    %2169 = vmatpush.msra.mxu0 0.0
    %2170 = vmatpush.msra.mxu0 %v61
    %2171 = vmatpush.msra.mxu0 %v59
    %2172 = vmatpush.msra.mxu0 %v57
    %2173 = vmatpush.msra.mxu0 %v55
    %2174 = vmatpush.msra.mxu0 %v53
    %2175 = vmatpush.msra.mxu0 %v51
    %2176 = vmatpush.msra.mxu0 %v49
    %2177 = vmatpush.msra.mxu0 %v47
    %2178 = vmatpush.msra.mxu0 %v45
    %2179 = vmatpush.msra.mxu0 %v43
    %2180 = vmatpush.msra.mxu0 %v41
    %2181 = vmatpush.msra.mxu0 %v39
    %2182 = vmatmul.f32.gmra.mxu0 %v1902
    %v2183 = vpop.f32.mrf.mxu0
    %v2184 = vadd.f32 %v2144, %v2183
    %2185 = vdwg.mxu0
    %2186 = vmatpush.msra.mxu0 0.0
    %2187 = vmatpush.msra.mxu0 0.0
    %2188 = vmatpush.msra.mxu0 0.0
    %2189 = vmatpush.msra.mxu0 0.0
    %2190 = vmatpush.msra.mxu0 %v62
    %2191 = vmatpush.msra.mxu0 %v60
    %2192 = vmatpush.msra.mxu0 %v58
    %2193 = vmatpush.msra.mxu0 %v56
    %2194 = vmatpush.msra.mxu0 %v54
    %2195 = vmatpush.msra.mxu0 %v52
    %2196 = vmatpush.msra.mxu0 %v50
    %2197 = vmatpush.msra.mxu0 %v48
    %2198 = vmatpush.msra.mxu0 %v46
    %2199 = vmatpush.msra.mxu0 %v44
    %2200 = vmatpush.msra.mxu0 %v42
    %2201 = vmatpush.msra.mxu0 %v40
    %2202 = vmatmul.f32.gmra.mxu0 %v1902
    %v2203 = vpop.f32.mrf.mxu0
    %v2204 = vadd.f32 %v2164, %v2203
    %2205 = vdwg.mxu0
    %2206 = vmatpush.msra.mxu0 0.0
    %2207 = vmatpush.msra.mxu0 0.0
    %2208 = vmatpush.msra.mxu0 0.0
    %2209 = vmatpush.msra.mxu0 0.0
    %2210 = vmatpush.msra.mxu0 %v111
    %2211 = vmatpush.msra.mxu0 %v109
    %2212 = vmatpush.msra.mxu0 %v107
    %2213 = vmatpush.msra.mxu0 %v105
    %2214 = vmatpush.msra.mxu0 %v103
    %2215 = vmatpush.msra.mxu0 %v101
    %2216 = vmatpush.msra.mxu0 %v99
    %2217 = vmatpush.msra.mxu0 %v97
    %2218 = vmatpush.msra.mxu0 %v95
    %2219 = vmatpush.msra.mxu0 %v93
    %2220 = vmatpush.msra.mxu0 %v91
    %2221 = vmatpush.msra.mxu0 %v89
    %2222 = vmatmul.f32.gmra.mxu0 %v2033
    %v2223 = vpop.f32.mrf.mxu0
    %v2224 = vadd.f32 0.0, %v2223
    %2225 = vdwg.mxu0
    %2226 = vmatpush.msra.mxu0 0.0
    %2227 = vmatpush.msra.mxu0 0.0
    %2228 = vmatpush.msra.mxu0 0.0
    %2229 = vmatpush.msra.mxu0 0.0
    %2230 = vmatpush.msra.mxu0 %v112
    %2231 = vmatpush.msra.mxu0 %v110
    %2232 = vmatpush.msra.mxu0 %v108
    %2233 = vmatpush.msra.mxu0 %v106
    %2234 = vmatpush.msra.mxu0 %v104
    %2235 = vmatpush.msra.mxu0 %v102
    %2236 = vmatpush.msra.mxu0 %v100
    %2237 = vmatpush.msra.mxu0 %v98
    %2238 = vmatpush.msra.mxu0 %v96
    %2239 = vmatpush.msra.mxu0 %v94
    %2240 = vmatpush.msra.mxu0 %v92
    %2241 = vmatpush.msra.mxu0 %v90
    %2242 = vmatmul.f32.gmra.mxu0 %v2033
    %v2243 = vpop.f32.mrf.mxu0
    %v2244 = vadd.f32 0.0, %v2243
    %2245 = vdwg.mxu0
    %v2246 = vadd.f32 %v2184, %v2224
    %v2247 = vadd.f32 %v2204, %v2244
    %2248 = vmatpush.msra.mxu0 0.0
    %2249 = vmatpush.msra.mxu0 0.0
    %2250 = vmatpush.msra.mxu0 0.0
    %2251 = vmatpush.msra.mxu0 0.0
    %2252 = vmatpush.msra.mxu0 %v136
    %2253 = vmatpush.msra.mxu0 %v134
    %2254 = vmatpush.msra.mxu0 %v132
    %2255 = vmatpush.msra.mxu0 %v130
    %2256 = vmatpush.msra.mxu0 %v128
    %2257 = vmatpush.msra.mxu0 %v126
    %2258 = vmatpush.msra.mxu0 %v124
    %2259 = vmatpush.msra.mxu0 %v122
    %2260 = vmatpush.msra.mxu0 %v120
    %2261 = vmatpush.msra.mxu0 %v118
    %2262 = vmatpush.msra.mxu0 %v116
    %2263 = vmatpush.msra.mxu0 %v114
    %2264 = vmatmul.f32.gmra.mxu0 %v2078
    %v2265 = vpop.f32.mrf.mxu0
    %v2266 = vadd.f32 0.0, %v2265
    %2267 = vdwg.mxu0
    %2268 = vmatpush.msra.mxu0 0.0
    %2269 = vmatpush.msra.mxu0 0.0
    %2270 = vmatpush.msra.mxu0 0.0
    %2271 = vmatpush.msra.mxu0 0.0
    %2272 = vmatpush.msra.mxu0 %v137
    %2273 = vmatpush.msra.mxu0 %v135
    %2274 = vmatpush.msra.mxu0 %v133
    %2275 = vmatpush.msra.mxu0 %v131
    %2276 = vmatpush.msra.mxu0 %v129
    %2277 = vmatpush.msra.mxu0 %v127
    %2278 = vmatpush.msra.mxu0 %v125
    %2279 = vmatpush.msra.mxu0 %v123
    %2280 = vmatpush.msra.mxu0 %v121
    %2281 = vmatpush.msra.mxu0 %v119
    %2282 = vmatpush.msra.mxu0 %v117
    %2283 = vmatpush.msra.mxu0 %v115
    %2284 = vmatmul.f32.gmra.mxu0 %v2078
    %v2285 = vpop.f32.mrf.mxu0
    %v2286 = vadd.f32 0.0, %v2285
    %2287 = vdwg.mxu0
    %v2288 = vadd.f32 %v2246, %v2266
    %v2289 = vadd.f32 %v2247, %v2286
    %v2290 = vrot.slane %v1896, 1
    %v2291 = vsel %vm375, %v2290, 0
    %2293 = vmatpush.msra.mxu0 0.0
    %2294 = vmatpush.msra.mxu0 0.0
    %2295 = vmatpush.msra.mxu0 0.0
    %2296 = vmatpush.msra.mxu0 0.0
    %2297 = vmatpush.msra.mxu0 %v161
    %2298 = vmatpush.msra.mxu0 %v159
    %2299 = vmatpush.msra.mxu0 %v157
    %2300 = vmatpush.msra.mxu0 %v155
    %2301 = vmatpush.msra.mxu0 %v153
    %2302 = vmatpush.msra.mxu0 %v151
    %2303 = vmatpush.msra.mxu0 %v149
    %2304 = vmatpush.msra.mxu0 %v147
    %2305 = vmatpush.msra.mxu0 %v145
    %2306 = vmatpush.msra.mxu0 %v143
    %2307 = vmatpush.msra.mxu0 %v141
    %2308 = vmatpush.msra.mxu0 %v139
    %2309 = vmatmul.f32.gmra.mxu0 %v2291
    %v2310 = vpop.f32.mrf.mxu0
    %v2311 = vadd.f32 0.0, %v2310
    %2312 = vdwg.mxu0
    %2313 = vmatpush.msra.mxu0 0.0
    %2314 = vmatpush.msra.mxu0 0.0
    %2315 = vmatpush.msra.mxu0 0.0
    %2316 = vmatpush.msra.mxu0 0.0
    %2317 = vmatpush.msra.mxu0 %v162
    %2318 = vmatpush.msra.mxu0 %v160
    %2319 = vmatpush.msra.mxu0 %v158
    %2320 = vmatpush.msra.mxu0 %v156
    %2321 = vmatpush.msra.mxu0 %v154
    %2322 = vmatpush.msra.mxu0 %v152
    %2323 = vmatpush.msra.mxu0 %v150
    %2324 = vmatpush.msra.mxu0 %v148
    %2325 = vmatpush.msra.mxu0 %v146
    %2326 = vmatpush.msra.mxu0 %v144
    %2327 = vmatpush.msra.mxu0 %v142
    %2328 = vmatpush.msra.mxu0 %v140
    %2329 = vmatmul.f32.gmra.mxu0 %v2291
    %v2330 = vpop.f32.mrf.mxu0
    %v2331 = vadd.f32 0.0, %v2330
    %2332 = vdwg.mxu0
    %v2333 = vadd.f32 %v2288, %v2311
    %v2334 = vadd.f32 %v2289, %v2331
    %v2335 = vadd.f32 %v2333, %v598
    %v2336 = vadd.f32 %v2334, %v599
    %v2337 = vmax.f32 %v2335, 0.0
    %v2338 = vmax.f32 %v2336, 0.0
    %2339 = vmatpush.msra.mxu0 0.0
    %2340 = vmatpush.msra.mxu0 0.0
    %2341 = vmatpush.msra.mxu0 0.0
    %2342 = vmatpush.msra.mxu0 0.0
    %2343 = vmatpush.msra.mxu0 %v86
    %2344 = vmatpush.msra.mxu0 %v84
    %2345 = vmatpush.msra.mxu0 %v82
    %2346 = vmatpush.msra.mxu0 %v80
    %2347 = vmatpush.msra.mxu0 %v78
    %2348 = vmatpush.msra.mxu0 %v76
    %2349 = vmatpush.msra.mxu0 %v74
    %2350 = vmatpush.msra.mxu0 %v72
    %2351 = vmatpush.msra.mxu0 %v70
    %2352 = vmatpush.msra.mxu0 %v68
    %2353 = vmatpush.msra.mxu0 %v66
    %2354 = vmatpush.msra.mxu0 %v64
    %2355 = vmatmul.f32.gmra.mxu0 %v2033
    %v2356 = vpop.f32.mrf.mxu0
    %v2357 = vadd.f32 0.0, %v2356
    %2358 = vdwg.mxu0
    %2359 = vmatpush.msra.mxu0 0.0
    %2360 = vmatpush.msra.mxu0 0.0
    %2361 = vmatpush.msra.mxu0 0.0
    %2362 = vmatpush.msra.mxu0 0.0
    %2363 = vmatpush.msra.mxu0 %v87
    %2364 = vmatpush.msra.mxu0 %v85
    %2365 = vmatpush.msra.mxu0 %v83
    %2366 = vmatpush.msra.mxu0 %v81
    %2367 = vmatpush.msra.mxu0 %v79
    %2368 = vmatpush.msra.mxu0 %v77
    %2369 = vmatpush.msra.mxu0 %v75
    %2370 = vmatpush.msra.mxu0 %v73
    %2371 = vmatpush.msra.mxu0 %v71
    %2372 = vmatpush.msra.mxu0 %v69
    %2373 = vmatpush.msra.mxu0 %v67
    %2374 = vmatpush.msra.mxu0 %v65
    %2375 = vmatmul.f32.gmra.mxu0 %v2033
    %v2376 = vpop.f32.mrf.mxu0
    %v2377 = vadd.f32 0.0, %v2376
    %2378 = vdwg.mxu0
    %2379 = vmatpush.msra.mxu0 0.0
    %2380 = vmatpush.msra.mxu0 0.0
    %2381 = vmatpush.msra.mxu0 0.0
    %2382 = vmatpush.msra.mxu0 0.0
    %2383 = vmatpush.msra.mxu0 %v61
    %2384 = vmatpush.msra.mxu0 %v59
    %2385 = vmatpush.msra.mxu0 %v57
    %2386 = vmatpush.msra.mxu0 %v55
    %2387 = vmatpush.msra.mxu0 %v53
    %2388 = vmatpush.msra.mxu0 %v51
    %2389 = vmatpush.msra.mxu0 %v49
    %2390 = vmatpush.msra.mxu0 %v47
    %2391 = vmatpush.msra.mxu0 %v45
    %2392 = vmatpush.msra.mxu0 %v43
    %2393 = vmatpush.msra.mxu0 %v41
    %2394 = vmatpush.msra.mxu0 %v39
    %2395 = vmatmul.f32.gmra.mxu0 %v1988
    %v2396 = vpop.f32.mrf.mxu0
    %v2397 = vadd.f32 %v2357, %v2396
    %2398 = vdwg.mxu0
    %2399 = vmatpush.msra.mxu0 0.0
    %2400 = vmatpush.msra.mxu0 0.0
    %2401 = vmatpush.msra.mxu0 0.0
    %2402 = vmatpush.msra.mxu0 0.0
    %2403 = vmatpush.msra.mxu0 %v62
    %2404 = vmatpush.msra.mxu0 %v60
    %2405 = vmatpush.msra.mxu0 %v58
    %2406 = vmatpush.msra.mxu0 %v56
    %2407 = vmatpush.msra.mxu0 %v54
    %2408 = vmatpush.msra.mxu0 %v52
    %2409 = vmatpush.msra.mxu0 %v50
    %2410 = vmatpush.msra.mxu0 %v48
    %2411 = vmatpush.msra.mxu0 %v46
    %2412 = vmatpush.msra.mxu0 %v44
    %2413 = vmatpush.msra.mxu0 %v42
    %2414 = vmatpush.msra.mxu0 %v40
    %2415 = vmatmul.f32.gmra.mxu0 %v1988
    %v2416 = vpop.f32.mrf.mxu0
    %v2417 = vadd.f32 %v2377, %v2416
    %2418 = vdwg.mxu0
    %2419 = vmatpush.msra.mxu0 0.0
    %2420 = vmatpush.msra.mxu0 0.0
    %2421 = vmatpush.msra.mxu0 0.0
    %2422 = vmatpush.msra.mxu0 0.0
    %2423 = vmatpush.msra.mxu0 %v111
    %2424 = vmatpush.msra.mxu0 %v109
    %2425 = vmatpush.msra.mxu0 %v107
    %2426 = vmatpush.msra.mxu0 %v105
    %2427 = vmatpush.msra.mxu0 %v103
    %2428 = vmatpush.msra.mxu0 %v101
    %2429 = vmatpush.msra.mxu0 %v99
    %2430 = vmatpush.msra.mxu0 %v97
    %2431 = vmatpush.msra.mxu0 %v95
    %2432 = vmatpush.msra.mxu0 %v93
    %2433 = vmatpush.msra.mxu0 %v91
    %2434 = vmatpush.msra.mxu0 %v89
    %2435 = vmatmul.f32.gmra.mxu0 %v2078
    %v2436 = vpop.f32.mrf.mxu0
    %v2437 = vadd.f32 0.0, %v2436
    %2438 = vdwg.mxu0
    %2439 = vmatpush.msra.mxu0 0.0
    %2440 = vmatpush.msra.mxu0 0.0
    %2441 = vmatpush.msra.mxu0 0.0
    %2442 = vmatpush.msra.mxu0 0.0
    %2443 = vmatpush.msra.mxu0 %v112
    %2444 = vmatpush.msra.mxu0 %v110
    %2445 = vmatpush.msra.mxu0 %v108
    %2446 = vmatpush.msra.mxu0 %v106
    %2447 = vmatpush.msra.mxu0 %v104
    %2448 = vmatpush.msra.mxu0 %v102
    %2449 = vmatpush.msra.mxu0 %v100
    %2450 = vmatpush.msra.mxu0 %v98
    %2451 = vmatpush.msra.mxu0 %v96
    %2452 = vmatpush.msra.mxu0 %v94
    %2453 = vmatpush.msra.mxu0 %v92
    %2454 = vmatpush.msra.mxu0 %v90
    %2455 = vmatmul.f32.gmra.mxu0 %v2078
    %v2456 = vpop.f32.mrf.mxu0
    %v2457 = vadd.f32 0.0, %v2456
    %2458 = vdwg.mxu0
    %v2459 = vadd.f32 %v2397, %v2437
    %v2460 = vadd.f32 %v2417, %v2457
    %2461 = vmatpush.msra.mxu0 0.0
    %2462 = vmatpush.msra.mxu0 0.0
    %2463 = vmatpush.msra.mxu0 0.0
    %2464 = vmatpush.msra.mxu0 0.0
    %2465 = vmatpush.msra.mxu0 %v136
    %2466 = vmatpush.msra.mxu0 %v134
    %2467 = vmatpush.msra.mxu0 %v132
    %2468 = vmatpush.msra.mxu0 %v130
    %2469 = vmatpush.msra.mxu0 %v128
    %2470 = vmatpush.msra.mxu0 %v126
    %2471 = vmatpush.msra.mxu0 %v124
    %2472 = vmatpush.msra.mxu0 %v122
    %2473 = vmatpush.msra.mxu0 %v120
    %2474 = vmatpush.msra.mxu0 %v118
    %2475 = vmatpush.msra.mxu0 %v116
    %2476 = vmatpush.msra.mxu0 %v114
    %2477 = vmatmul.f32.gmra.mxu0 %v2291
    %v2478 = vpop.f32.mrf.mxu0
    %v2479 = vadd.f32 0.0, %v2478
    %2480 = vdwg.mxu0
    %2481 = vmatpush.msra.mxu0 0.0
    %2482 = vmatpush.msra.mxu0 0.0
    %2483 = vmatpush.msra.mxu0 0.0
    %2484 = vmatpush.msra.mxu0 0.0
    %2485 = vmatpush.msra.mxu0 %v137
    %2486 = vmatpush.msra.mxu0 %v135
    %2487 = vmatpush.msra.mxu0 %v133
    %2488 = vmatpush.msra.mxu0 %v131
    %2489 = vmatpush.msra.mxu0 %v129
    %2490 = vmatpush.msra.mxu0 %v127
    %2491 = vmatpush.msra.mxu0 %v125
    %2492 = vmatpush.msra.mxu0 %v123
    %2493 = vmatpush.msra.mxu0 %v121
    %2494 = vmatpush.msra.mxu0 %v119
    %2495 = vmatpush.msra.mxu0 %v117
    %2496 = vmatpush.msra.mxu0 %v115
    %2497 = vmatmul.f32.gmra.mxu0 %v2291
    %v2498 = vpop.f32.mrf.mxu0
    %v2499 = vadd.f32 0.0, %v2498
    %2500 = vdwg.mxu0
    %v2501 = vadd.f32 %v2459, %v2479
    %v2502 = vadd.f32 %v2460, %v2499
    %v2503 = vrot.slane %v1898, 1
    %v2504 = vsel %vm375, %v2503, 0
    %2506 = vmatpush.msra.mxu0 0.0
    %2507 = vmatpush.msra.mxu0 0.0
    %2508 = vmatpush.msra.mxu0 0.0
    %2509 = vmatpush.msra.mxu0 0.0
    %2510 = vmatpush.msra.mxu0 %v161
    %2511 = vmatpush.msra.mxu0 %v159
    %2512 = vmatpush.msra.mxu0 %v157
    %2513 = vmatpush.msra.mxu0 %v155
    %2514 = vmatpush.msra.mxu0 %v153
    %2515 = vmatpush.msra.mxu0 %v151
    %2516 = vmatpush.msra.mxu0 %v149
    %2517 = vmatpush.msra.mxu0 %v147
    %2518 = vmatpush.msra.mxu0 %v145
    %2519 = vmatpush.msra.mxu0 %v143
    %2520 = vmatpush.msra.mxu0 %v141
    %2521 = vmatpush.msra.mxu0 %v139
    %2522 = vmatmul.f32.gmra.mxu0 %v2504
    %v2523 = vpop.f32.mrf.mxu0
    %v2524 = vadd.f32 0.0, %v2523
    %2525 = vdwg.mxu0
    %2526 = vmatpush.msra.mxu0 0.0
    %2527 = vmatpush.msra.mxu0 0.0
    %2528 = vmatpush.msra.mxu0 0.0
    %2529 = vmatpush.msra.mxu0 0.0
    %2530 = vmatpush.msra.mxu0 %v162
    %2531 = vmatpush.msra.mxu0 %v160
    %2532 = vmatpush.msra.mxu0 %v158
    %2533 = vmatpush.msra.mxu0 %v156
    %2534 = vmatpush.msra.mxu0 %v154
    %2535 = vmatpush.msra.mxu0 %v152
    %2536 = vmatpush.msra.mxu0 %v150
    %2537 = vmatpush.msra.mxu0 %v148
    %2538 = vmatpush.msra.mxu0 %v146
    %2539 = vmatpush.msra.mxu0 %v144
    %2540 = vmatpush.msra.mxu0 %v142
    %2541 = vmatpush.msra.mxu0 %v140
    %2542 = vmatmul.f32.gmra.mxu0 %v2504
    %v2543 = vpop.f32.mrf.mxu0
    %v2544 = vadd.f32 0.0, %v2543
    %2545 = vdwg.mxu0
    %v2546 = vadd.f32 %v2501, %v2524
    %v2547 = vadd.f32 %v2502, %v2544
    %v2548 = vadd.f32 %v2546, %v598
    %v2549 = vadd.f32 %v2547, %v599
    %v2550 = vmax.f32 %v2548, 0.0
    %v2551 = vmax.f32 %v2549, 0.0
    %2552 = vmatpush.msra.mxu0 0.0
    %2553 = vmatpush.msra.mxu0 0.0
    %2554 = vmatpush.msra.mxu0 0.0
    %2555 = vmatpush.msra.mxu0 0.0
    %2556 = vmatpush.msra.mxu0 %v86
    %2557 = vmatpush.msra.mxu0 %v84
    %2558 = vmatpush.msra.mxu0 %v82
    %2559 = vmatpush.msra.mxu0 %v80
    %2560 = vmatpush.msra.mxu0 %v78
    %2561 = vmatpush.msra.mxu0 %v76
    %2562 = vmatpush.msra.mxu0 %v74
    %2563 = vmatpush.msra.mxu0 %v72
    %2564 = vmatpush.msra.mxu0 %v70
    %2565 = vmatpush.msra.mxu0 %v68
    %2566 = vmatpush.msra.mxu0 %v66
    %2567 = vmatpush.msra.mxu0 %v64
    %2568 = vmatmul.f32.gmra.mxu0 %v2078
    %v2569 = vpop.f32.mrf.mxu0
    %v2570 = vadd.f32 0.0, %v2569
    %2571 = vdwg.mxu0
    %2572 = vmatpush.msra.mxu0 0.0
    %2573 = vmatpush.msra.mxu0 0.0
    %2574 = vmatpush.msra.mxu0 0.0
    %2575 = vmatpush.msra.mxu0 0.0
    %2576 = vmatpush.msra.mxu0 %v87
    %2577 = vmatpush.msra.mxu0 %v85
    %2578 = vmatpush.msra.mxu0 %v83
    %2579 = vmatpush.msra.mxu0 %v81
    %2580 = vmatpush.msra.mxu0 %v79
    %2581 = vmatpush.msra.mxu0 %v77
    %2582 = vmatpush.msra.mxu0 %v75
    %2583 = vmatpush.msra.mxu0 %v73
    %2584 = vmatpush.msra.mxu0 %v71
    %2585 = vmatpush.msra.mxu0 %v69
    %2586 = vmatpush.msra.mxu0 %v67
    %2587 = vmatpush.msra.mxu0 %v65
    %2588 = vmatmul.f32.gmra.mxu0 %v2078
    %v2589 = vpop.f32.mrf.mxu0
    %v2590 = vadd.f32 0.0, %v2589
    %2591 = vdwg.mxu0
    %2592 = vmatpush.msra.mxu0 0.0
    %2593 = vmatpush.msra.mxu0 0.0
    %2594 = vmatpush.msra.mxu0 0.0
    %2595 = vmatpush.msra.mxu0 0.0
    %2596 = vmatpush.msra.mxu0 %v61
    %2597 = vmatpush.msra.mxu0 %v59
    %2598 = vmatpush.msra.mxu0 %v57
    %2599 = vmatpush.msra.mxu0 %v55
    %2600 = vmatpush.msra.mxu0 %v53
    %2601 = vmatpush.msra.mxu0 %v51
    %2602 = vmatpush.msra.mxu0 %v49
    %2603 = vmatpush.msra.mxu0 %v47
    %2604 = vmatpush.msra.mxu0 %v45
    %2605 = vmatpush.msra.mxu0 %v43
    %2606 = vmatpush.msra.mxu0 %v41
    %2607 = vmatpush.msra.mxu0 %v39
    %2608 = vmatmul.f32.gmra.mxu0 %v2033
    %v2609 = vpop.f32.mrf.mxu0
    %v2610 = vadd.f32 %v2570, %v2609
    %2611 = vdwg.mxu0
    %2612 = vmatpush.msra.mxu0 0.0
    %2613 = vmatpush.msra.mxu0 0.0
    %2614 = vmatpush.msra.mxu0 0.0
    %2615 = vmatpush.msra.mxu0 0.0
    %2616 = vmatpush.msra.mxu0 %v62
    %2617 = vmatpush.msra.mxu0 %v60
    %2618 = vmatpush.msra.mxu0 %v58
    %2619 = vmatpush.msra.mxu0 %v56
    %2620 = vmatpush.msra.mxu0 %v54
    %2621 = vmatpush.msra.mxu0 %v52
    %2622 = vmatpush.msra.mxu0 %v50
    %2623 = vmatpush.msra.mxu0 %v48
    %2624 = vmatpush.msra.mxu0 %v46
    %2625 = vmatpush.msra.mxu0 %v44
    %2626 = vmatpush.msra.mxu0 %v42
    %2627 = vmatpush.msra.mxu0 %v40
    %2628 = vmatmul.f32.gmra.mxu0 %v2033
    %v2629 = vpop.f32.mrf.mxu0
    %v2630 = vadd.f32 %v2590, %v2629
    %2631 = vdwg.mxu0
    %2632 = vmatpush.msra.mxu0 0.0
    %2633 = vmatpush.msra.mxu0 0.0
    %2634 = vmatpush.msra.mxu0 0.0
    %2635 = vmatpush.msra.mxu0 0.0
    %2636 = vmatpush.msra.mxu0 %v111
    %2637 = vmatpush.msra.mxu0 %v109
    %2638 = vmatpush.msra.mxu0 %v107
    %2639 = vmatpush.msra.mxu0 %v105
    %2640 = vmatpush.msra.mxu0 %v103
    %2641 = vmatpush.msra.mxu0 %v101
    %2642 = vmatpush.msra.mxu0 %v99
    %2643 = vmatpush.msra.mxu0 %v97
    %2644 = vmatpush.msra.mxu0 %v95
    %2645 = vmatpush.msra.mxu0 %v93
    %2646 = vmatpush.msra.mxu0 %v91
    %2647 = vmatpush.msra.mxu0 %v89
    %2648 = vmatmul.f32.gmra.mxu0 %v2291
    %v2649 = vpop.f32.mrf.mxu0
    %v2650 = vadd.f32 0.0, %v2649
    %2651 = vdwg.mxu0
    %2652 = vmatpush.msra.mxu0 0.0
    %2653 = vmatpush.msra.mxu0 0.0
    %2654 = vmatpush.msra.mxu0 0.0
    %2655 = vmatpush.msra.mxu0 0.0
    %2656 = vmatpush.msra.mxu0 %v112
    %2657 = vmatpush.msra.mxu0 %v110
    %2658 = vmatpush.msra.mxu0 %v108
    %2659 = vmatpush.msra.mxu0 %v106
    %2660 = vmatpush.msra.mxu0 %v104
    %2661 = vmatpush.msra.mxu0 %v102
    %2662 = vmatpush.msra.mxu0 %v100
    %2663 = vmatpush.msra.mxu0 %v98
    %2664 = vmatpush.msra.mxu0 %v96
    %2665 = vmatpush.msra.mxu0 %v94
    %2666 = vmatpush.msra.mxu0 %v92
    %2667 = vmatpush.msra.mxu0 %v90
    %2668 = vmatmul.f32.gmra.mxu0 %v2291
    %v2669 = vpop.f32.mrf.mxu0
    %v2670 = vadd.f32 0.0, %v2669
    %2671 = vdwg.mxu0
    %v2672 = vadd.f32 %v2610, %v2650
    %v2673 = vadd.f32 %v2630, %v2670
    %2674 = vmatpush.msra.mxu0 0.0
    %2675 = vmatpush.msra.mxu0 0.0
    %2676 = vmatpush.msra.mxu0 0.0
    %2677 = vmatpush.msra.mxu0 0.0
    %2678 = vmatpush.msra.mxu0 %v136
    %2679 = vmatpush.msra.mxu0 %v134
    %2680 = vmatpush.msra.mxu0 %v132
    %2681 = vmatpush.msra.mxu0 %v130
    %2682 = vmatpush.msra.mxu0 %v128
    %2683 = vmatpush.msra.mxu0 %v126
    %2684 = vmatpush.msra.mxu0 %v124
    %2685 = vmatpush.msra.mxu0 %v122
    %2686 = vmatpush.msra.mxu0 %v120
    %2687 = vmatpush.msra.mxu0 %v118
    %2688 = vmatpush.msra.mxu0 %v116
    %2689 = vmatpush.msra.mxu0 %v114
    %2690 = vmatmul.f32.gmra.mxu0 %v2504
    %v2691 = vpop.f32.mrf.mxu0
    %v2692 = vadd.f32 0.0, %v2691
    %2693 = vdwg.mxu0
    %2694 = vmatpush.msra.mxu0 0.0
    %2695 = vmatpush.msra.mxu0 0.0
    %2696 = vmatpush.msra.mxu0 0.0
    %2697 = vmatpush.msra.mxu0 0.0
    %2698 = vmatpush.msra.mxu0 %v137
    %2699 = vmatpush.msra.mxu0 %v135
    %2700 = vmatpush.msra.mxu0 %v133
    %2701 = vmatpush.msra.mxu0 %v131
    %2702 = vmatpush.msra.mxu0 %v129
    %2703 = vmatpush.msra.mxu0 %v127
    %2704 = vmatpush.msra.mxu0 %v125
    %2705 = vmatpush.msra.mxu0 %v123
    %2706 = vmatpush.msra.mxu0 %v121
    %2707 = vmatpush.msra.mxu0 %v119
    %2708 = vmatpush.msra.mxu0 %v117
    %2709 = vmatpush.msra.mxu0 %v115
    %2710 = vmatmul.f32.gmra.mxu0 %v2504
    %v2711 = vpop.f32.mrf.mxu0
    %v2712 = vadd.f32 0.0, %v2711
    %2713 = vdwg.mxu0
    %v2714 = vadd.f32 %v2672, %v2692
    %v2715 = vadd.f32 %v2673, %v2712
    %v2716 = vrot.slane %v1900, 1
    %v2717 = vsel %vm375, %v2716, 0
    %2719 = vmatpush.msra.mxu0 0.0
    %2720 = vmatpush.msra.mxu0 0.0
    %2721 = vmatpush.msra.mxu0 0.0
    %2722 = vmatpush.msra.mxu0 0.0
    %2723 = vmatpush.msra.mxu0 %v161
    %2724 = vmatpush.msra.mxu0 %v159
    %2725 = vmatpush.msra.mxu0 %v157
    %2726 = vmatpush.msra.mxu0 %v155
    %2727 = vmatpush.msra.mxu0 %v153
    %2728 = vmatpush.msra.mxu0 %v151
    %2729 = vmatpush.msra.mxu0 %v149
    %2730 = vmatpush.msra.mxu0 %v147
    %2731 = vmatpush.msra.mxu0 %v145
    %2732 = vmatpush.msra.mxu0 %v143
    %2733 = vmatpush.msra.mxu0 %v141
    %2734 = vmatpush.msra.mxu0 %v139
    %2735 = vmatmul.f32.gmra.mxu0 %v2717
    %v2736 = vpop.f32.mrf.mxu0
    %v2737 = vadd.f32 0.0, %v2736
    %2738 = vdwg.mxu0
    %2739 = vmatpush.msra.mxu0 0.0
    %2740 = vmatpush.msra.mxu0 0.0
    %2741 = vmatpush.msra.mxu0 0.0
    %2742 = vmatpush.msra.mxu0 0.0
    %2743 = vmatpush.msra.mxu0 %v162
    %2744 = vmatpush.msra.mxu0 %v160
    %2745 = vmatpush.msra.mxu0 %v158
    %2746 = vmatpush.msra.mxu0 %v156
    %2747 = vmatpush.msra.mxu0 %v154
    %2748 = vmatpush.msra.mxu0 %v152
    %2749 = vmatpush.msra.mxu0 %v150
    %2750 = vmatpush.msra.mxu0 %v148
    %2751 = vmatpush.msra.mxu0 %v146
    %2752 = vmatpush.msra.mxu0 %v144
    %2753 = vmatpush.msra.mxu0 %v142
    %2754 = vmatpush.msra.mxu0 %v140
    %2755 = vmatmul.f32.gmra.mxu0 %v2717
    %v2756 = vpop.f32.mrf.mxu0
    %v2757 = vadd.f32 0.0, %v2756
    %2758 = vdwg.mxu0
    %v2759 = vadd.f32 %v2714, %v2737
    %v2760 = vadd.f32 %v2715, %v2757
    %v2761 = vadd.f32 %v2759, %v598
    %v2762 = vadd.f32 %v2760, %v599
    %v2763 = vmax.f32 %v2761, 0.0
    %v2764 = vmax.f32 %v2762, 0.0
    %v2765 = vmax.f32 %v2124, %v2125
    %v2766 = vmax.f32 %v2337, %v2338
    %v2767 = vmax.f32 %v2765, %v2766
    %v2768 = vmax.f32 %v2550, %v2551
    %v2769 = vmax.f32 %v2763, %v2764
    %v2770 = vmax.f32 %v2768, %v2769
    %v2772 = vsel %vm1251, %v2770, 0
    %2774 = vmatpush.msra.mxu0 0.0
    %2775 = vmatpush.msra.mxu0 0.0
    %2776 = vmatpush.msra.mxu0 0.0
    %2777 = vmatpush.msra.mxu0 0.0
    %2778 = vmatpush.msra.mxu0 0.0
    %2779 = vmatpush.msra.mxu0 %v1257
    %2780 = vmatpush.msra.mxu0 %v204
    %2781 = vmatpush.msra.mxu0 %v202
    %2782 = vmatpush.msra.mxu0 %v200
    %2783 = vmatpush.msra.mxu0 %v198
    %2784 = vmatpush.msra.mxu0 %v196
    %2785 = vmatpush.msra.mxu0 %v194
    %2786 = vmatpush.msra.mxu0 %v192
    %2787 = vmatpush.msra.mxu0 %v190
    %2788 = vmatpush.msra.mxu0 %v188
    %2789 = vmatpush.msra.mxu0 %v186
    %2790 = vmatmul.f32.gmra.mxu0 %v2772
    %v2791 = vpop.f32.mrf.mxu0
    %v2792 = vadd.f32 0.0, %v2791
    %2793 = vdwg.mxu0
    %2794 = vmatpush.msra.mxu0 0.0
    %2795 = vmatpush.msra.mxu0 0.0
    %2796 = vmatpush.msra.mxu0 0.0
    %2797 = vmatpush.msra.mxu0 0.0
    %2798 = vmatpush.msra.mxu0 0.0
    %2799 = vmatpush.msra.mxu0 %v1260
    %2800 = vmatpush.msra.mxu0 %v205
    %2801 = vmatpush.msra.mxu0 %v203
    %2802 = vmatpush.msra.mxu0 %v201
    %2803 = vmatpush.msra.mxu0 %v199
    %2804 = vmatpush.msra.mxu0 %v197
    %2805 = vmatpush.msra.mxu0 %v195
    %2806 = vmatpush.msra.mxu0 %v193
    %2807 = vmatpush.msra.mxu0 %v191
    %2808 = vmatpush.msra.mxu0 %v189
    %2809 = vmatpush.msra.mxu0 %v187
    %2810 = vmatmul.f32.gmra.mxu0 %v2772
    %v2811 = vpop.f32.mrf.mxu0
    %v2812 = vadd.f32 0.0, %v2811
    %2813 = vdwg.mxu0
    %v2815 = vsel %vm1251, %v2767, 0
    %2817 = vmatpush.msra.mxu0 0.0
    %2818 = vmatpush.msra.mxu0 0.0
    %2819 = vmatpush.msra.mxu0 0.0
    %2820 = vmatpush.msra.mxu0 0.0
    %2821 = vmatpush.msra.mxu0 0.0
    %2822 = vmatpush.msra.mxu0 %v1306
    %2823 = vmatpush.msra.mxu0 %v181
    %2824 = vmatpush.msra.mxu0 %v179
    %2825 = vmatpush.msra.mxu0 %v177
    %2826 = vmatpush.msra.mxu0 %v175
    %2827 = vmatpush.msra.mxu0 %v173
    %2828 = vmatpush.msra.mxu0 %v171
    %2829 = vmatpush.msra.mxu0 %v169
    %2830 = vmatpush.msra.mxu0 %v167
    %2831 = vmatpush.msra.mxu0 %v165
    %2832 = vmatpush.msra.mxu0 %v163
    %2833 = vmatmul.f32.gmra.mxu0 %v2815
    %v2834 = vpop.f32.mrf.mxu0
    %v2835 = vadd.f32 %v2792, %v2834
    %2836 = vdwg.mxu0
    %2837 = vmatpush.msra.mxu0 0.0
    %2838 = vmatpush.msra.mxu0 0.0
    %2839 = vmatpush.msra.mxu0 0.0
    %2840 = vmatpush.msra.mxu0 0.0
    %2841 = vmatpush.msra.mxu0 0.0
    %2842 = vmatpush.msra.mxu0 %v1309
    %2843 = vmatpush.msra.mxu0 %v182
    %2844 = vmatpush.msra.mxu0 %v180
    %2845 = vmatpush.msra.mxu0 %v178
    %2846 = vmatpush.msra.mxu0 %v176
    %2847 = vmatpush.msra.mxu0 %v174
    %2848 = vmatpush.msra.mxu0 %v172
    %2849 = vmatpush.msra.mxu0 %v170
    %2850 = vmatpush.msra.mxu0 %v168
    %2851 = vmatpush.msra.mxu0 %v166
    %2852 = vmatpush.msra.mxu0 %v164
    %2853 = vmatmul.f32.gmra.mxu0 %v2815
    %v2854 = vpop.f32.mrf.mxu0
    %v2855 = vadd.f32 %v2812, %v2854
    %2856 = vdwg.mxu0
    %v2857 = vrot.slane %v2767, 1
    %v2858 = vsel %vm1251, %v2857, 0
    %2860 = vmatpush.msra.mxu0 0.0
    %2861 = vmatpush.msra.mxu0 0.0
    %2862 = vmatpush.msra.mxu0 0.0
    %2863 = vmatpush.msra.mxu0 0.0
    %2864 = vmatpush.msra.mxu0 0.0
    %2865 = vmatpush.msra.mxu0 %v1355
    %2866 = vmatpush.msra.mxu0 %v227
    %2867 = vmatpush.msra.mxu0 %v225
    %2868 = vmatpush.msra.mxu0 %v223
    %2869 = vmatpush.msra.mxu0 %v221
    %2870 = vmatpush.msra.mxu0 %v219
    %2871 = vmatpush.msra.mxu0 %v217
    %2872 = vmatpush.msra.mxu0 %v215
    %2873 = vmatpush.msra.mxu0 %v213
    %2874 = vmatpush.msra.mxu0 %v211
    %2875 = vmatpush.msra.mxu0 %v209
    %2876 = vmatmul.f32.gmra.mxu0 %v2858
    %v2877 = vpop.f32.mrf.mxu0
    %v2878 = vadd.f32 0.0, %v2877
    %2879 = vdwg.mxu0
    %2880 = vmatpush.msra.mxu0 0.0
    %2881 = vmatpush.msra.mxu0 0.0
    %2882 = vmatpush.msra.mxu0 0.0
    %2883 = vmatpush.msra.mxu0 0.0
    %2884 = vmatpush.msra.mxu0 0.0
    %2885 = vmatpush.msra.mxu0 %v1358
    %2886 = vmatpush.msra.mxu0 %v228
    %2887 = vmatpush.msra.mxu0 %v226
    %2888 = vmatpush.msra.mxu0 %v224
    %2889 = vmatpush.msra.mxu0 %v222
    %2890 = vmatpush.msra.mxu0 %v220
    %2891 = vmatpush.msra.mxu0 %v218
    %2892 = vmatpush.msra.mxu0 %v216
    %2893 = vmatpush.msra.mxu0 %v214
    %2894 = vmatpush.msra.mxu0 %v212
    %2895 = vmatpush.msra.mxu0 %v210
    %2896 = vmatmul.f32.gmra.mxu0 %v2858
    %v2897 = vpop.f32.mrf.mxu0
    %v2898 = vadd.f32 0.0, %v2897
    %2899 = vdwg.mxu0
    %v2900 = vadd.f32 %v2835, %v2878
    %v2901 = vadd.f32 %v2855, %v2898
    %v2902 = vrot.slane %v2770, 1
    %v2903 = vsel %vm1251, %v2902, 0
    %2905 = vmatpush.msra.mxu0 0.0
    %2906 = vmatpush.msra.mxu0 0.0
    %2907 = vmatpush.msra.mxu0 0.0
    %2908 = vmatpush.msra.mxu0 0.0
    %2909 = vmatpush.msra.mxu0 0.0
    %2910 = vmatpush.msra.mxu0 %v1406
    %2911 = vmatpush.msra.mxu0 %v250
    %2912 = vmatpush.msra.mxu0 %v248
    %2913 = vmatpush.msra.mxu0 %v246
    %2914 = vmatpush.msra.mxu0 %v244
    %2915 = vmatpush.msra.mxu0 %v242
    %2916 = vmatpush.msra.mxu0 %v240
    %2917 = vmatpush.msra.mxu0 %v238
    %2918 = vmatpush.msra.mxu0 %v236
    %2919 = vmatpush.msra.mxu0 %v234
    %2920 = vmatpush.msra.mxu0 %v232
    %2921 = vmatmul.f32.gmra.mxu0 %v2903
    %v2922 = vpop.f32.mrf.mxu0
    %v2923 = vadd.f32 0.0, %v2922
    %2924 = vdwg.mxu0
    %2925 = vmatpush.msra.mxu0 0.0
    %2926 = vmatpush.msra.mxu0 0.0
    %2927 = vmatpush.msra.mxu0 0.0
    %2928 = vmatpush.msra.mxu0 0.0
    %2929 = vmatpush.msra.mxu0 0.0
    %2930 = vmatpush.msra.mxu0 %v1409
    %2931 = vmatpush.msra.mxu0 %v251
    %2932 = vmatpush.msra.mxu0 %v249
    %2933 = vmatpush.msra.mxu0 %v247
    %2934 = vmatpush.msra.mxu0 %v245
    %2935 = vmatpush.msra.mxu0 %v243
    %2936 = vmatpush.msra.mxu0 %v241
    %2937 = vmatpush.msra.mxu0 %v239
    %2938 = vmatpush.msra.mxu0 %v237
    %2939 = vmatpush.msra.mxu0 %v235
    %2940 = vmatpush.msra.mxu0 %v233
    %2941 = vmatmul.f32.gmra.mxu0 %v2903
    %v2942 = vpop.f32.mrf.mxu0
    %v2943 = vadd.f32 0.0, %v2942
    %2944 = vdwg.mxu0
    %v2945 = vadd.f32 %v2900, %v2923
    %v2946 = vadd.f32 %v2901, %v2943
    %v2947 = vrot.slane %v2767, 2
    %v2948 = vsel %vm1251, %v2947, 0
    %2950 = vmatpush.msra.mxu0 0.0
    %2951 = vmatpush.msra.mxu0 0.0
    %2952 = vmatpush.msra.mxu0 0.0
    %2953 = vmatpush.msra.mxu0 0.0
    %2954 = vmatpush.msra.mxu0 0.0
    %2955 = vmatpush.msra.mxu0 %v1457
    %2956 = vmatpush.msra.mxu0 %v273
    %2957 = vmatpush.msra.mxu0 %v271
    %2958 = vmatpush.msra.mxu0 %v269
    %2959 = vmatpush.msra.mxu0 %v267
    %2960 = vmatpush.msra.mxu0 %v265
    %2961 = vmatpush.msra.mxu0 %v263
    %2962 = vmatpush.msra.mxu0 %v261
    %2963 = vmatpush.msra.mxu0 %v259
    %2964 = vmatpush.msra.mxu0 %v257
    %2965 = vmatpush.msra.mxu0 %v255
    %2966 = vmatmul.f32.gmra.mxu0 %v2948
    %v2967 = vpop.f32.mrf.mxu0
    %v2968 = vadd.f32 0.0, %v2967
    %2969 = vdwg.mxu0
    %2970 = vmatpush.msra.mxu0 0.0
    %2971 = vmatpush.msra.mxu0 0.0
    %2972 = vmatpush.msra.mxu0 0.0
    %2973 = vmatpush.msra.mxu0 0.0
    %2974 = vmatpush.msra.mxu0 0.0
    %2975 = vmatpush.msra.mxu0 %v1460
    %2976 = vmatpush.msra.mxu0 %v274
    %2977 = vmatpush.msra.mxu0 %v272
    %2978 = vmatpush.msra.mxu0 %v270
    %2979 = vmatpush.msra.mxu0 %v268
    %2980 = vmatpush.msra.mxu0 %v266
    %2981 = vmatpush.msra.mxu0 %v264
    %2982 = vmatpush.msra.mxu0 %v262
    %2983 = vmatpush.msra.mxu0 %v260
    %2984 = vmatpush.msra.mxu0 %v258
    %2985 = vmatpush.msra.mxu0 %v256
    %2986 = vmatmul.f32.gmra.mxu0 %v2948
    %v2987 = vpop.f32.mrf.mxu0
    %v2988 = vadd.f32 0.0, %v2987
    %2989 = vdwg.mxu0
    %v2990 = vadd.f32 %v2945, %v2968
    %v2991 = vadd.f32 %v2946, %v2988
    %v2992 = vadd.f32 %v2990, %v1505
    %v2993 = vadd.f32 %v2991, %v1506
    %v2994 = vmax.f32 %v2992, 0.0
    %v2995 = vmax.f32 %v2993, 0.0
    %2996 = vmatpush.msra.mxu0 0.0
    %2997 = vmatpush.msra.mxu0 0.0
    %2998 = vmatpush.msra.mxu0 0.0
    %2999 = vmatpush.msra.mxu0 0.0
    %3000 = vmatpush.msra.mxu0 0.0
    %3001 = vmatpush.msra.mxu0 %v1257
    %3002 = vmatpush.msra.mxu0 %v204
    %3003 = vmatpush.msra.mxu0 %v202
    %3004 = vmatpush.msra.mxu0 %v200
    %3005 = vmatpush.msra.mxu0 %v198
    %3006 = vmatpush.msra.mxu0 %v196
    %3007 = vmatpush.msra.mxu0 %v194
    %3008 = vmatpush.msra.mxu0 %v192
    %3009 = vmatpush.msra.mxu0 %v190
    %3010 = vmatpush.msra.mxu0 %v188
    %3011 = vmatpush.msra.mxu0 %v186
    %3012 = vmatmul.f32.gmra.mxu0 %v2858
    %v3013 = vpop.f32.mrf.mxu0
    %v3014 = vadd.f32 0.0, %v3013
    %3015 = vdwg.mxu0
    %3016 = vmatpush.msra.mxu0 0.0
    %3017 = vmatpush.msra.mxu0 0.0
    %3018 = vmatpush.msra.mxu0 0.0
    %3019 = vmatpush.msra.mxu0 0.0
    %3020 = vmatpush.msra.mxu0 0.0
    %3021 = vmatpush.msra.mxu0 %v1260
    %3022 = vmatpush.msra.mxu0 %v205
    %3023 = vmatpush.msra.mxu0 %v203
    %3024 = vmatpush.msra.mxu0 %v201
    %3025 = vmatpush.msra.mxu0 %v199
    %3026 = vmatpush.msra.mxu0 %v197
    %3027 = vmatpush.msra.mxu0 %v195
    %3028 = vmatpush.msra.mxu0 %v193
    %3029 = vmatpush.msra.mxu0 %v191
    %3030 = vmatpush.msra.mxu0 %v189
    %3031 = vmatpush.msra.mxu0 %v187
    %3032 = vmatmul.f32.gmra.mxu0 %v2858
    %v3033 = vpop.f32.mrf.mxu0
    %v3034 = vadd.f32 0.0, %v3033
    %3035 = vdwg.mxu0
    %3036 = vmatpush.msra.mxu0 0.0
    %3037 = vmatpush.msra.mxu0 0.0
    %3038 = vmatpush.msra.mxu0 0.0
    %3039 = vmatpush.msra.mxu0 0.0
    %3040 = vmatpush.msra.mxu0 0.0
    %3041 = vmatpush.msra.mxu0 %v1306
    %3042 = vmatpush.msra.mxu0 %v181
    %3043 = vmatpush.msra.mxu0 %v179
    %3044 = vmatpush.msra.mxu0 %v177
    %3045 = vmatpush.msra.mxu0 %v175
    %3046 = vmatpush.msra.mxu0 %v173
    %3047 = vmatpush.msra.mxu0 %v171
    %3048 = vmatpush.msra.mxu0 %v169
    %3049 = vmatpush.msra.mxu0 %v167
    %3050 = vmatpush.msra.mxu0 %v165
    %3051 = vmatpush.msra.mxu0 %v163
    %3052 = vmatmul.f32.gmra.mxu0 %v2772
    %v3053 = vpop.f32.mrf.mxu0
    %v3054 = vadd.f32 %v3014, %v3053
    %3055 = vdwg.mxu0
    %3056 = vmatpush.msra.mxu0 0.0
    %3057 = vmatpush.msra.mxu0 0.0
    %3058 = vmatpush.msra.mxu0 0.0
    %3059 = vmatpush.msra.mxu0 0.0
    %3060 = vmatpush.msra.mxu0 0.0
    %3061 = vmatpush.msra.mxu0 %v1309
    %3062 = vmatpush.msra.mxu0 %v182
    %3063 = vmatpush.msra.mxu0 %v180
    %3064 = vmatpush.msra.mxu0 %v178
    %3065 = vmatpush.msra.mxu0 %v176
    %3066 = vmatpush.msra.mxu0 %v174
    %3067 = vmatpush.msra.mxu0 %v172
    %3068 = vmatpush.msra.mxu0 %v170
    %3069 = vmatpush.msra.mxu0 %v168
    %3070 = vmatpush.msra.mxu0 %v166
    %3071 = vmatpush.msra.mxu0 %v164
    %3072 = vmatmul.f32.gmra.mxu0 %v2772
    %v3073 = vpop.f32.mrf.mxu0
    %v3074 = vadd.f32 %v3034, %v3073
    %3075 = vdwg.mxu0
    %3076 = vmatpush.msra.mxu0 0.0
    %3077 = vmatpush.msra.mxu0 0.0
    %3078 = vmatpush.msra.mxu0 0.0
    %3079 = vmatpush.msra.mxu0 0.0
    %3080 = vmatpush.msra.mxu0 0.0
    %3081 = vmatpush.msra.mxu0 %v1355
    %3082 = vmatpush.msra.mxu0 %v227
    %3083 = vmatpush.msra.mxu0 %v225
    %3084 = vmatpush.msra.mxu0 %v223
    %3085 = vmatpush.msra.mxu0 %v221
    %3086 = vmatpush.msra.mxu0 %v219
    %3087 = vmatpush.msra.mxu0 %v217
    %3088 = vmatpush.msra.mxu0 %v215
    %3089 = vmatpush.msra.mxu0 %v213
    %3090 = vmatpush.msra.mxu0 %v211
    %3091 = vmatpush.msra.mxu0 %v209
    %3092 = vmatmul.f32.gmra.mxu0 %v2903
    %v3093 = vpop.f32.mrf.mxu0
    %v3094 = vadd.f32 0.0, %v3093
    %3095 = vdwg.mxu0
    %3096 = vmatpush.msra.mxu0 0.0
    %3097 = vmatpush.msra.mxu0 0.0
    %3098 = vmatpush.msra.mxu0 0.0
    %3099 = vmatpush.msra.mxu0 0.0
    %3100 = vmatpush.msra.mxu0 0.0
    %3101 = vmatpush.msra.mxu0 %v1358
    %3102 = vmatpush.msra.mxu0 %v228
    %3103 = vmatpush.msra.mxu0 %v226
    %3104 = vmatpush.msra.mxu0 %v224
    %3105 = vmatpush.msra.mxu0 %v222
    %3106 = vmatpush.msra.mxu0 %v220
    %3107 = vmatpush.msra.mxu0 %v218
    %3108 = vmatpush.msra.mxu0 %v216
    %3109 = vmatpush.msra.mxu0 %v214
    %3110 = vmatpush.msra.mxu0 %v212
    %3111 = vmatpush.msra.mxu0 %v210
    %3112 = vmatmul.f32.gmra.mxu0 %v2903
    %v3113 = vpop.f32.mrf.mxu0
    %v3114 = vadd.f32 0.0, %v3113
    %3115 = vdwg.mxu0
    %v3116 = vadd.f32 %v3054, %v3094
    %v3117 = vadd.f32 %v3074, %v3114
    %3118 = vmatpush.msra.mxu0 0.0
    %3119 = vmatpush.msra.mxu0 0.0
    %3120 = vmatpush.msra.mxu0 0.0
    %3121 = vmatpush.msra.mxu0 0.0
    %3122 = vmatpush.msra.mxu0 0.0
    %3123 = vmatpush.msra.mxu0 %v1406
    %3124 = vmatpush.msra.mxu0 %v250
    %3125 = vmatpush.msra.mxu0 %v248
    %3126 = vmatpush.msra.mxu0 %v246
    %3127 = vmatpush.msra.mxu0 %v244
    %3128 = vmatpush.msra.mxu0 %v242
    %3129 = vmatpush.msra.mxu0 %v240
    %3130 = vmatpush.msra.mxu0 %v238
    %3131 = vmatpush.msra.mxu0 %v236
    %3132 = vmatpush.msra.mxu0 %v234
    %3133 = vmatpush.msra.mxu0 %v232
    %3134 = vmatmul.f32.gmra.mxu0 %v2948
    %v3135 = vpop.f32.mrf.mxu0
    %v3136 = vadd.f32 0.0, %v3135
    %3137 = vdwg.mxu0
    %3138 = vmatpush.msra.mxu0 0.0
    %3139 = vmatpush.msra.mxu0 0.0
    %3140 = vmatpush.msra.mxu0 0.0
    %3141 = vmatpush.msra.mxu0 0.0
    %3142 = vmatpush.msra.mxu0 0.0
    %3143 = vmatpush.msra.mxu0 %v1409
    %3144 = vmatpush.msra.mxu0 %v251
    %3145 = vmatpush.msra.mxu0 %v249
    %3146 = vmatpush.msra.mxu0 %v247
    %3147 = vmatpush.msra.mxu0 %v245
    %3148 = vmatpush.msra.mxu0 %v243
    %3149 = vmatpush.msra.mxu0 %v241
    %3150 = vmatpush.msra.mxu0 %v239
    %3151 = vmatpush.msra.mxu0 %v237
    %3152 = vmatpush.msra.mxu0 %v235
    %3153 = vmatpush.msra.mxu0 %v233
    %3154 = vmatmul.f32.gmra.mxu0 %v2948
    %v3155 = vpop.f32.mrf.mxu0
    %v3156 = vadd.f32 0.0, %v3155
    %3157 = vdwg.mxu0
    %v3158 = vadd.f32 %v3116, %v3136
    %v3159 = vadd.f32 %v3117, %v3156
    %v3160 = vrot.slane %v2770, 2
    %v3161 = vsel %vm1251, %v3160, 0
    %3163 = vmatpush.msra.mxu0 0.0
    %3164 = vmatpush.msra.mxu0 0.0
    %3165 = vmatpush.msra.mxu0 0.0
    %3166 = vmatpush.msra.mxu0 0.0
    %3167 = vmatpush.msra.mxu0 0.0
    %3168 = vmatpush.msra.mxu0 %v1457
    %3169 = vmatpush.msra.mxu0 %v273
    %3170 = vmatpush.msra.mxu0 %v271
    %3171 = vmatpush.msra.mxu0 %v269
    %3172 = vmatpush.msra.mxu0 %v267
    %3173 = vmatpush.msra.mxu0 %v265
    %3174 = vmatpush.msra.mxu0 %v263
    %3175 = vmatpush.msra.mxu0 %v261
    %3176 = vmatpush.msra.mxu0 %v259
    %3177 = vmatpush.msra.mxu0 %v257
    %3178 = vmatpush.msra.mxu0 %v255
    %3179 = vmatmul.f32.gmra.mxu0 %v3161
    %v3180 = vpop.f32.mrf.mxu0
    %v3181 = vadd.f32 0.0, %v3180
    %3182 = vdwg.mxu0
    %3183 = vmatpush.msra.mxu0 0.0
    %3184 = vmatpush.msra.mxu0 0.0
    %3185 = vmatpush.msra.mxu0 0.0
    %3186 = vmatpush.msra.mxu0 0.0
    %3187 = vmatpush.msra.mxu0 0.0
    %3188 = vmatpush.msra.mxu0 %v1460
    %3189 = vmatpush.msra.mxu0 %v274
    %3190 = vmatpush.msra.mxu0 %v272
    %3191 = vmatpush.msra.mxu0 %v270
    %3192 = vmatpush.msra.mxu0 %v268
    %3193 = vmatpush.msra.mxu0 %v266
    %3194 = vmatpush.msra.mxu0 %v264
    %3195 = vmatpush.msra.mxu0 %v262
    %3196 = vmatpush.msra.mxu0 %v260
    %3197 = vmatpush.msra.mxu0 %v258
    %3198 = vmatpush.msra.mxu0 %v256
    %3199 = vmatmul.f32.gmra.mxu0 %v3161
    %v3200 = vpop.f32.mrf.mxu0
    %v3201 = vadd.f32 0.0, %v3200
    %3202 = vdwg.mxu0
    %v3203 = vadd.f32 %v3158, %v3181
    %v3204 = vadd.f32 %v3159, %v3201
    %v3205 = vadd.f32 %v3203, %v1505
    %v3206 = vadd.f32 %v3204, %v1506
    %v3207 = vmax.f32 %v3205, 0.0
    %v3208 = vmax.f32 %v3206, 0.0
    %v3209 = vmax.f32 %v2994, %v2995
    %v3210 = vmax.f32 %v3207, %v3208
    %v3211 = vmax.f32 %v3209, %v3210
    %v3213 = vrot.slane %v3211, 1
    %v3214 = vsel %vm1731, %v3213, 0
    %3216 = vmatpush.msra.mxu0 0.0
    %3217 = vmatpush.msra.mxu0 0.0
    %3218 = vmatpush.msra.mxu0 0.0
    %3219 = vmatpush.msra.mxu0 0.0
    %3220 = vmatpush.msra.mxu0 0.0
    %3221 = vmatpush.msra.mxu0 0.0
    %3222 = vmatpush.msra.mxu0 %v297
    %3223 = vmatpush.msra.mxu0 %v296
    %3224 = vmatpush.msra.mxu0 %v295
    %3225 = vmatpush.msra.mxu0 %v294
    %3226 = vmatpush.msra.mxu0 %v293
    %3227 = vmatpush.msra.mxu0 %v292
    %3228 = vmatpush.msra.mxu0 %v291
    %3229 = vmatpush.msra.mxu0 %v290
    %3230 = vmatpush.msra.mxu0 %v289
    %3231 = vmatpush.msra.mxu0 %v288
    %3232 = vmatmul.f32.gmra.mxu0 %v3214
    %v3233 = vpop.f32.mrf.mxu0
    %v3234 = vadd.f32 0.0, %v3233
    %3235 = vdwg.mxu0
    %v3236 = vsel %vm1731, %v3211, 0
    %3238 = vmatpush.msra.mxu0 0.0
    %3239 = vmatpush.msra.mxu0 0.0
    %3240 = vmatpush.msra.mxu0 0.0
    %3241 = vmatpush.msra.mxu0 0.0
    %3242 = vmatpush.msra.mxu0 0.0
    %3243 = vmatpush.msra.mxu0 0.0
    %3244 = vmatpush.msra.mxu0 %v286
    %3245 = vmatpush.msra.mxu0 %v285
    %3246 = vmatpush.msra.mxu0 %v284
    %3247 = vmatpush.msra.mxu0 %v283
    %3248 = vmatpush.msra.mxu0 %v282
    %3249 = vmatpush.msra.mxu0 %v281
    %3250 = vmatpush.msra.mxu0 %v280
    %3251 = vmatpush.msra.mxu0 %v279
    %3252 = vmatpush.msra.mxu0 %v278
    %3253 = vmatpush.msra.mxu0 %v277
    %3254 = vmatmul.f32.gmra.mxu0 %v3236
    %v3255 = vpop.f32.mrf.mxu0
    %v3256 = vadd.f32 %v3234, %v3255
    %3257 = vdwg.mxu0
    %v3258 = vrot.slane %v3211, 2
    %v3259 = vsel %vm1731, %v3258, 0
    %3261 = vmatpush.msra.mxu0 0.0
    %3262 = vmatpush.msra.mxu0 0.0
    %3263 = vmatpush.msra.mxu0 0.0
    %3264 = vmatpush.msra.mxu0 0.0
    %3265 = vmatpush.msra.mxu0 0.0
    %3266 = vmatpush.msra.mxu0 0.0
    %3267 = vmatpush.msra.mxu0 %v308
    %3268 = vmatpush.msra.mxu0 %v307
    %3269 = vmatpush.msra.mxu0 %v306
    %3270 = vmatpush.msra.mxu0 %v305
    %3271 = vmatpush.msra.mxu0 %v304
    %3272 = vmatpush.msra.mxu0 %v303
    %3273 = vmatpush.msra.mxu0 %v302
    %3274 = vmatpush.msra.mxu0 %v301
    %3275 = vmatpush.msra.mxu0 %v300
    %3276 = vmatpush.msra.mxu0 %v299
    %3277 = vmatmul.f32.gmra.mxu0 %v3259
    %v3278 = vpop.f32.mrf.mxu0
    %v3279 = vadd.f32 0.0, %v3278
    %3280 = vdwg.mxu0
    %v3281 = vadd.f32 %v3256, %v3279
    %v3282 = vrot.slane %v3211, 3
    %v3283 = vsel %vm1731, %v3282, 0
    %3285 = vmatpush.msra.mxu0 0.0
    %3286 = vmatpush.msra.mxu0 0.0
    %3287 = vmatpush.msra.mxu0 0.0
    %3288 = vmatpush.msra.mxu0 0.0
    %3289 = vmatpush.msra.mxu0 0.0
    %3290 = vmatpush.msra.mxu0 0.0
    %3291 = vmatpush.msra.mxu0 %v319
    %3292 = vmatpush.msra.mxu0 %v318
    %3293 = vmatpush.msra.mxu0 %v317
    %3294 = vmatpush.msra.mxu0 %v316
    %3295 = vmatpush.msra.mxu0 %v315
    %3296 = vmatpush.msra.mxu0 %v314
    %3297 = vmatpush.msra.mxu0 %v313
    %3298 = vmatpush.msra.mxu0 %v312
    %3299 = vmatpush.msra.mxu0 %v311
    %3300 = vmatpush.msra.mxu0 %v310
    %3301 = vmatmul.f32.gmra.mxu0 %v3283
    %v3302 = vpop.f32.mrf.mxu0
    %v3303 = vadd.f32 0.0, %v3302
    %3304 = vdwg.mxu0
    %v3305 = vadd.f32 %v3281, %v3303
    %v3306 = vrot.slane %v3211, 4
    %v3307 = vsel %vm1731, %v3306, 0
    %3309 = vmatpush.msra.mxu0 0.0
    %3310 = vmatpush.msra.mxu0 0.0
    %3311 = vmatpush.msra.mxu0 0.0
    %3312 = vmatpush.msra.mxu0 0.0
    %3313 = vmatpush.msra.mxu0 0.0
    %3314 = vmatpush.msra.mxu0 0.0
    %3315 = vmatpush.msra.mxu0 %v330
    %3316 = vmatpush.msra.mxu0 %v329
    %3317 = vmatpush.msra.mxu0 %v328
    %3318 = vmatpush.msra.mxu0 %v327
    %3319 = vmatpush.msra.mxu0 %v326
    %3320 = vmatpush.msra.mxu0 %v325
    %3321 = vmatpush.msra.mxu0 %v324
    %3322 = vmatpush.msra.mxu0 %v323
    %3323 = vmatpush.msra.mxu0 %v322
    %3324 = vmatpush.msra.mxu0 %v321
    %3325 = vmatmul.f32.gmra.mxu0 %v3307
    %v3326 = vpop.f32.mrf.mxu0
    %v3327 = vadd.f32 0.0, %v3326
    %3328 = vdwg.mxu0
    %v3329 = vadd.f32 %v3305, %v3327
    %v3330 = vadd.f32 %v3329, %v333
    %v3331 = vmax.f32 %v3330, 0.0
    %3332 = vmatpush.msra.mxu0 %v349
    %3333 = vmatpush.msra.mxu0 %v348
    %3334 = vmatpush.msra.mxu0 %v347
    %3335 = vmatpush.msra.mxu0 %v346
    %3336 = vmatpush.msra.mxu0 %v345
    %3337 = vmatpush.msra.mxu0 %v344
    %3338 = vmatpush.msra.mxu0 %v343
    %3339 = vmatpush.msra.mxu0 %v342
    %3340 = vmatpush.msra.mxu0 %v341
    %3341 = vmatpush.msra.mxu0 %v340
    %3342 = vmatpush.msra.mxu0 %v339
    %3343 = vmatpush.msra.mxu0 %v338
    %3344 = vmatpush.msra.mxu0 %v337
    %3345 = vmatpush.msra.mxu0 %v336
    %3346 = vmatpush.msra.mxu0 %v335
    %3347 = vmatpush.msra.mxu0 %v334
    %3348 = vmatmul.f32.gmra.mxu0 %v3331
    %v3349 = vpop.f32.mrf.mxu0
    %v3350 = vadd.f32 %v350, %v3349
    %3351 = vdwg.mxu0
    %v3352 = vmax.f32 %v3350, 0.0
    %3353 = vmatpush.msra.mxu0 %v366
    %3354 = vmatpush.msra.mxu0 %v365
    %3355 = vmatpush.msra.mxu0 %v364
    %3356 = vmatpush.msra.mxu0 %v363
    %3357 = vmatpush.msra.mxu0 %v362
    %3358 = vmatpush.msra.mxu0 %v361
    %3359 = vmatpush.msra.mxu0 %v360
    %3360 = vmatpush.msra.mxu0 %v359
    %3361 = vmatpush.msra.mxu0 %v358
    %3362 = vmatpush.msra.mxu0 %v357
    %3363 = vmatpush.msra.mxu0 %v356
    %3364 = vmatpush.msra.mxu0 %v355
    %3365 = vmatpush.msra.mxu0 %v354
    %3366 = vmatpush.msra.mxu0 %v353
    %3367 = vmatpush.msra.mxu0 %v352
    %3368 = vmatpush.msra.mxu0 %v351
    %3369 = vmatmul.f32.gmra.mxu0 %v3352
    %v3370 = vpop.f32.mrf.mxu0
    %v3371 = vadd.f32 %v367, %v3370
    %3372 = vdwg.mxu0
    %3373 = vst.msk [vmem:[#allocation2 + $0x1] sm:$0x1] %vm1891, %v3371
    // Predicated region
    $region46: #{simple_cnn_forward.1} parent=1 // pred_check
      _
    $region47: #{simple_cnn_forward.1} parent=1 // pred_check_branch
      %3375 = sbr.rel (0) target = $region49
    $region48: #{simple_cnn_forward.1} parent=1 // pred_region
      %3377 = vsyncadd [#allocation3], 0
      %s3379 = sshll.u32 [#allocation2], 4
      %s3380 = int_to_ptr.vmem [resolvable:$true] %s3379
      %s3381 = sshll.u32 %s11, 4
      %s3382 = int_to_ptr.hbm [resolvable:$true] %s3381
      %3384 = dma.vmem_to_hbm [thread:$0]  %s3380, 32, %s3382, [#allocation3]
    $region49: #{simple_cnn_forward.1} parent=1 // pred_fallthru
      _
    // Predicated region
    $region50: #{simple_cnn_forward.1} parent=1 // pred_check
      _
    $region51: #{simple_cnn_forward.1} parent=1 // pred_check_branch
      %3386 = sbr.rel (0) target = $region53
    $region52: #{simple_cnn_forward.1} parent=1 // pred_region
      %3388 = dma.done [#allocation3], 32
    $region53: #{simple_cnn_forward.1} parent=1 // pred_fallthru
      _
    %3389 = vsyncpa [#allocation3], 1

</llo_original>
